<compile_context>
chip_gen: v7x
topology: tpu7x:2x2x1
jax: 0.10.0
libtpu: 0.0.40
codegen_flags: <defaults>
</compile_context>

<pallas_src>
import math

import jax
import jax.numpy as jnp
from jax import lax
from jax.experimental import pallas as pl
from jax.experimental.pallas import tpu as pltpu

# ----------------------- small synthetic BERT config -----------------------
HIDDEN = 32          # bert-base: 768
HEADS = 4            # bert-base: 12
HEAD_DIM = HIDDEN // HEADS
INTER = 64           # bert-base: 3072
LAYERS = 2           # bert-base: 12
VOCAB = 100          # bert-base: 30522
TYPE_VOCAB = 2
MAX_POS = 16
LN_EPS = 1e-12
ATTN_SCALE = 1.0 / math.sqrt(HEAD_DIM)

# TODO(synk): BertTokenizer (string -> ids) and the pretrained checkpoint have
# no Pallas equivalent; inputs are pre-tokenized ids / type ids / mask and the
# weights are deterministic synthetic tensors.


# --------------------------- in-kernel helpers ------------------------------
def _layernorm(x, g, b):
    mu = jnp.mean(x, axis=-1, keepdims=True)
    xc = x - mu
    var = jnp.mean(xc * xc, axis=-1, keepdims=True)
    return xc * lax.rsqrt(var + LN_EPS) * g + b


def _gelu_exact(x):
    # exact (erf-based) GELU, as used by HF BERT
    return 0.5 * x * (1.0 + lax.erf(x * (1.0 / math.sqrt(2.0))))


# ------------------------------ fused kernel --------------------------------
def _bert_layer_kernel(
    emb_ref, bias_ref, tok_mask_ref,
    emb_ln_g_ref, emb_ln_b_ref,
    wq_ref, wk_ref, wv_ref, bq_ref, bk_ref, bv_ref,
    wo_ref, bo_ref, ln1_g_ref, ln1_b_ref,
    wi_ref, bi_ref, wo2_ref, bo2_ref, ln2_g_ref, ln2_b_ref,
    out_ref, x_scratch,
):
    """One grid step = one (batch element, encoder layer).

    Activation lives in `x_scratch` (VMEM, f32) across the layer axis; layer
    weights are streamed (bf16) by BlockSpec; only the final masked hidden
    state is stored to HBM.
    """
    layer = pl.program_id(1)

    # Embedding LayerNorm once per batch element (layer 0 only).
    @pl.when(layer == 0)
    def _():
        x_scratch[...] = _layernorm(
            emb_ref[...], emb_ln_g_ref[...], emb_ln_b_ref[...])

    x = x_scratch[...]                                        # (S, H) f32
    # Broadcast activation over the head axis -> canonical batched matmuls
    # with the per-head weight layouts (no reshape / transpose of live data).
    x_bh = jnp.broadcast_to(x.astype(jnp.bfloat16), (HEADS,) + x.shape)

    # ---- Q/K/V projections, batched over heads: (HEADS,S,H) x (HEADS,H,Dh) --
    q = jnp.einsum("nsh,nhd->nsd", x_bh, wq_ref[0],
                   preferred_element_type=jnp.float32) + bq_ref[0]
    k = jnp.einsum("nsh,nhd->nsd", x_bh, wk_ref[0],
                   preferred_element_type=jnp.float32) + bk_ref[0]
    v = jnp.einsum("nsh,nhd->nsd", x_bh, wv_ref[0],
                   preferred_element_type=jnp.float32) + bv_ref[0]

    # ---- scores + softmax (f32) ----
    s = jnp.einsum("nqd,nkd->nqk",
                   q.astype(jnp.bfloat16), k.astype(jnp.bfloat16),
                   preferred_element_type=jnp.float32)        # (HEADS, S, S)
    s = s * ATTN_SCALE + bias_ref[...]                        # +(1,1,S) bias
    m = jnp.max(s, axis=-1, keepdims=True)
    e = jnp.exp(s - m)
    p = e * pl.reciprocal(jnp.sum(e, axis=-1, keepdims=True), approx=True)

    # ---- context + output projection (single batched matmul + head-sum) ----
    ctx = jnp.einsum("nqk,nkd->nqd",
                     p.astype(jnp.bfloat16), v.astype(jnp.bfloat16),
                     preferred_element_type=jnp.float32)      # (HEADS, S, Dh)
    proj = jnp.einsum("nsd,ndh->nsh",
                      ctx.astype(jnp.bfloat16), wo_ref[0],
                      preferred_element_type=jnp.float32)     # (HEADS, S, H)
    attn = jnp.sum(proj, axis=0) + bo_ref[0]                  # (S, H)

    # ---- add & LayerNorm ----
    x = _layernorm(attn + x, ln1_g_ref[0], ln1_b_ref[0])

    # ---- feed-forward (exact GELU, f32) + add & LayerNorm ----
    inter = jnp.dot(x.astype(jnp.bfloat16), wi_ref[0],
                    preferred_element_type=jnp.float32)
    inter = _gelu_exact(inter + bi_ref[0])
    ffn = jnp.dot(inter.astype(jnp.bfloat16), wo2_ref[0],
                  preferred_element_type=jnp.float32) + bo2_ref[0]
    x = _layernorm(ffn + x, ln2_g_ref[0], ln2_b_ref[0])

    x_scratch[...] = x

    # bert_out = last_hidden_state * attention_mask[..., None]
    @pl.when(layer == pl.num_programs(1) - 1)
    def _():
        out_ref[...] = x * tok_mask_ref[0]


# --------------------------- parameter construction -------------------------
def init_params(key):
    def normal(k, shape):
        return 0.02 * jax.random.normal(k, shape, dtype=jnp.float32)

    def per_head_in(w):
        # (H, H) -> (HEADS, H, Dh); head n is w[:, n*Dh:(n+1)*Dh]
        return jnp.transpose(w.reshape(HIDDEN, HEADS, HEAD_DIM), (1, 0, 2))

    keys = jax.random.split(key, 3 + LAYERS)
    params = {
        "word_emb": normal(keys[0], (VOCAB, HIDDEN)),
        "pos_emb": normal(keys[1], (MAX_POS, HIDDEN)),
        "type_emb": normal(keys[2], (TYPE_VOCAB, HIDDEN)),
        "emb_ln_g": jnp.ones((1, HIDDEN), jnp.float32),
        "emb_ln_b": jnp.zeros((1, HIDDEN), jnp.float32),
    }

    wq, wk, wv, bq, bk, bv = [], [], [], [], [], []
    wo, bo, ln1g, ln1b = [], [], [], []
    wi, bi, wo2, bo2, ln2g, ln2b = [], [], [], [], [], []
    for l in range(LAYERS):
        lk = jax.random.split(keys[3 + l], 6)
        wq.append(per_head_in(normal(lk[0], (HIDDEN, HIDDEN))))
        wk.append(per_head_in(normal(lk[1], (HIDDEN, HIDDEN))))
        wv.append(per_head_in(normal(lk[2], (HIDDEN, HIDDEN))))
        bq.append(jnp.zeros((HEADS, 1, HEAD_DIM), jnp.float32))
        bk.append(jnp.zeros((HEADS, 1, HEAD_DIM), jnp.float32))
        bv.append(jnp.zeros((HEADS, 1, HEAD_DIM), jnp.float32))
        # output projection split per head along its contraction axis
        wo.append(normal(lk[3], (HIDDEN, HIDDEN)).reshape(HEADS, HEAD_DIM, HIDDEN))
        bo.append(jnp.zeros((1, HIDDEN), jnp.float32))
        ln1g.append(jnp.ones((1, HIDDEN), jnp.float32))
        ln1b.append(jnp.zeros((1, HIDDEN), jnp.float32))
        wi.append(normal(lk[4], (HIDDEN, INTER)))
        bi.append(jnp.zeros((1, INTER), jnp.float32))
        wo2.append(normal(lk[5], (INTER, HIDDEN)))
        bo2.append(jnp.zeros((1, HIDDEN), jnp.float32))
        ln2g.append(jnp.ones((1, HIDDEN), jnp.float32))
        ln2b.append(jnp.zeros((1, HIDDEN), jnp.float32))

    bf16 = jnp.bfloat16   # MXU weights live in bf16 (f32 accumulation in-kernel)
    params.update({
        "wq": jnp.stack(wq).astype(bf16), "wk": jnp.stack(wk).astype(bf16),
        "wv": jnp.stack(wv).astype(bf16),
        "bq": jnp.stack(bq), "bk": jnp.stack(bk), "bv": jnp.stack(bv),
        "wo": jnp.stack(wo).astype(bf16), "bo": jnp.stack(bo),
        "ln1_g": jnp.stack(ln1g), "ln1_b": jnp.stack(ln1b),
        "wi": jnp.stack(wi).astype(bf16), "bi": jnp.stack(bi),
        "wo2": jnp.stack(wo2).astype(bf16), "bo2": jnp.stack(bo2),
        "ln2_g": jnp.stack(ln2g), "ln2_b": jnp.stack(ln2b),
    })
    return params


# --------------------------------- forward ----------------------------------
@jax.jit
def bert_forward(params, input_ids, token_type_ids, attention_mask):
    B, S = input_ids.shape

    # Embedding-table gathers are data-dependent; they stay in XLA glue.
    positions = jnp.arange(S)[None, :]
    emb = (params["word_emb"][input_ids]
           + params["pos_emb"][positions]
           + params["type_emb"][token_type_ids]).astype(jnp.float32)
    emb = emb.reshape(B * S, HIDDEN)

    mask_f = attention_mask.astype(jnp.float32)              # (B, S)
    attn_bias = ((1.0 - mask_f) * -10000.0)[:, None, :]      # (B, 1, S)
    tok_mask = mask_f[:, :, None]                            # (B, S, 1)

    # index maps: grid = (batch, layer)
    def batch_rows(b, l): return (b, 0)
    def batch3(b, l): return (b, 0, 0)
    def const2(b, l): return (0, 0)
    def layer3(b, l): return (l, 0, 0)
    def layer4(b, l): return (l, 0, 0, 0)

    in_specs = [
        pl.BlockSpec((S, HIDDEN), batch_rows),                 # emb
        pl.BlockSpec((1, 1, S), batch3),                       # additive bias
        pl.BlockSpec((1, S, 1), batch3),                       # token mask
        pl.BlockSpec((1, HIDDEN), const2),                     # emb_ln_g
        pl.BlockSpec((1, HIDDEN), const2),                     # emb_ln_b
        pl.BlockSpec((1, HEADS, HIDDEN, HEAD_DIM), layer4),    # wq
        pl.BlockSpec((1, HEADS, HIDDEN, HEAD_DIM), layer4),    # wk
        pl.BlockSpec((1, HEADS, HIDDEN, HEAD_DIM), layer4),    # wv
        pl.BlockSpec((1, HEADS, 1, HEAD_DIM), layer4),         # bq
        pl.BlockSpec((1, HEADS, 1, HEAD_DIM), layer4),         # bk
        pl.BlockSpec((1, HEADS, 1, HEAD_DIM), layer4),         # bv
        pl.BlockSpec((1, HEADS, HEAD_DIM, HIDDEN), layer4),    # wo
        pl.BlockSpec((1, 1, HIDDEN), layer3),                  # bo
        pl.BlockSpec((1, 1, HIDDEN), layer3),                  # ln1_g
        pl.BlockSpec((1, 1, HIDDEN), layer3),                  # ln1_b
        pl.BlockSpec((1, HIDDEN, INTER), layer3),              # wi
        pl.BlockSpec((1, 1, INTER), layer3),                   # bi
        pl.BlockSpec((1, INTER, HIDDEN), layer3),              # wo2
        pl.BlockSpec((1, 1, HIDDEN), layer3),                  # bo2
        pl.BlockSpec((1, 1, HIDDEN), layer3),                  # ln2_g
        pl.BlockSpec((1, 1, HIDDEN), layer3),                  # ln2_b
    ]
    out_spec = pl.BlockSpec((S, HIDDEN), batch_rows)

    # Advisory cost estimate (matmul flops + softmax/GELU transcendentals).
    flops = 2 * LAYERS * B * S * HIDDEN * (4 * HIDDEN + 2 * S + 2 * INTER)
    transcendentals = LAYERS * B * (HEADS * S * S + S * INTER)
    layer_w_bytes = 2 * (4 * HIDDEN * HIDDEN + 2 * HIDDEN * INTER)  # bf16
    layer_small_bytes = 4 * (3 * HEADS * HEAD_DIM + 6 * HIDDEN + INTER)
    act_bytes = 4 * B * S * (2 * HIDDEN + 2) + 4 * B * S
    bytes_accessed = B * LAYERS * (layer_w_bytes + layer_small_bytes) + act_bytes

    out = pl.pallas_call(
        _bert_layer_kernel,
        out_shape=jax.ShapeDtypeStruct((B * S, HIDDEN), jnp.float32),
        grid=(B, LAYERS),
        in_specs=in_specs,
        out_specs=out_spec,
        scratch_shapes=[pltpu.VMEM((S, HIDDEN), jnp.float32)],
        compiler_params=pltpu.CompilerParams(
            dimension_semantics=("parallel", "arbitrary"),
            vmem_limit_bytes=32 * 1024 * 1024),
        cost_estimate=pl.CostEstimate(
            flops=flops, transcendentals=transcendentals,
            bytes_accessed=bytes_accessed),
    )(emb, attn_bias, tok_mask,
      params["emb_ln_g"], params["emb_ln_b"],
      params["wq"], params["wk"], params["wv"],
      params["bq"], params["bk"], params["bv"],
      params["wo"], params["bo"], params["ln1_g"], params["ln1_b"],
      params["wi"], params["bi"], params["wo2"], params["bo2"],
      params["ln2_g"], params["ln2_b"])

    bert_out = out.reshape(B, S, HIDDEN)
    bert_mask = tok_mask                                      # (B, S, 1)
    return bert_out, bert_mask


if __name__ == "__main__":
    key = jax.random.PRNGKey(0)
    pkey, ikey = jax.random.split(key)
    params = init_params(pkey)

    B, S = 2, 8
    input_ids = jax.random.randint(ikey, (B, S), 0, VOCAB, dtype=jnp.int32)
    token_type_ids = jnp.zeros((B, S), jnp.int32)
    # second sentence shorter -> padded ('longest' padding in the tokenizer)
    attention_mask = jnp.array([[1, 1, 1, 1, 1, 1, 1, 1],
                                [1, 1, 1, 1, 1, 1, 0, 0]], dtype=jnp.int32)

    bert_out, bert_mask = bert_forward(params, input_ids, token_type_ids,
                                       attention_mask)
    jax.block_until_ready((bert_out, bert_mask))
    assert bert_out.shape == (B, S, HIDDEN) and bert_mask.shape == (B, S, 1)
    assert bool(jnp.all(jnp.isfinite(bert_out)))
    print("KERNEL_OK")
</pallas_src>

<mosaic_0001>
module attributes {stable_mosaic.version = 11 : i64} {
  func.func @_bert_layer_kernel(%arg0: i32, %arg1: i32, %arg2: memref<8x32xf32, #tpu.memory_space<vmem>>, %arg3: memref<1x1x8xf32, #tpu.memory_space<vmem>>, %arg4: memref<1x8x1xf32, #tpu.memory_space<vmem>>, %arg5: memref<1x32xf32, #tpu.memory_space<vmem>>, %arg6: memref<1x32xf32, #tpu.memory_space<vmem>>, %arg7: memref<1x4x32x8xbf16, #tpu.memory_space<vmem>>, %arg8: memref<1x4x32x8xbf16, #tpu.memory_space<vmem>>, %arg9: memref<1x4x32x8xbf16, #tpu.memory_space<vmem>>, %arg10: memref<1x4x1x8xf32, #tpu.memory_space<vmem>>, %arg11: memref<1x4x1x8xf32, #tpu.memory_space<vmem>>, %arg12: memref<1x4x1x8xf32, #tpu.memory_space<vmem>>, %arg13: memref<1x4x8x32xbf16, #tpu.memory_space<vmem>>, %arg14: memref<1x1x32xf32, #tpu.memory_space<vmem>>, %arg15: memref<1x1x32xf32, #tpu.memory_space<vmem>>, %arg16: memref<1x1x32xf32, #tpu.memory_space<vmem>>, %arg17: memref<1x32x64xbf16, #tpu.memory_space<vmem>>, %arg18: memref<1x1x64xf32, #tpu.memory_space<vmem>>, %arg19: memref<1x64x32xbf16, #tpu.memory_space<vmem>>, %arg20: memref<1x1x32xf32, #tpu.memory_space<vmem>>, %arg21: memref<1x1x32xf32, #tpu.memory_space<vmem>>, %arg22: memref<1x1x32xf32, #tpu.memory_space<vmem>>, %arg23: memref<8x32xf32, #tpu.memory_space<vmem>>, %arg24: memref<8x32xf32, #tpu.memory_space<vmem>>) attributes {dimension_semantics = [#tpu.dimension_semantics<parallel>, #tpu.dimension_semantics<arbitrary>], iteration_bounds = array<i64: 2, 2>, scalar_prefetch = 0 : i64, scratch_operands = 1 : i64, tpu.core_type = #tpu.core_type<tc>, window_params = [{transform_indices = @transform_0, window_bounds = array<i64: 8, 32>}, {transform_indices = @transform_1, window_bounds = array<i64: 1, 1, 8>}, {transform_indices = @transform_2, window_bounds = array<i64: 1, 8, 1>}, {pipeline_mode = #tpu.pipeline_mode<synchronous>, transform_indices = @transform_3, window_bounds = array<i64: 1, 32>}, {pipeline_mode = #tpu.pipeline_mode<synchronous>, transform_indices = @transform_4, window_bounds = array<i64: 1, 32>}, {transform_indices = @transform_5, window_bounds = array<i64: 1, 4, 32, 8>}, {transform_indices = @transform_6, window_bounds = array<i64: 1, 4, 32, 8>}, {transform_indices = @transform_7, window_bounds = array<i64: 1, 4, 32, 8>}, {transform_indices = @transform_8, window_bounds = array<i64: 1, 4, 1, 8>}, {transform_indices = @transform_9, window_bounds = array<i64: 1, 4, 1, 8>}, {transform_indices = @transform_10, window_bounds = array<i64: 1, 4, 1, 8>}, {transform_indices = @transform_11, window_bounds = array<i64: 1, 4, 8, 32>}, {transform_indices = @transform_12, window_bounds = array<i64: 1, 1, 32>}, {transform_indices = @transform_13, window_bounds = array<i64: 1, 1, 32>}, {transform_indices = @transform_14, window_bounds = array<i64: 1, 1, 32>}, {transform_indices = @transform_15, window_bounds = array<i64: 1, 32, 64>}, {transform_indices = @transform_16, window_bounds = array<i64: 1, 1, 64>}, {transform_indices = @transform_17, window_bounds = array<i64: 1, 64, 32>}, {transform_indices = @transform_18, window_bounds = array<i64: 1, 1, 32>}, {transform_indices = @transform_19, window_bounds = array<i64: 1, 1, 32>}, {transform_indices = @transform_20, window_bounds = array<i64: 1, 1, 32>}, {transform_indices = @transform_21, window_bounds = array<i64: 8, 32>}]} {
    %c0_i32 = arith.constant 0 : i32
    %0 = arith.cmpi eq, %arg1, %c0_i32 : i32
    %1 = arith.extui %0 : i1 to i32
    %c0_i32_0 = arith.constant 0 : i32
    %2 = arith.cmpi ne, %1, %c0_i32_0 : i32
    scf.if %2 {
      %c0_87 = arith.constant 0 : index
      %c0_88 = arith.constant 0 : index
      %136 = vector.load %arg2[%c0_87, %c0_88] : memref<8x32xf32, #tpu.memory_space<vmem>>, vector<8x32xf32>
      %c0_89 = arith.constant 0 : index
      %c0_90 = arith.constant 0 : index
      %137 = vector.load %arg5[%c0_89, %c0_90] : memref<1x32xf32, #tpu.memory_space<vmem>>, vector<1x32xf32>
      %c0_91 = arith.constant 0 : index
      %c0_92 = arith.constant 0 : index
      %138 = vector.load %arg6[%c0_91, %c0_92] : memref<1x32xf32, #tpu.memory_space<vmem>>, vector<1x32xf32>
      %cst_93 = arith.constant dense<0.000000e+00> : vector<8xf32>
      %139 = vector.multi_reduction <add>, %136, %cst_93 [1] : vector<8x32xf32> to vector<8xf32>
      %140 = vector.shape_cast %139 : vector<8xf32> to vector<8x1xf32>
      %cst_94 = arith.constant 3.200000e+01 : f32
      %141 = vector.broadcast %cst_94 : f32 to vector<8x1xf32>
      %142 = arith.divf %140, %141 : vector<8x1xf32>
      %143 = vector.broadcast %142 : vector<8x1xf32> to vector<8x32xf32>
      %144 = arith.subf %136, %143 : vector<8x32xf32>
      %145 = arith.mulf %144, %144 : vector<8x32xf32>
      %cst_95 = arith.constant dense<0.000000e+00> : vector<8xf32>
      %146 = vector.multi_reduction <add>, %145, %cst_95 [1] : vector<8x32xf32> to vector<8xf32>
      %147 = vector.shape_cast %146 : vector<8xf32> to vector<8x1xf32>
      %cst_96 = arith.constant 3.200000e+01 : f32
      %148 = vector.broadcast %cst_96 : f32 to vector<8x1xf32>
      %149 = arith.divf %147, %148 : vector<8x1xf32>
      %cst_97 = arith.constant 9.99999996E-13 : f32
      %150 = vector.broadcast %cst_97 : f32 to vector<8x1xf32>
      %151 = arith.addf %149, %150 : vector<8x1xf32>
      %152 = math.rsqrt %151 : vector<8x1xf32>
      %153 = vector.broadcast %152 : vector<8x1xf32> to vector<8x32xf32>
      %154 = arith.mulf %144, %153 : vector<8x32xf32>
      %155 = vector.broadcast %137 : vector<1x32xf32> to vector<8x32xf32>
      %156 = arith.mulf %154, %155 : vector<8x32xf32>
      %157 = vector.broadcast %138 : vector<1x32xf32> to vector<8x32xf32>
      %158 = arith.addf %156, %157 : vector<8x32xf32>
      %c0_98 = arith.constant 0 : index
      %c0_99 = arith.constant 0 : index
      %159 = vector.load %arg24[%c0_98, %c0_99] : memref<8x32xf32, #tpu.memory_space<vmem>>, vector<8x32xf32>
      tpu.vector_store %arg24[%c0_98, %c0_99], %158 {strides = array<i32>} : memref<8x32xf32, #tpu.memory_space<vmem>>, vector<8x32xf32>,
    } else {
    }
    %c0 = arith.constant 0 : index
    %c0_1 = arith.constant 0 : index
    %3 = vector.load %arg24[%c0, %c0_1] : memref<8x32xf32, #tpu.memory_space<vmem>>, vector<8x32xf32>
    %4 = arith.truncf %3 : vector<8x32xf32> to vector<8x32xbf16>
    %5 = vector.shape_cast %4 : vector<8x32xbf16> to vector<1x8x32xbf16>
    %6 = vector.broadcast %5 : vector<1x8x32xbf16> to vector<4x8x32xbf16>
    %c0_2 = arith.constant 0 : index
    %c0_3 = arith.constant 0 : index
    %c0_4 = arith.constant 0 : index
    %c0_5 = arith.constant 0 : index
    %7 = vector.load %arg7[%c0_2, %c0_3, %c0_4, %c0_5] : memref<1x4x32x8xbf16, #tpu.memory_space<vmem>>, vector<1x4x32x8xbf16>
    %8 = vector.shape_cast %7 : vector<1x4x32x8xbf16> to vector<4x32x8xbf16>
    "tpu.trace_start"() <{level = 10 : i32, message = "nsh,nhd->nsd"}> : () -> ()
    %cst = arith.constant dense<0.000000e+00> : vector<4x8x8xf32>
    %9 = tpu.matmul %6, %8, %cst {dimension_numbers = #tpu.dot_dimension_numbers<[2], [1], [1], [2], [0, 0, 0, 1, 1, 2], [0], [0]>} : vector<4x8x32xbf16>, vector<4x32x8xbf16>, vector<4x8x8xf32> -> vector<4x8x8xf32>
    "tpu.trace_stop"() : () -> ()
    %c0_6 = arith.constant 0 : index
    %c0_7 = arith.constant 0 : index
    %c0_8 = arith.constant 0 : index
    %c0_9 = arith.constant 0 : index
    %10 = vector.load %arg10[%c0_6, %c0_7, %c0_8, %c0_9] : memref<1x4x1x8xf32, #tpu.memory_space<vmem>>, vector<1x4x1x8xf32>
    %11 = vector.shape_cast %10 : vector<1x4x1x8xf32> to vector<4x1x8xf32>
    %12 = vector.broadcast %11 : vector<4x1x8xf32> to vector<4x8x8xf32>
    %13 = arith.addf %9, %12 : vector<4x8x8xf32>
    %c0_10 = arith.constant 0 : index
    %c0_11 = arith.constant 0 : index
    %c0_12 = arith.constant 0 : index
    %c0_13 = arith.constant 0 : index
    %14 = vector.load %arg8[%c0_10, %c0_11, %c0_12, %c0_13] : memref<1x4x32x8xbf16, #tpu.memory_space<vmem>>, vector<1x4x32x8xbf16>
    %15 = vector.shape_cast %14 : vector<1x4x32x8xbf16> to vector<4x32x8xbf16>
    "tpu.trace_start"() <{level = 10 : i32, message = "nsh,nhd->nsd"}> : () -> ()
    %cst_14 = arith.constant dense<0.000000e+00> : vector<4x8x8xf32>
    %16 = tpu.matmul %6, %15, %cst_14 {dimension_numbers = #tpu.dot_dimension_numbers<[2], [1], [1], [2], [0, 0, 0, 1, 1, 2], [0], [0]>} : vector<4x8x32xbf16>, vector<4x32x8xbf16>, vector<4x8x8xf32> -> vector<4x8x8xf32>
    "tpu.trace_stop"() : () -> ()
    %c0_15 = arith.constant 0 : index
    %c0_16 = arith.constant 0 : index
    %c0_17 = arith.constant 0 : index
    %c0_18 = arith.constant 0 : index
    %17 = vector.load %arg11[%c0_15, %c0_16, %c0_17, %c0_18] : memref<1x4x1x8xf32, #tpu.memory_space<vmem>>, vector<1x4x1x8xf32>
    %18 = vector.shape_cast %17 : vector<1x4x1x8xf32> to vector<4x1x8xf32>
    %19 = vector.broadcast %18 : vector<4x1x8xf32> to vector<4x8x8xf32>
    %20 = arith.addf %16, %19 : vector<4x8x8xf32>
    %c0_19 = arith.constant 0 : index
    %c0_20 = arith.constant 0 : index
    %c0_21 = arith.constant 0 : index
    %c0_22 = arith.constant 0 : index
    %21 = vector.load %arg9[%c0_19, %c0_20, %c0_21, %c0_22] : memref<1x4x32x8xbf16, #tpu.memory_space<vmem>>, vector<1x4x32x8xbf16>
    %22 = vector.shape_cast %21 : vector<1x4x32x8xbf16> to vector<4x32x8xbf16>
    "tpu.trace_start"() <{level = 10 : i32, message = "nsh,nhd->nsd"}> : () -> ()
    %cst_23 = arith.constant dense<0.000000e+00> : vector<4x8x8xf32>
    %23 = tpu.matmul %6, %22, %cst_23 {dimension_numbers = #tpu.dot_dimension_numbers<[2], [1], [1], [2], [0, 0, 0, 1, 1, 2], [0], [0]>} : vector<4x8x32xbf16>, vector<4x32x8xbf16>, vector<4x8x8xf32> -> vector<4x8x8xf32>
    "tpu.trace_stop"() : () -> ()
    %c0_24 = arith.constant 0 : index
    %c0_25 = arith.constant 0 : index
    %c0_26 = arith.constant 0 : index
    %c0_27 = arith.constant 0 : index
    %24 = vector.load %arg12[%c0_24, %c0_25, %c0_26, %c0_27] : memref<1x4x1x8xf32, #tpu.memory_space<vmem>>, vector<1x4x1x8xf32>
    %25 = vector.shape_cast %24 : vector<1x4x1x8xf32> to vector<4x1x8xf32>
    %26 = vector.broadcast %25 : vector<4x1x8xf32> to vector<4x8x8xf32>
    %27 = arith.addf %23, %26 : vector<4x8x8xf32>
    %28 = arith.truncf %13 : vector<4x8x8xf32> to vector<4x8x8xbf16>
    %29 = arith.truncf %20 : vector<4x8x8xf32> to vector<4x8x8xbf16>
    "tpu.trace_start"() <{level = 10 : i32, message = "nqd,nkd->nqk"}> : () -> ()
    %cst_28 = arith.constant dense<0.000000e+00> : vector<4x8x8xf32>
    %30 = tpu.matmul %28, %29, %cst_28 {dimension_numbers = #tpu.dot_dimension_numbers<[2], [2], [1], [1], [0, 0, 0, 1, 1, 1], [0], [0]>} : vector<4x8x8xbf16>, vector<4x8x8xbf16>, vector<4x8x8xf32> -> vector<4x8x8xf32>
    "tpu.trace_stop"() : () -> ()
    %cst_29 = arith.constant 0.353553385 : f32
    %31 = vector.broadcast %cst_29 : f32 to vector<4x8x8xf32>
    %32 = arith.mulf %30, %31 : vector<4x8x8xf32>
    %c0_30 = arith.constant 0 : index
    %c0_31 = arith.constant 0 : index
    %c0_32 = arith.constant 0 : index
    %33 = vector.load %arg3[%c0_30, %c0_31, %c0_32] : memref<1x1x8xf32, #tpu.memory_space<vmem>>, vector<1x1x8xf32>
    %34 = vector.broadcast %33 : vector<1x1x8xf32> to vector<4x8x8xf32>
    %35 = arith.addf %32, %34 : vector<4x8x8xf32>
    %cst_33 = arith.constant dense<0xFF800000> : vector<4x8xf32>
    %36 = vector.multi_reduction <maximumf>, %35, %cst_33 [2] : vector<4x8x8xf32> to vector<4x8xf32>
    %37 = vector.shape_cast %36 : vector<4x8xf32> to vector<4x8x1xf32>
    %38 = vector.broadcast %37 : vector<4x8x1xf32> to vector<4x8x8xf32>
    %39 = arith.subf %35, %38 : vector<4x8x8xf32>
    %40 = math.exp %39 : vector<4x8x8xf32>
    %cst_34 = arith.constant dense<0.000000e+00> : vector<4x8xf32>
    %41 = vector.multi_reduction <add>, %40, %cst_34 [2] : vector<4x8x8xf32> to vector<4x8xf32>
    %42 = vector.shape_cast %41 : vector<4x8xf32> to vector<4x8x1xf32>
    %43 = tpu.reciprocal %42 {approx = true} : vector<4x8x1xf32> -> vector<4x8x1xf32>
    %44 = vector.broadcast %43 : vector<4x8x1xf32> to vector<4x8x8xf32>
    %45 = arith.mulf %40, %44 : vector<4x8x8xf32>
    %46 = arith.truncf %45 : vector<4x8x8xf32> to vector<4x8x8xbf16>
    %47 = arith.truncf %27 : vector<4x8x8xf32> to vector<4x8x8xbf16>
    "tpu.trace_start"() <{level = 10 : i32, message = "nqk,nkd->nqd"}> : () -> ()
    %cst_35 = arith.constant dense<0.000000e+00> : vector<4x8x8xf32>
    %48 = tpu.matmul %46, %47, %cst_35 {dimension_numbers = #tpu.dot_dimension_numbers<[2], [1], [1], [2], [0, 0, 0, 1, 1, 2], [0], [0]>} : vector<4x8x8xbf16>, vector<4x8x8xbf16>, vector<4x8x8xf32> -> vector<4x8x8xf32>
    "tpu.trace_stop"() : () -> ()
    %49 = arith.truncf %48 : vector<4x8x8xf32> to vector<4x8x8xbf16>
    %c0_36 = arith.constant 0 : index
    %c0_37 = arith.constant 0 : index
    %c0_38 = arith.constant 0 : index
    %c0_39 = arith.constant 0 : index
    %50 = vector.load %arg13[%c0_36, %c0_37, %c0_38, %c0_39] : memref<1x4x8x32xbf16, #tpu.memory_space<vmem>>, vector<1x4x8x32xbf16>
    %51 = vector.shape_cast %50 : vector<1x4x8x32xbf16> to vector<4x8x32xbf16>
    "tpu.trace_start"() <{level = 10 : i32, message = "nsd,ndh->nsh"}> : () -> ()
    %cst_40 = arith.constant dense<0.000000e+00> : vector<4x8x32xf32>
    %52 = tpu.matmul %49, %51, %cst_40 {dimension_numbers = #tpu.dot_dimension_numbers<[2], [1], [1], [2], [0, 0, 0, 1, 1, 2], [0], [0]>} : vector<4x8x8xbf16>, vector<4x8x32xbf16>, vector<4x8x32xf32> -> vector<4x8x32xf32>
    "tpu.trace_stop"() : () -> ()
    %cst_41 = arith.constant dense<0.000000e+00> : vector<8x32xf32>
    %53 = vector.multi_reduction <add>, %52, %cst_41 [0] : vector<4x8x32xf32> to vector<8x32xf32>
    %c0_42 = arith.constant 0 : index
    %c0_43 = arith.constant 0 : index
    %c0_44 = arith.constant 0 : index
    %54 = vector.load %arg14[%c0_42, %c0_43, %c0_44] : memref<1x1x32xf32, #tpu.memory_space<vmem>>, vector<1x1x32xf32>
    %55 = vector.shape_cast %54 : vector<1x1x32xf32> to vector<1x32xf32>
    %56 = vector.broadcast %55 : vector<1x32xf32> to vector<8x32xf32>
    %57 = arith.addf %53, %56 : vector<8x32xf32>
    %58 = arith.addf %57, %3 : vector<8x32xf32>
    %c0_45 = arith.constant 0 : index
    %c0_46 = arith.constant 0 : index
    %c0_47 = arith.constant 0 : index
    %59 = vector.load %arg15[%c0_45, %c0_46, %c0_47] : memref<1x1x32xf32, #tpu.memory_space<vmem>>, vector<1x1x32xf32>
    %60 = vector.shape_cast %59 : vector<1x1x32xf32> to vector<1x32xf32>
    %c0_48 = arith.constant 0 : index
    %c0_49 = arith.constant 0 : index
    %c0_50 = arith.constant 0 : index
    %61 = vector.load %arg16[%c0_48, %c0_49, %c0_50] : memref<1x1x32xf32, #tpu.memory_space<vmem>>, vector<1x1x32xf32>
    %62 = vector.shape_cast %61 : vector<1x1x32xf32> to vector<1x32xf32>
    %cst_51 = arith.constant dense<0.000000e+00> : vector<8xf32>
    %63 = vector.multi_reduction <add>, %58, %cst_51 [1] : vector<8x32xf32> to vector<8xf32>
    %64 = vector.shape_cast %63 : vector<8xf32> to vector<8x1xf32>
    %cst_52 = arith.constant 3.200000e+01 : f32
    %65 = vector.broadcast %cst_52 : f32 to vector<8x1xf32>
    %66 = arith.divf %64, %65 : vector<8x1xf32>
    %67 = vector.broadcast %66 : vector<8x1xf32> to vector<8x32xf32>
    %68 = arith.subf %58, %67 : vector<8x32xf32>
    %69 = arith.mulf %68, %68 : vector<8x32xf32>
    %cst_53 = arith.constant dense<0.000000e+00> : vector<8xf32>
    %70 = vector.multi_reduction <add>, %69, %cst_53 [1] : vector<8x32xf32> to vector<8xf32>
    %71 = vector.shape_cast %70 : vector<8xf32> to vector<8x1xf32>
    %cst_54 = arith.constant 3.200000e+01 : f32
    %72 = vector.broadcast %cst_54 : f32 to vector<8x1xf32>
    %73 = arith.divf %71, %72 : vector<8x1xf32>
    %cst_55 = arith.constant 9.99999996E-13 : f32
    %74 = vector.broadcast %cst_55 : f32 to vector<8x1xf32>
    %75 = arith.addf %73, %74 : vector<8x1xf32>
    %76 = math.rsqrt %75 : vector<8x1xf32>
    %77 = vector.broadcast %76 : vector<8x1xf32> to vector<8x32xf32>
    %78 = arith.mulf %68, %77 : vector<8x32xf32>
    %79 = vector.broadcast %60 : vector<1x32xf32> to vector<8x32xf32>
    %80 = arith.mulf %78, %79 : vector<8x32xf32>
    %81 = vector.broadcast %62 : vector<1x32xf32> to vector<8x32xf32>
    %82 = arith.addf %80, %81 : vector<8x32xf32>
    %83 = arith.truncf %82 : vector<8x32xf32> to vector<8x32xbf16>
    %c0_56 = arith.constant 0 : index
    %c0_57 = arith.constant 0 : index
    %c0_58 = arith.constant 0 : index
    %84 = vector.load %arg17[%c0_56, %c0_57, %c0_58] : memref<1x32x64xbf16, #tpu.memory_space<vmem>>, vector<1x32x64xbf16>
    %85 = vector.shape_cast %84 : vector<1x32x64xbf16> to vector<32x64xbf16>
    %cst_59 = arith.constant dense<0.000000e+00> : vector<8x64xf32>
    %86 = tpu.matmul %83, %85, %cst_59 {dimension_numbers = #tpu.dot_dimension_numbers<[1], [0], [0], [1], [0, 0, 1, 1], [], []>} : vector<8x32xbf16>, vector<32x64xbf16>, vector<8x64xf32> -> vector<8x64xf32>
    %c0_60 = arith.constant 0 : index
    %c0_61 = arith.constant 0 : index
    %c0_62 = arith.constant 0 : index
    %87 = vector.load %arg18[%c0_60, %c0_61, %c0_62] : memref<1x1x64xf32, #tpu.memory_space<vmem>>, vector<1x1x64xf32>
    %88 = vector.shape_cast %87 : vector<1x1x64xf32> to vector<1x64xf32>
    %89 = vector.broadcast %88 : vector<1x64xf32> to vector<8x64xf32>
    %90 = arith.addf %86, %89 : vector<8x64xf32>
    %cst_63 = arith.constant 5.000000e-01 : f32
    %91 = vector.broadcast %cst_63 : f32 to vector<8x64xf32>
    %92 = arith.mulf %91, %90 : vector<8x64xf32>
    %cst_64 = arith.constant 0.707106769 : f32
    %93 = vector.broadcast %cst_64 : f32 to vector<8x64xf32>
    %94 = arith.mulf %90, %93 : vector<8x64xf32>
    %95 = math.erf %94 : vector<8x64xf32>
    %cst_65 = arith.constant 1.000000e+00 : f32
    %96 = vector.broadcast %cst_65 : f32 to vector<8x64xf32>
    %97 = arith.addf %96, %95 : vector<8x64xf32>
    %98 = arith.mulf %92, %97 : vector<8x64xf32>
    %99 = arith.truncf %98 : vector<8x64xf32> to vector<8x64xbf16>
    %c0_66 = arith.constant 0 : index
    %c0_67 = arith.constant 0 : index
    %c0_68 = arith.constant 0 : index
    %100 = vector.load %arg19[%c0_66, %c0_67, %c0_68] : memref<1x64x32xbf16, #tpu.memory_space<vmem>>, vector<1x64x32xbf16>
    %101 = vector.shape_cast %100 : vector<1x64x32xbf16> to vector<64x32xbf16>
    %cst_69 = arith.constant dense<0.000000e+00> : vector<8x32xf32>
    %102 = tpu.matmul %99, %101, %cst_69 {dimension_numbers = #tpu.dot_dimension_numbers<[1], [0], [0], [1], [0, 0, 1, 1], [], []>} : vector<8x64xbf16>, vector<64x32xbf16>, vector<8x32xf32> -> vector<8x32xf32>
    %c0_70 = arith.constant 0 : index
    %c0_71 = arith.constant 0 : index
    %c0_72 = arith.constant 0 : index
    %103 = vector.load %arg20[%c0_70, %c0_71, %c0_72] : memref<1x1x32xf32, #tpu.memory_space<vmem>>, vector<1x1x32xf32>
    %104 = vector.shape_cast %103 : vector<1x1x32xf32> to vector<1x32xf32>
    %105 = vector.broadcast %104 : vector<1x32xf32> to vector<8x32xf32>
    %106 = arith.addf %102, %105 : vector<8x32xf32>
    %107 = arith.addf %106, %82 : vector<8x32xf32>
    %c0_73 = arith.constant 0 : index
    %c0_74 = arith.constant 0 : index
    %c0_75 = arith.constant 0 : index
    %108 = vector.load %arg21[%c0_73, %c0_74, %c0_75] : memref<1x1x32xf32, #tpu.memory_space<vmem>>, vector<1x1x32xf32>
    %109 = vector.shape_cast %108 : vector<1x1x32xf32> to vector<1x32xf32>
    %c0_76 = arith.constant 0 : index
    %c0_77 = arith.constant 0 : index
    %c0_78 = arith.constant 0 : index
    %110 = vector.load %arg22[%c0_76, %c0_77, %c0_78] : memref<1x1x32xf32, #tpu.memory_space<vmem>>, vector<1x1x32xf32>
    %111 = vector.shape_cast %110 : vector<1x1x32xf32> to vector<1x32xf32>
    %cst_79 = arith.constant dense<0.000000e+00> : vector<8xf32>
    %112 = vector.multi_reduction <add>, %107, %cst_79 [1] : vector<8x32xf32> to vector<8xf32>
    %113 = vector.shape_cast %112 : vector<8xf32> to vector<8x1xf32>
    %cst_80 = arith.constant 3.200000e+01 : f32
    %114 = vector.broadcast %cst_80 : f32 to vector<8x1xf32>
    %115 = arith.divf %113, %114 : vector<8x1xf32>
    %116 = vector.broadcast %115 : vector<8x1xf32> to vector<8x32xf32>
    %117 = arith.subf %107, %116 : vector<8x32xf32>
    %118 = arith.mulf %117, %117 : vector<8x32xf32>
    %cst_81 = arith.constant dense<0.000000e+00> : vector<8xf32>
    %119 = vector.multi_reduction <add>, %118, %cst_81 [1] : vector<8x32xf32> to vector<8xf32>
    %120 = vector.shape_cast %119 : vector<8xf32> to vector<8x1xf32>
    %cst_82 = arith.constant 3.200000e+01 : f32
    %121 = vector.broadcast %cst_82 : f32 to vector<8x1xf32>
    %122 = arith.divf %120, %121 : vector<8x1xf32>
    %cst_83 = arith.constant 9.99999996E-13 : f32
    %123 = vector.broadcast %cst_83 : f32 to vector<8x1xf32>
    %124 = arith.addf %122, %123 : vector<8x1xf32>
    %125 = math.rsqrt %124 : vector<8x1xf32>
    %126 = vector.broadcast %125 : vector<8x1xf32> to vector<8x32xf32>
    %127 = arith.mulf %117, %126 : vector<8x32xf32>
    %128 = vector.broadcast %109 : vector<1x32xf32> to vector<8x32xf32>
    %129 = arith.mulf %127, %128 : vector<8x32xf32>
    %130 = vector.broadcast %111 : vector<1x32xf32> to vector<8x32xf32>
    %131 = arith.addf %129, %130 : vector<8x32xf32>
    %c0_84 = arith.constant 0 : index
    %c0_85 = arith.constant 0 : index
    %132 = vector.load %arg24[%c0_84, %c0_85] : memref<8x32xf32, #tpu.memory_space<vmem>>, vector<8x32xf32>
    tpu.vector_store %arg24[%c0_84, %c0_85], %131 {strides = array<i32>} : memref<8x32xf32, #tpu.memory_space<vmem>>, vector<8x32xf32>,
    %c1_i32 = arith.constant 1 : i32
    %133 = arith.cmpi eq, %arg1, %c1_i32 : i32
    %134 = arith.extui %133 : i1 to i32
    %c0_i32_86 = arith.constant 0 : i32
    %135 = arith.cmpi ne, %134, %c0_i32_86 : i32
    scf.if %135 {
      %c0_87 = arith.constant 0 : index
      %c0_88 = arith.constant 0 : index
      %c0_89 = arith.constant 0 : index
      %136 = vector.load %arg4[%c0_87, %c0_88, %c0_89] : memref<1x8x1xf32, #tpu.memory_space<vmem>>, vector<1x8x1xf32>
      %137 = vector.shape_cast %136 : vector<1x8x1xf32> to vector<8x1xf32>
      %138 = vector.broadcast %137 : vector<8x1xf32> to vector<8x32xf32>
      %139 = arith.mulf %131, %138 : vector<8x32xf32>
      %c0_90 = arith.constant 0 : index
      %c0_91 = arith.constant 0 : index
      %140 = vector.load %arg23[%c0_90, %c0_91] : memref<8x32xf32, #tpu.memory_space<vmem>>, vector<8x32xf32>
      tpu.vector_store %arg23[%c0_90, %c0_91], %139 {strides = array<i32>} : memref<8x32xf32, #tpu.memory_space<vmem>>, vector<8x32xf32>,
    } else {
    }
    return
  }
  func.func @transform_0(%arg0: i32, %arg1: i32) -> (i32, i32) {
    %c0_i32 = arith.constant 0 : i32
    %c0_i32_0 = arith.constant 0 : i32
    return %arg0, %c0_i32 : i32, i32
  }
  func.func @transform_1(%arg0: i32, %arg1: i32) -> (i32, i32, i32) {
    %c0_i32 = arith.constant 0 : i32
    %c0_i32_0 = arith.constant 0 : i32
    %c0_i32_1 = arith.constant 0 : i32
    return %arg0, %c0_i32, %c0_i32_0 : i32, i32, i32
  }
  func.func @transform_2(%arg0: i32, %arg1: i32) -> (i32, i32, i32) {
    %c0_i32 = arith.constant 0 : i32
    %c0_i32_0 = arith.constant 0 : i32
    %c0_i32_1 = arith.constant 0 : i32
    return %arg0, %c0_i32, %c0_i32_0 : i32, i32, i32
  }
  func.func @transform_3(%arg0: i32, %arg1: i32) -> (i32, i32) {
    %c0_i32 = arith.constant 0 : i32
    %c0_i32_0 = arith.constant 0 : i32
    %c0_i32_1 = arith.constant 0 : i32
    return %c0_i32, %c0_i32_0 : i32, i32
  }
  func.func @transform_4(%arg0: i32, %arg1: i32) -> (i32, i32) {
    %c0_i32 = arith.constant 0 : i32
    %c0_i32_0 = arith.constant 0 : i32
    %c0_i32_1 = arith.constant 0 : i32
    return %c0_i32, %c0_i32_0 : i32, i32
  }
  func.func @transform_5(%arg0: i32, %arg1: i32) -> (i32, i32, i32, i32) {
    %c0_i32 = arith.constant 0 : i32
    %c0_i32_0 = arith.constant 0 : i32
    %c0_i32_1 = arith.constant 0 : i32
    %c0_i32_2 = arith.constant 0 : i32
    return %arg1, %c0_i32, %c0_i32_0, %c0_i32_1 : i32, i32, i32, i32
  }
  func.func @transform_6(%arg0: i32, %arg1: i32) -> (i32, i32, i32, i32) {
    %c0_i32 = arith.constant 0 : i32
    %c0_i32_0 = arith.constant 0 : i32
    %c0_i32_1 = arith.constant 0 : i32
    %c0_i32_2 = arith.constant 0 : i32
    return %arg1, %c0_i32, %c0_i32_0, %c0_i32_1 : i32, i32, i32, i32
  }
  func.func @transform_7(%arg0: i32, %arg1: i32) -> (i32, i32, i32, i32) {
    %c0_i32 = arith.constant 0 : i32
    %c0_i32_0 = arith.constant 0 : i32
    %c0_i32_1 = arith.constant 0 : i32
    %c0_i32_2 = arith.constant 0 : i32
    return %arg1, %c0_i32, %c0_i32_0, %c0_i32_1 : i32, i32, i32, i32
  }
  func.func @transform_8(%arg0: i32, %arg1: i32) -> (i32, i32, i32, i32) {
    %c0_i32 = arith.constant 0 : i32
    %c0_i32_0 = arith.constant 0 : i32
    %c0_i32_1 = arith.constant 0 : i32
    %c0_i32_2 = arith.constant 0 : i32
    return %arg1, %c0_i32, %c0_i32_0, %c0_i32_1 : i32, i32, i32, i32
  }
  func.func @transform_9(%arg0: i32, %arg1: i32) -> (i32, i32, i32, i32) {
    %c0_i32 = arith.constant 0 : i32
    %c0_i32_0 = arith.constant 0 : i32
    %c0_i32_1 = arith.constant 0 : i32
    %c0_i32_2 = arith.constant 0 : i32
    return %arg1, %c0_i32, %c0_i32_0, %c0_i32_1 : i32, i32, i32, i32
  }
  func.func @transform_10(%arg0: i32, %arg1: i32) -> (i32, i32, i32, i32) {
    %c0_i32 = arith.constant 0 : i32
    %c0_i32_0 = arith.constant 0 : i32
    %c0_i32_1 = arith.constant 0 : i32
    %c0_i32_2 = arith.constant 0 : i32
    return %arg1, %c0_i32, %c0_i32_0, %c0_i32_1 : i32, i32, i32, i32
  }
  func.func @transform_11(%arg0: i32, %arg1: i32) -> (i32, i32, i32, i32) {
    %c0_i32 = arith.constant 0 : i32
    %c0_i32_0 = arith.constant 0 : i32
    %c0_i32_1 = arith.constant 0 : i32
    %c0_i32_2 = arith.constant 0 : i32
    return %arg1, %c0_i32, %c0_i32_0, %c0_i32_1 : i32, i32, i32, i32
  }
  func.func @transform_12(%arg0: i32, %arg1: i32) -> (i32, i32, i32) {
    %c0_i32 = arith.constant 0 : i32
    %c0_i32_0 = arith.constant 0 : i32
    %c0_i32_1 = arith.constant 0 : i32
    return %arg1, %c0_i32, %c0_i32_0 : i32, i32, i32
  }
  func.func @transform_13(%arg0: i32, %arg1: i32) -> (i32, i32, i32) {
    %c0_i32 = arith.constant 0 : i32
    %c0_i32_0 = arith.constant 0 : i32
    %c0_i32_1 = arith.constant 0 : i32
    return %arg1, %c0_i32, %c0_i32_0 : i32, i32, i32
  }
  func.func @transform_14(%arg0: i32, %arg1: i32) -> (i32, i32, i32) {
    %c0_i32 = arith.constant 0 : i32
    %c0_i32_0 = arith.constant 0 : i32
    %c0_i32_1 = arith.constant 0 : i32
    return %arg1, %c0_i32, %c0_i32_0 : i32, i32, i32
  }
  func.func @transform_15(%arg0: i32, %arg1: i32) -> (i32, i32, i32) {
    %c0_i32 = arith.constant 0 : i32
    %c0_i32_0 = arith.constant 0 : i32
    %c0_i32_1 = arith.constant 0 : i32
    return %arg1, %c0_i32, %c0_i32_0 : i32, i32, i32
  }
  func.func @transform_16(%arg0: i32, %arg1: i32) -> (i32, i32, i32) {
    %c0_i32 = arith.constant 0 : i32
    %c0_i32_0 = arith.constant 0 : i32
    %c0_i32_1 = arith.constant 0 : i32
    return %arg1, %c0_i32, %c0_i32_0 : i32, i32, i32
  }
  func.func @transform_17(%arg0: i32, %arg1: i32) -> (i32, i32, i32) {
    %c0_i32 = arith.constant 0 : i32
    %c0_i32_0 = arith.constant 0 : i32
    %c0_i32_1 = arith.constant 0 : i32
    return %arg1, %c0_i32, %c0_i32_0 : i32, i32, i32
  }
  func.func @transform_18(%arg0: i32, %arg1: i32) -> (i32, i32, i32) {
    %c0_i32 = arith.constant 0 : i32
    %c0_i32_0 = arith.constant 0 : i32
    %c0_i32_1 = arith.constant 0 : i32
    return %arg1, %c0_i32, %c0_i32_0 : i32, i32, i32
  }
  func.func @transform_19(%arg0: i32, %arg1: i32) -> (i32, i32, i32) {
    %c0_i32 = arith.constant 0 : i32
    %c0_i32_0 = arith.constant 0 : i32
    %c0_i32_1 = arith.constant 0 : i32
    return %arg1, %c0_i32, %c0_i32_0 : i32, i32, i32
  }
  func.func @transform_20(%arg0: i32, %arg1: i32) -> (i32, i32, i32) {
    %c0_i32 = arith.constant 0 : i32
    %c0_i32_0 = arith.constant 0 : i32
    %c0_i32_1 = arith.constant 0 : i32
    return %arg1, %c0_i32, %c0_i32_0 : i32, i32, i32
  }
  func.func @transform_21(%arg0: i32, %arg1: i32) -> (i32, i32) {
    %c0_i32 = arith.constant 0 : i32
    %c0_i32_0 = arith.constant 0 : i32
    return %arg0, %c0_i32 : i32, i32
  }
}

</mosaic_0001>

<llo_original>
// kernel: bert_forward.1
$region0: #{bert_forward.1}
  #allocation0 [shape = 'u32[]', space=smem, size = 0x4, offset = 0x4, fixed_abs, tag = 'smem constant byte address 0x4 - core index']
  #allocation1 [shape = 'u32[144,128]{1,0:T(1,128)}', space=vmem, size = 0x12000, scoped, tag = 'internal scratch']
  #allocation2 [shape = 'f32[8,32]{1,0:T(8,128)}', space=vmem, size = 0x1000, scoped, tag = 'scratch operand']
  %s0 = inlined_call_operand.vmem [shape: f32[16,32], index: 0, kind: input, shape index: {}]
  %s1 = inlined_call_operand.vmem [shape: f32[2,1,8], index: 1, kind: input, shape index: {}]
  %s2 = inlined_call_operand.vmem [shape: f32[2,8,1], index: 2, kind: input, shape index: {}]
  %s3 = inlined_call_operand.vmem [shape: f32[1,32], index: 3, kind: input, shape index: {}]
  %s4 = inlined_call_operand.vmem [shape: f32[1,32], index: 4, kind: input, shape index: {}]
  %s5 = inlined_call_operand.vmem [shape: bf16[2,4,32,8], index: 5, kind: input, shape index: {}]
  %s6 = inlined_call_operand.vmem [shape: bf16[2,4,32,8], index: 6, kind: input, shape index: {}]
  %s7 = inlined_call_operand.vmem [shape: bf16[2,4,32,8], index: 7, kind: input, shape index: {}]
  %s8 = inlined_call_operand.vmem [shape: f32[2,4,1,8], index: 8, kind: input, shape index: {}]
  %s9 = inlined_call_operand.vmem [shape: f32[2,4,1,8], index: 9, kind: input, shape index: {}]
  %s10 = inlined_call_operand.vmem [shape: f32[2,4,1,8], index: 10, kind: input, shape index: {}]
  %s11 = inlined_call_operand.vmem [shape: bf16[2,4,8,32], index: 11, kind: input, shape index: {}]
  %s12 = inlined_call_operand.vmem [shape: f32[2,1,32], index: 12, kind: input, shape index: {}]
  %s13 = inlined_call_operand.vmem [shape: f32[2,1,32], index: 13, kind: input, shape index: {}]
  %s14 = inlined_call_operand.vmem [shape: f32[2,1,32], index: 14, kind: input, shape index: {}]
  %s15 = inlined_call_operand.vmem [shape: bf16[2,32,64], index: 15, kind: input, shape index: {}]
  %s16 = inlined_call_operand.vmem [shape: f32[2,1,64], index: 16, kind: input, shape index: {}]
  %s17 = inlined_call_operand.vmem [shape: bf16[2,64,32], index: 17, kind: input, shape index: {}]
  %s18 = inlined_call_operand.vmem [shape: f32[2,1,32], index: 18, kind: input, shape index: {}]
  %s19 = inlined_call_operand.vmem [shape: f32[2,1,32], index: 19, kind: input, shape index: {}]
  %s20 = inlined_call_operand.vmem [shape: f32[2,1,32], index: 20, kind: input, shape index: {}]
  %s21 = inlined_call_operand.hbm [shape: f32[16,32], index: 21, kind: output, shape index: {}]
  %s22 = sld [smem:[#allocation0]]
  $region125: #{bert_forward.1} parent=0
    _
  %s24 = ssub.s32 1, %s22
  %s25 = scalar_select 0, %s24, %s22
  $region1: #{bert_forward.1} parent=0
    #allocation3 [shape = 'u8[8192]{0}', space=vmem, size = 0x2000, scoped, tag = 'output window, operand 0']
    #allocation4 [shape = 's32[2]{0}', space=sflag, size = 0x8, scoped, tag = 'scoped memory for bert_forward.1']
    %26 = vsyncpa [#allocation4], 0
    %s27 = scalar_lea.sflag [#allocation4], 1
    %28 = vsyncpa %s27, 0
    loop: start=0, step=1, limit=6
    $region2: #{bert_forward.1} parent=1 // loop_pre_header
      _
    $region3: #{bert_forward.1} parent=1 // loop_header
      %s30 = sphi 0, %s34
      %p31 = scmp.ge.s32.totalorder %s30, 6
      %s37 = sphi 0, %s49
      %s38 = sphi 0, %s45
      %s39 = sphi 0, %s37
      %s40 = sphi 0, %s38
      %s41 = sphi 0, %s39
      %s42 = sphi 0, %s40
      %s52 = sphi 0, %s54
      %s55 = sphi 0, %s52
      %s56 = sphi 0, %s55
      %s72 = sphi 0, %s56
      %s78 = sphi 0, %s80
      %s81 = sphi 0, %s78
      %s82 = sphi 0, %s81
      %s98 = sphi 0, %s82
      %s104 = sphi 0, %s106
      %s107 = sphi 0, %s104
      %s108 = sphi 0, %s107
      %s124 = sphi 0, %s108
      %s128 = sphi 0, %s128
      %s130 = sphi 0, %s128
      %s131 = sphi 0, %s130
      %s145 = sphi 0, %s131
      %s149 = sphi 0, %s149
      %s151 = sphi 0, %s149
      %s152 = sphi 0, %s151
      %s166 = sphi 0, %s152
      %s172 = sphi 0, %s174
      %s175 = sphi 0, %s172
      %s176 = sphi 0, %s175
      %s192 = sphi 0, %s176
      %s198 = sphi 0, %s200
      %s201 = sphi 0, %s198
      %s202 = sphi 0, %s201
      %s218 = sphi 0, %s202
      %s224 = sphi 0, %s226
      %s227 = sphi 0, %s224
      %s228 = sphi 0, %s227
      %s244 = sphi 0, %s228
      %s250 = sphi 0, %s252
      %s253 = sphi 0, %s250
      %s254 = sphi 0, %s253
      %s270 = sphi 0, %s254
      %s276 = sphi 0, %s278
      %s279 = sphi 0, %s276
      %s280 = sphi 0, %s279
      %s296 = sphi 0, %s280
      %s302 = sphi 0, %s304
      %s305 = sphi 0, %s302
      %s306 = sphi 0, %s305
      %s322 = sphi 0, %s306
      %s328 = sphi 0, %s330
      %s331 = sphi 0, %s328
      %s332 = sphi 0, %s331
      %s348 = sphi 0, %s332
      %s354 = sphi 0, %s356
      %s357 = sphi 0, %s354
      %s358 = sphi 0, %s357
      %s374 = sphi 0, %s358
      %s380 = sphi 0, %s382
      %s383 = sphi 0, %s380
      %s384 = sphi 0, %s383
      %s400 = sphi 0, %s384
      %s406 = sphi 0, %s408
      %s409 = sphi 0, %s406
      %s410 = sphi 0, %s409
      %s426 = sphi 0, %s410
      %s432 = sphi 0, %s434
      %s435 = sphi 0, %s432
      %s436 = sphi 0, %s435
      %s452 = sphi 0, %s436
      %s458 = sphi 0, %s460
      %s461 = sphi 0, %s458
      %s462 = sphi 0, %s461
      %s478 = sphi 0, %s462
      %s484 = sphi 0, %s486
      %s487 = sphi 0, %s484
      %s488 = sphi 0, %s487
      %s504 = sphi 0, %s488
      %s510 = sphi 0, %s512
      %s513 = sphi 0, %s510
      %s514 = sphi 0, %s513
      %s530 = sphi 0, %s514
      %s536 = sphi 0, %s538
      %s539 = sphi 0, %s536
      %s540 = sphi 0, %s539
      %s556 = sphi 0, %s540
      %s562 = sphi 0, %s564
      %s565 = sphi 0, %s562
      %s566 = sphi 0, %s565
      %s582 = sphi 0, %s566
      %s588 = sphi 0, %s590
      %s591 = sphi 0, %s588
      %s592 = sphi 0, %s591
      %s608 = sphi 0, %s592
    $region4: #{bert_forward.1} parent=1 // loop_header_branch
      %33 = sbr.rel (%p31) target = $region8
    $region5: #{bert_forward.1} parent=1 // loop_body
      %s35 = ssub.s32 %s30, 1
      %s36 = ssub.s32 %s30, 2
      %s43 = sadd.s32 1, %s38
      %p44 = scmp.ge.s32.totalorder %s43, 2
      %s45 = scalar_select %p44, 0, %s43
      %s46 = sadd.s32 1, %s37
      %s47 = scalar_select %p44, %s46, %s37
      %p48 = scmp.ge.s32.totalorder %s47, 2
      %s49 = scalar_select %p48, 0, %s47
      %s50 = ssub.s32 %s37, %s49
      %p51 = scmp.eq.s32.totalorder %s50, 0
      %s53 = sadd.s32 %s52, 1
      %s54 = scalar_select %p51, %s52, %s53
      %p57 = pneg %p51
      %p58 = scmp.eq.s32.totalorder %s30, 3
      %p59 = por %p57, %p58
      %p60 = scmp.ne.s32.totalorder %s52, %s55
      %p61 = scmp.eq.s32.totalorder %s30, 0
      %p62 = por %p60, %p61
      %p63 = scmp.ne.s32.totalorder %s52, %s55
      %p64 = scmp.eq.s32.totalorder %s35, 3
      %p65 = por %p63, %p64
      %p66 = scmp.ne.s32.totalorder %s55, %s56
      %p67 = scmp.eq.s32.totalorder %s35, 0
      %p68 = por %p66, %p67
      %p69 = scmp.ne.s32.totalorder %s55, %s56
      %p70 = scmp.eq.s32.totalorder %s36, 3
      %p71 = por %p69, %p70
      %p73 = scmp.ne.s32.totalorder %s56, %s72
      %p74 = scmp.eq.s32.totalorder %s36, 0
      %p75 = por %p73, %p74
      %s76 = ssub.s32 %s37, %s49
      %p77 = scmp.eq.s32.totalorder %s76, 0
      %s79 = sadd.s32 %s78, 1
      %s80 = scalar_select %p77, %s78, %s79
      %p83 = pneg %p77
      %p84 = scmp.eq.s32.totalorder %s30, 3
      %p85 = por %p83, %p84
      %p86 = scmp.ne.s32.totalorder %s78, %s81
      %p87 = scmp.eq.s32.totalorder %s30, 0
      %p88 = por %p86, %p87
      %p89 = scmp.ne.s32.totalorder %s78, %s81
      %p90 = scmp.eq.s32.totalorder %s35, 3
      %p91 = por %p89, %p90
      %p92 = scmp.ne.s32.totalorder %s81, %s82
      %p93 = scmp.eq.s32.totalorder %s35, 0
      %p94 = por %p92, %p93
      %p95 = scmp.ne.s32.totalorder %s81, %s82
      %p96 = scmp.eq.s32.totalorder %s36, 3
      %p97 = por %p95, %p96
      %p99 = scmp.ne.s32.totalorder %s82, %s98
      %p100 = scmp.eq.s32.totalorder %s36, 0
      %p101 = por %p99, %p100
      %s102 = ssub.s32 %s37, %s49
      %p103 = scmp.eq.s32.totalorder %s102, 0
      %s105 = sadd.s32 %s104, 1
      %s106 = scalar_select %p103, %s104, %s105
      %p109 = pneg %p103
      %p110 = scmp.eq.s32.totalorder %s30, 3
      %p111 = por %p109, %p110
      %p112 = scmp.ne.s32.totalorder %s104, %s107
      %p113 = scmp.eq.s32.totalorder %s30, 0
      %p114 = por %p112, %p113
      %p115 = scmp.ne.s32.totalorder %s104, %s107
      %p116 = scmp.eq.s32.totalorder %s35, 3
      %p117 = por %p115, %p116
      %p118 = scmp.ne.s32.totalorder %s107, %s108
      %p119 = scmp.eq.s32.totalorder %s35, 0
      %p120 = por %p118, %p119
      %p121 = scmp.ne.s32.totalorder %s107, %s108
      %p122 = scmp.eq.s32.totalorder %s36, 3
      %p123 = por %p121, %p122
      %p125 = scmp.ne.s32.totalorder %s108, %s124
      %p126 = scmp.eq.s32.totalorder %s36, 0
      %p127 = por %p125, %p126
      %s129 = sadd.s32 %s128, 1
      %p132 = scmp.eq.s32.totalorder %s30, 3
      %p133 = scmp.ne.s32.totalorder %s128, %s130
      %p134 = scmp.eq.s32.totalorder %s30, 0
      %p135 = por %p133, %p134
      %p136 = scmp.ne.s32.totalorder %s128, %s130
      %p137 = scmp.eq.s32.totalorder %s35, 3
      %p138 = por %p136, %p137
      %p139 = scmp.ne.s32.totalorder %s130, %s131
      %p140 = scmp.eq.s32.totalorder %s35, 0
      %p141 = por %p139, %p140
      %p142 = scmp.ne.s32.totalorder %s130, %s131
      %p143 = scmp.eq.s32.totalorder %s36, 3
      %p144 = por %p142, %p143
      %p146 = scmp.ne.s32.totalorder %s131, %s145
      %p147 = scmp.eq.s32.totalorder %s36, 0
      %p148 = por %p146, %p147
      %s150 = sadd.s32 %s149, 1
      %p153 = scmp.eq.s32.totalorder %s30, 3
      %p154 = scmp.ne.s32.totalorder %s149, %s151
      %p155 = scmp.eq.s32.totalorder %s30, 0
      %p156 = por %p154, %p155
      %p157 = scmp.ne.s32.totalorder %s149, %s151
      %p158 = scmp.eq.s32.totalorder %s35, 3
      %p159 = por %p157, %p158
      %p160 = scmp.ne.s32.totalorder %s151, %s152
      %p161 = scmp.eq.s32.totalorder %s35, 0
      %p162 = por %p160, %p161
      %p163 = scmp.ne.s32.totalorder %s151, %s152
      %p164 = scmp.eq.s32.totalorder %s36, 3
      %p165 = por %p163, %p164
      %p167 = scmp.ne.s32.totalorder %s152, %s166
      %p168 = scmp.eq.s32.totalorder %s36, 0
      %p169 = por %p167, %p168
      %s170 = ssub.s32 %s38, %s45
      %p171 = scmp.eq.s32.totalorder %s170, 0
      %s173 = sadd.s32 %s172, 1
      %s174 = scalar_select %p171, %s172, %s173
      %p177 = pneg %p171
      %p178 = scmp.eq.s32.totalorder %s30, 3
      %p179 = por %p177, %p178
      %p180 = scmp.ne.s32.totalorder %s172, %s175
      %p181 = scmp.eq.s32.totalorder %s30, 0
      %p182 = por %p180, %p181
      %p183 = scmp.ne.s32.totalorder %s172, %s175
      %p184 = scmp.eq.s32.totalorder %s35, 3
      %p185 = por %p183, %p184
      %p186 = scmp.ne.s32.totalorder %s175, %s176
      %p187 = scmp.eq.s32.totalorder %s35, 0
      %p188 = por %p186, %p187
      %p189 = scmp.ne.s32.totalorder %s175, %s176
      %p190 = scmp.eq.s32.totalorder %s36, 3
      %p191 = por %p189, %p190
      %p193 = scmp.ne.s32.totalorder %s176, %s192
      %p194 = scmp.eq.s32.totalorder %s36, 0
      %p195 = por %p193, %p194
      %s196 = ssub.s32 %s38, %s45
      %p197 = scmp.eq.s32.totalorder %s196, 0
      %s199 = sadd.s32 %s198, 1
      %s200 = scalar_select %p197, %s198, %s199
      %p203 = pneg %p197
      %p204 = scmp.eq.s32.totalorder %s30, 3
      %p205 = por %p203, %p204
      %p206 = scmp.ne.s32.totalorder %s198, %s201
      %p207 = scmp.eq.s32.totalorder %s30, 0
      %p208 = por %p206, %p207
      %p209 = scmp.ne.s32.totalorder %s198, %s201
      %p210 = scmp.eq.s32.totalorder %s35, 3
      %p211 = por %p209, %p210
      %p212 = scmp.ne.s32.totalorder %s201, %s202
      %p213 = scmp.eq.s32.totalorder %s35, 0
      %p214 = por %p212, %p213
      %p215 = scmp.ne.s32.totalorder %s201, %s202
      %p216 = scmp.eq.s32.totalorder %s36, 3
      %p217 = por %p215, %p216
      %p219 = scmp.ne.s32.totalorder %s202, %s218
      %p220 = scmp.eq.s32.totalorder %s36, 0
      %p221 = por %p219, %p220
      %s222 = ssub.s32 %s38, %s45
      %p223 = scmp.eq.s32.totalorder %s222, 0
      %s225 = sadd.s32 %s224, 1
      %s226 = scalar_select %p223, %s224, %s225
      %p229 = pneg %p223
      %p230 = scmp.eq.s32.totalorder %s30, 3
      %p231 = por %p229, %p230
      %p232 = scmp.ne.s32.totalorder %s224, %s227
      %p233 = scmp.eq.s32.totalorder %s30, 0
      %p234 = por %p232, %p233
      %p235 = scmp.ne.s32.totalorder %s224, %s227
      %p236 = scmp.eq.s32.totalorder %s35, 3
      %p237 = por %p235, %p236
      %p238 = scmp.ne.s32.totalorder %s227, %s228
      %p239 = scmp.eq.s32.totalorder %s35, 0
      %p240 = por %p238, %p239
      %p241 = scmp.ne.s32.totalorder %s227, %s228
      %p242 = scmp.eq.s32.totalorder %s36, 3
      %p243 = por %p241, %p242
      %p245 = scmp.ne.s32.totalorder %s228, %s244
      %p246 = scmp.eq.s32.totalorder %s36, 0
      %p247 = por %p245, %p246
      %s248 = ssub.s32 %s38, %s45
      %p249 = scmp.eq.s32.totalorder %s248, 0
      %s251 = sadd.s32 %s250, 1
      %s252 = scalar_select %p249, %s250, %s251
      %p255 = pneg %p249
      %p256 = scmp.eq.s32.totalorder %s30, 3
      %p257 = por %p255, %p256
      %p258 = scmp.ne.s32.totalorder %s250, %s253
      %p259 = scmp.eq.s32.totalorder %s30, 0
      %p260 = por %p258, %p259
      %p261 = scmp.ne.s32.totalorder %s250, %s253
      %p262 = scmp.eq.s32.totalorder %s35, 3
      %p263 = por %p261, %p262
      %p264 = scmp.ne.s32.totalorder %s253, %s254
      %p265 = scmp.eq.s32.totalorder %s35, 0
      %p266 = por %p264, %p265
      %p267 = scmp.ne.s32.totalorder %s253, %s254
      %p268 = scmp.eq.s32.totalorder %s36, 3
      %p269 = por %p267, %p268
      %p271 = scmp.ne.s32.totalorder %s254, %s270
      %p272 = scmp.eq.s32.totalorder %s36, 0
      %p273 = por %p271, %p272
      %s274 = ssub.s32 %s38, %s45
      %p275 = scmp.eq.s32.totalorder %s274, 0
      %s277 = sadd.s32 %s276, 1
      %s278 = scalar_select %p275, %s276, %s277
      %p281 = pneg %p275
      %p282 = scmp.eq.s32.totalorder %s30, 3
      %p283 = por %p281, %p282
      %p284 = scmp.ne.s32.totalorder %s276, %s279
      %p285 = scmp.eq.s32.totalorder %s30, 0
      %p286 = por %p284, %p285
      %p287 = scmp.ne.s32.totalorder %s276, %s279
      %p288 = scmp.eq.s32.totalorder %s35, 3
      %p289 = por %p287, %p288
      %p290 = scmp.ne.s32.totalorder %s279, %s280
      %p291 = scmp.eq.s32.totalorder %s35, 0
      %p292 = por %p290, %p291
      %p293 = scmp.ne.s32.totalorder %s279, %s280
      %p294 = scmp.eq.s32.totalorder %s36, 3
      %p295 = por %p293, %p294
      %p297 = scmp.ne.s32.totalorder %s280, %s296
      %p298 = scmp.eq.s32.totalorder %s36, 0
      %p299 = por %p297, %p298
      %s300 = ssub.s32 %s38, %s45
      %p301 = scmp.eq.s32.totalorder %s300, 0
      %s303 = sadd.s32 %s302, 1
      %s304 = scalar_select %p301, %s302, %s303
      %p307 = pneg %p301
      %p308 = scmp.eq.s32.totalorder %s30, 3
      %p309 = por %p307, %p308
      %p310 = scmp.ne.s32.totalorder %s302, %s305
      %p311 = scmp.eq.s32.totalorder %s30, 0
      %p312 = por %p310, %p311
      %p313 = scmp.ne.s32.totalorder %s302, %s305
      %p314 = scmp.eq.s32.totalorder %s35, 3
      %p315 = por %p313, %p314
      %p316 = scmp.ne.s32.totalorder %s305, %s306
      %p317 = scmp.eq.s32.totalorder %s35, 0
      %p318 = por %p316, %p317
      %p319 = scmp.ne.s32.totalorder %s305, %s306
      %p320 = scmp.eq.s32.totalorder %s36, 3
      %p321 = por %p319, %p320
      %p323 = scmp.ne.s32.totalorder %s306, %s322
      %p324 = scmp.eq.s32.totalorder %s36, 0
      %p325 = por %p323, %p324
      %s326 = ssub.s32 %s38, %s45
      %p327 = scmp.eq.s32.totalorder %s326, 0
      %s329 = sadd.s32 %s328, 1
      %s330 = scalar_select %p327, %s328, %s329
      %p333 = pneg %p327
      %p334 = scmp.eq.s32.totalorder %s30, 3
      %p335 = por %p333, %p334
      %p336 = scmp.ne.s32.totalorder %s328, %s331
      %p337 = scmp.eq.s32.totalorder %s30, 0
      %p338 = por %p336, %p337
      %p339 = scmp.ne.s32.totalorder %s328, %s331
      %p340 = scmp.eq.s32.totalorder %s35, 3
      %p341 = por %p339, %p340
      %p342 = scmp.ne.s32.totalorder %s331, %s332
      %p343 = scmp.eq.s32.totalorder %s35, 0
      %p344 = por %p342, %p343
      %p345 = scmp.ne.s32.totalorder %s331, %s332
      %p346 = scmp.eq.s32.totalorder %s36, 3
      %p347 = por %p345, %p346
      %p349 = scmp.ne.s32.totalorder %s332, %s348
      %p350 = scmp.eq.s32.totalorder %s36, 0
      %p351 = por %p349, %p350
      %s352 = ssub.s32 %s38, %s45
      %p353 = scmp.eq.s32.totalorder %s352, 0
      %s355 = sadd.s32 %s354, 1
      %s356 = scalar_select %p353, %s354, %s355
      %p359 = pneg %p353
      %p360 = scmp.eq.s32.totalorder %s30, 3
      %p361 = por %p359, %p360
      %p362 = scmp.ne.s32.totalorder %s354, %s357
      %p363 = scmp.eq.s32.totalorder %s30, 0
      %p364 = por %p362, %p363
      %p365 = scmp.ne.s32.totalorder %s354, %s357
      %p366 = scmp.eq.s32.totalorder %s35, 3
      %p367 = por %p365, %p366
      %p368 = scmp.ne.s32.totalorder %s357, %s358
      %p369 = scmp.eq.s32.totalorder %s35, 0
      %p370 = por %p368, %p369
      %p371 = scmp.ne.s32.totalorder %s357, %s358
      %p372 = scmp.eq.s32.totalorder %s36, 3
      %p373 = por %p371, %p372
      %p375 = scmp.ne.s32.totalorder %s358, %s374
      %p376 = scmp.eq.s32.totalorder %s36, 0
      %p377 = por %p375, %p376
      %s378 = ssub.s32 %s38, %s45
      %p379 = scmp.eq.s32.totalorder %s378, 0
      %s381 = sadd.s32 %s380, 1
      %s382 = scalar_select %p379, %s380, %s381
      %p385 = pneg %p379
      %p386 = scmp.eq.s32.totalorder %s30, 3
      %p387 = por %p385, %p386
      %p388 = scmp.ne.s32.totalorder %s380, %s383
      %p389 = scmp.eq.s32.totalorder %s30, 0
      %p390 = por %p388, %p389
      %p391 = scmp.ne.s32.totalorder %s380, %s383
      %p392 = scmp.eq.s32.totalorder %s35, 3
      %p393 = por %p391, %p392
      %p394 = scmp.ne.s32.totalorder %s383, %s384
      %p395 = scmp.eq.s32.totalorder %s35, 0
      %p396 = por %p394, %p395
      %p397 = scmp.ne.s32.totalorder %s383, %s384
      %p398 = scmp.eq.s32.totalorder %s36, 3
      %p399 = por %p397, %p398
      %p401 = scmp.ne.s32.totalorder %s384, %s400
      %p402 = scmp.eq.s32.totalorder %s36, 0
      %p403 = por %p401, %p402
      %s404 = ssub.s32 %s38, %s45
      %p405 = scmp.eq.s32.totalorder %s404, 0
      %s407 = sadd.s32 %s406, 1
      %s408 = scalar_select %p405, %s406, %s407
      %p411 = pneg %p405
      %p412 = scmp.eq.s32.totalorder %s30, 3
      %p413 = por %p411, %p412
      %p414 = scmp.ne.s32.totalorder %s406, %s409
      %p415 = scmp.eq.s32.totalorder %s30, 0
      %p416 = por %p414, %p415
      %p417 = scmp.ne.s32.totalorder %s406, %s409
      %p418 = scmp.eq.s32.totalorder %s35, 3
      %p419 = por %p417, %p418
      %p420 = scmp.ne.s32.totalorder %s409, %s410
      %p421 = scmp.eq.s32.totalorder %s35, 0
      %p422 = por %p420, %p421
      %p423 = scmp.ne.s32.totalorder %s409, %s410
      %p424 = scmp.eq.s32.totalorder %s36, 3
      %p425 = por %p423, %p424
      %p427 = scmp.ne.s32.totalorder %s410, %s426
      %p428 = scmp.eq.s32.totalorder %s36, 0
      %p429 = por %p427, %p428
      %s430 = ssub.s32 %s38, %s45
      %p431 = scmp.eq.s32.totalorder %s430, 0
      %s433 = sadd.s32 %s432, 1
      %s434 = scalar_select %p431, %s432, %s433
      %p437 = pneg %p431
      %p438 = scmp.eq.s32.totalorder %s30, 3
      %p439 = por %p437, %p438
      %p440 = scmp.ne.s32.totalorder %s432, %s435
      %p441 = scmp.eq.s32.totalorder %s30, 0
      %p442 = por %p440, %p441
      %p443 = scmp.ne.s32.totalorder %s432, %s435
      %p444 = scmp.eq.s32.totalorder %s35, 3
      %p445 = por %p443, %p444
      %p446 = scmp.ne.s32.totalorder %s435, %s436
      %p447 = scmp.eq.s32.totalorder %s35, 0
      %p448 = por %p446, %p447
      %p449 = scmp.ne.s32.totalorder %s435, %s436
      %p450 = scmp.eq.s32.totalorder %s36, 3
      %p451 = por %p449, %p450
      %p453 = scmp.ne.s32.totalorder %s436, %s452
      %p454 = scmp.eq.s32.totalorder %s36, 0
      %p455 = por %p453, %p454
      %s456 = ssub.s32 %s38, %s45
      %p457 = scmp.eq.s32.totalorder %s456, 0
      %s459 = sadd.s32 %s458, 1
      %s460 = scalar_select %p457, %s458, %s459
      %p463 = pneg %p457
      %p464 = scmp.eq.s32.totalorder %s30, 3
      %p465 = por %p463, %p464
      %p466 = scmp.ne.s32.totalorder %s458, %s461
      %p467 = scmp.eq.s32.totalorder %s30, 0
      %p468 = por %p466, %p467
      %p469 = scmp.ne.s32.totalorder %s458, %s461
      %p470 = scmp.eq.s32.totalorder %s35, 3
      %p471 = por %p469, %p470
      %p472 = scmp.ne.s32.totalorder %s461, %s462
      %p473 = scmp.eq.s32.totalorder %s35, 0
      %p474 = por %p472, %p473
      %p475 = scmp.ne.s32.totalorder %s461, %s462
      %p476 = scmp.eq.s32.totalorder %s36, 3
      %p477 = por %p475, %p476
      %p479 = scmp.ne.s32.totalorder %s462, %s478
      %p480 = scmp.eq.s32.totalorder %s36, 0
      %p481 = por %p479, %p480
      %s482 = ssub.s32 %s38, %s45
      %p483 = scmp.eq.s32.totalorder %s482, 0
      %s485 = sadd.s32 %s484, 1
      %s486 = scalar_select %p483, %s484, %s485
      %p489 = pneg %p483
      %p490 = scmp.eq.s32.totalorder %s30, 3
      %p491 = por %p489, %p490
      %p492 = scmp.ne.s32.totalorder %s484, %s487
      %p493 = scmp.eq.s32.totalorder %s30, 0
      %p494 = por %p492, %p493
      %p495 = scmp.ne.s32.totalorder %s484, %s487
      %p496 = scmp.eq.s32.totalorder %s35, 3
      %p497 = por %p495, %p496
      %p498 = scmp.ne.s32.totalorder %s487, %s488
      %p499 = scmp.eq.s32.totalorder %s35, 0
      %p500 = por %p498, %p499
      %p501 = scmp.ne.s32.totalorder %s487, %s488
      %p502 = scmp.eq.s32.totalorder %s36, 3
      %p503 = por %p501, %p502
      %p505 = scmp.ne.s32.totalorder %s488, %s504
      %p506 = scmp.eq.s32.totalorder %s36, 0
      %p507 = por %p505, %p506
      %s508 = ssub.s32 %s38, %s45
      %p509 = scmp.eq.s32.totalorder %s508, 0
      %s511 = sadd.s32 %s510, 1
      %s512 = scalar_select %p509, %s510, %s511
      %p515 = pneg %p509
      %p516 = scmp.eq.s32.totalorder %s30, 3
      %p517 = por %p515, %p516
      %p518 = scmp.ne.s32.totalorder %s510, %s513
      %p519 = scmp.eq.s32.totalorder %s30, 0
      %p520 = por %p518, %p519
      %p521 = scmp.ne.s32.totalorder %s510, %s513
      %p522 = scmp.eq.s32.totalorder %s35, 3
      %p523 = por %p521, %p522
      %p524 = scmp.ne.s32.totalorder %s513, %s514
      %p525 = scmp.eq.s32.totalorder %s35, 0
      %p526 = por %p524, %p525
      %p527 = scmp.ne.s32.totalorder %s513, %s514
      %p528 = scmp.eq.s32.totalorder %s36, 3
      %p529 = por %p527, %p528
      %p531 = scmp.ne.s32.totalorder %s514, %s530
      %p532 = scmp.eq.s32.totalorder %s36, 0
      %p533 = por %p531, %p532
      %s534 = ssub.s32 %s38, %s45
      %p535 = scmp.eq.s32.totalorder %s534, 0
      %s537 = sadd.s32 %s536, 1
      %s538 = scalar_select %p535, %s536, %s537
      %p541 = pneg %p535
      %p542 = scmp.eq.s32.totalorder %s30, 3
      %p543 = por %p541, %p542
      %p544 = scmp.ne.s32.totalorder %s536, %s539
      %p545 = scmp.eq.s32.totalorder %s30, 0
      %p546 = por %p544, %p545
      %p547 = scmp.ne.s32.totalorder %s536, %s539
      %p548 = scmp.eq.s32.totalorder %s35, 3
      %p549 = por %p547, %p548
      %p550 = scmp.ne.s32.totalorder %s539, %s540
      %p551 = scmp.eq.s32.totalorder %s35, 0
      %p552 = por %p550, %p551
      %p553 = scmp.ne.s32.totalorder %s539, %s540
      %p554 = scmp.eq.s32.totalorder %s36, 3
      %p555 = por %p553, %p554
      %p557 = scmp.ne.s32.totalorder %s540, %s556
      %p558 = scmp.eq.s32.totalorder %s36, 0
      %p559 = por %p557, %p558
      %s560 = ssub.s32 %s38, %s45
      %p561 = scmp.eq.s32.totalorder %s560, 0
      %s563 = sadd.s32 %s562, 1
      %s564 = scalar_select %p561, %s562, %s563
      %p567 = pneg %p561
      %p568 = scmp.eq.s32.totalorder %s30, 3
      %p569 = por %p567, %p568
      %p570 = scmp.ne.s32.totalorder %s562, %s565
      %p571 = scmp.eq.s32.totalorder %s30, 0
      %p572 = por %p570, %p571
      %p573 = scmp.ne.s32.totalorder %s562, %s565
      %p574 = scmp.eq.s32.totalorder %s35, 3
      %p575 = por %p573, %p574
      %p576 = scmp.ne.s32.totalorder %s565, %s566
      %p577 = scmp.eq.s32.totalorder %s35, 0
      %p578 = por %p576, %p577
      %p579 = scmp.ne.s32.totalorder %s565, %s566
      %p580 = scmp.eq.s32.totalorder %s36, 3
      %p581 = por %p579, %p580
      %p583 = scmp.ne.s32.totalorder %s566, %s582
      %p584 = scmp.eq.s32.totalorder %s36, 0
      %p585 = por %p583, %p584
      %s586 = ssub.s32 %s37, %s49
      %p587 = scmp.eq.s32.totalorder %s586, 0
      %s589 = sadd.s32 %s588, 1
      %s590 = scalar_select %p587, %s588, %s589
      %p593 = pneg %p587
      %p594 = scmp.eq.s32.totalorder %s30, 3
      %p595 = por %p593, %p594
      %p596 = scmp.ne.s32.totalorder %s588, %s591
      %p597 = scmp.eq.s32.totalorder %s30, 0
      %p598 = por %p596, %p597
      %p599 = scmp.ne.s32.totalorder %s588, %s591
      %p600 = scmp.eq.s32.totalorder %s35, 3
      %p601 = por %p599, %p600
      %p602 = scmp.ne.s32.totalorder %s591, %s592
      %p603 = scmp.eq.s32.totalorder %s35, 0
      %p604 = por %p602, %p603
      %p605 = scmp.ne.s32.totalorder %s591, %s592
      %p606 = scmp.eq.s32.totalorder %s36, 3
      %p607 = por %p605, %p606
      %p609 = scmp.ne.s32.totalorder %s592, %s608
      %p610 = scmp.eq.s32.totalorder %s36, 0
      %p611 = por %p609, %p610
      %p612 = scmp.le.s32.totalorder 1, %s30
      %p613 = scmp.lt.s32.totalorder %s30, 5
      %p614 = pnand %p612, %p613
      %p615 = pneg %p614
      // Predicated region
      $region9: #{bert_forward.1} parent=5 // pred_check
        _
      $region10: #{bert_forward.1} parent=5 // pred_check_branch
        %617 = sbr.rel (%p614) target = $region12
      $region11: #{bert_forward.1} parent=5 // pred_region
        %s618 = ssub.s32 %s30, 1
        // Predicated region
        $region13: #{bert_forward.1} parent=11 // pred_check
          %p619 = pneg %p141
        $region14: #{bert_forward.1} parent=11 // pred_check_branch
          %621 = sbr.rel (%p619) target = $region16
        $region15: #{bert_forward.1} parent=11 // pred_region
          _
        $region16: #{bert_forward.1} parent=11 // pred_fallthru
          _
        // Predicated region
        $region17: #{bert_forward.1} parent=11 // pred_check
          %p622 = pneg %p162
        $region18: #{bert_forward.1} parent=11 // pred_check_branch
          %624 = sbr.rel (%p622) target = $region20
        $region19: #{bert_forward.1} parent=11 // pred_region
          _
        $region20: #{bert_forward.1} parent=11 // pred_fallthru
          _
      $region12: #{bert_forward.1} parent=5 // pred_fallthru
        _
      %p625 = scmp.lt.s32.totalorder %s30, 4
      // Predicated region
      $region21: #{bert_forward.1} parent=5 // pred_check
        %p626 = pneg %p625
      $region22: #{bert_forward.1} parent=5 // pred_check_branch
        %628 = sbr.rel (%p626) target = $region24
      $region23: #{bert_forward.1} parent=5 // pred_region
        // Predicated region
        $region25: #{bert_forward.1} parent=23 // pred_check
          %p629 = pneg %p62
        $region26: #{bert_forward.1} parent=23 // pred_check_branch
          %631 = sbr.rel (%p629) target = $region28
        $region27: #{bert_forward.1} parent=23 // pred_region
          %p632 = scmp.lt.s32.totalorder %s37, 1
          %s633 = scalar_select %p632, %s37, 1
          %s634 = smul.addr %s633, 8
          %s635 = scalar_lea.vmem %s0, %s634
        $region28: #{bert_forward.1} parent=23 // pred_fallthru
          _
        // Predicated region
        $region29: #{bert_forward.1} parent=23 // pred_check
          %p636 = pneg %p88
        $region30: #{bert_forward.1} parent=23 // pred_check_branch
          %638 = sbr.rel (%p636) target = $region32
        $region31: #{bert_forward.1} parent=23 // pred_region
          %p639 = scmp.lt.s32.totalorder %s37, 1
          %s640 = scalar_select %p639, %s37, 1
          %s641 = scalar_lea.vmem %s1, %s640
        $region32: #{bert_forward.1} parent=23 // pred_fallthru
          _
        // Predicated region
        $region33: #{bert_forward.1} parent=23 // pred_check
          %p642 = pneg %p114
        $region34: #{bert_forward.1} parent=23 // pred_check_branch
          %644 = sbr.rel (%p642) target = $region36
        $region35: #{bert_forward.1} parent=23 // pred_region
          %p645 = scmp.lt.s32.totalorder %s37, 1
          %s646 = scalar_select %p645, %s37, 1
          %s647 = smul.addr %s646, 8
          %s648 = scalar_lea.vmem %s2, %s647
        $region36: #{bert_forward.1} parent=23 // pred_fallthru
          _
        // Predicated region
        $region37: #{bert_forward.1} parent=23 // pred_check
          %p649 = pneg %p182
        $region38: #{bert_forward.1} parent=23 // pred_check_branch
          %651 = sbr.rel (%p649) target = $region40
        $region39: #{bert_forward.1} parent=23 // pred_region
          %p652 = scmp.lt.s32.totalorder %s38, 1
          %s653 = scalar_select %p652, %s38, 1
          %s654 = smul.addr %s653, 16
          %s655 = smul.addr %s654, 4
          %s656 = scalar_lea.vmem %s5, %s655
        $region40: #{bert_forward.1} parent=23 // pred_fallthru
          _
        // Predicated region
        $region41: #{bert_forward.1} parent=23 // pred_check
          %p657 = pneg %p208
        $region42: #{bert_forward.1} parent=23 // pred_check_branch
          %659 = sbr.rel (%p657) target = $region44
        $region43: #{bert_forward.1} parent=23 // pred_region
          %p660 = scmp.lt.s32.totalorder %s38, 1
          %s661 = scalar_select %p660, %s38, 1
          %s662 = smul.addr %s661, 16
          %s663 = smul.addr %s662, 4
          %s664 = scalar_lea.vmem %s6, %s663
        $region44: #{bert_forward.1} parent=23 // pred_fallthru
          _
        // Predicated region
        $region45: #{bert_forward.1} parent=23 // pred_check
          %p665 = pneg %p234
        $region46: #{bert_forward.1} parent=23 // pred_check_branch
          %667 = sbr.rel (%p665) target = $region48
        $region47: #{bert_forward.1} parent=23 // pred_region
          %p668 = scmp.lt.s32.totalorder %s38, 1
          %s669 = scalar_select %p668, %s38, 1
          %s670 = smul.addr %s669, 16
          %s671 = smul.addr %s670, 4
          %s672 = scalar_lea.vmem %s7, %s671
        $region48: #{bert_forward.1} parent=23 // pred_fallthru
          _
        // Predicated region
        $region49: #{bert_forward.1} parent=23 // pred_check
          %p673 = pneg %p260
        $region50: #{bert_forward.1} parent=23 // pred_check_branch
          %675 = sbr.rel (%p673) target = $region52
        $region51: #{bert_forward.1} parent=23 // pred_region
          %p676 = scmp.lt.s32.totalorder %s38, 1
          %s677 = scalar_select %p676, %s38, 1
          %s678 = smul.addr %s677, 4
          %s679 = scalar_lea.vmem %s8, %s678
        $region52: #{bert_forward.1} parent=23 // pred_fallthru
          _
        // Predicated region
        $region53: #{bert_forward.1} parent=23 // pred_check
          %p680 = pneg %p286
        $region54: #{bert_forward.1} parent=23 // pred_check_branch
          %682 = sbr.rel (%p680) target = $region56
        $region55: #{bert_forward.1} parent=23 // pred_region
          %p683 = scmp.lt.s32.totalorder %s38, 1
          %s684 = scalar_select %p683, %s38, 1
          %s685 = smul.addr %s684, 4
          %s686 = scalar_lea.vmem %s9, %s685
        $region56: #{bert_forward.1} parent=23 // pred_fallthru
          _
        // Predicated region
        $region57: #{bert_forward.1} parent=23 // pred_check
          %p687 = pneg %p312
        $region58: #{bert_forward.1} parent=23 // pred_check_branch
          %689 = sbr.rel (%p687) target = $region60
        $region59: #{bert_forward.1} parent=23 // pred_region
          %p690 = scmp.lt.s32.totalorder %s38, 1
          %s691 = scalar_select %p690, %s38, 1
          %s692 = smul.addr %s691, 4
          %s693 = scalar_lea.vmem %s10, %s692
        $region60: #{bert_forward.1} parent=23 // pred_fallthru
          _
        // Predicated region
        $region61: #{bert_forward.1} parent=23 // pred_check
          %p694 = pneg %p338
        $region62: #{bert_forward.1} parent=23 // pred_check_branch
          %696 = sbr.rel (%p694) target = $region64
        $region63: #{bert_forward.1} parent=23 // pred_region
          %p697 = scmp.lt.s32.totalorder %s38, 1
          %s698 = scalar_select %p697, %s38, 1
          %s699 = smul.addr %s698, 4
          %s700 = smul.addr %s699, 4
          %s701 = scalar_lea.vmem %s11, %s700
        $region64: #{bert_forward.1} parent=23 // pred_fallthru
          _
        // Predicated region
        $region65: #{bert_forward.1} parent=23 // pred_check
          %p702 = pneg %p364
        $region66: #{bert_forward.1} parent=23 // pred_check_branch
          %704 = sbr.rel (%p702) target = $region68
        $region67: #{bert_forward.1} parent=23 // pred_region
          %p705 = scmp.lt.s32.totalorder %s38, 1
          %s706 = scalar_select %p705, %s38, 1
          %s707 = scalar_lea.vmem %s12, %s706
        $region68: #{bert_forward.1} parent=23 // pred_fallthru
          _
        // Predicated region
        $region69: #{bert_forward.1} parent=23 // pred_check
          %p708 = pneg %p390
        $region70: #{bert_forward.1} parent=23 // pred_check_branch
          %710 = sbr.rel (%p708) target = $region72
        $region71: #{bert_forward.1} parent=23 // pred_region
          %p711 = scmp.lt.s32.totalorder %s38, 1
          %s712 = scalar_select %p711, %s38, 1
          %s713 = scalar_lea.vmem %s13, %s712
        $region72: #{bert_forward.1} parent=23 // pred_fallthru
          _
        // Predicated region
        $region73: #{bert_forward.1} parent=23 // pred_check
          %p714 = pneg %p416
        $region74: #{bert_forward.1} parent=23 // pred_check_branch
          %716 = sbr.rel (%p714) target = $region76
        $region75: #{bert_forward.1} parent=23 // pred_region
          %p717 = scmp.lt.s32.totalorder %s38, 1
          %s718 = scalar_select %p717, %s38, 1
          %s719 = scalar_lea.vmem %s14, %s718
        $region76: #{bert_forward.1} parent=23 // pred_fallthru
          _
        // Predicated region
        $region77: #{bert_forward.1} parent=23 // pred_check
          %p720 = pneg %p442
        $region78: #{bert_forward.1} parent=23 // pred_check_branch
          %722 = sbr.rel (%p720) target = $region80
        $region79: #{bert_forward.1} parent=23 // pred_region
          %p723 = scmp.lt.s32.totalorder %s38, 1
          %s724 = scalar_select %p723, %s38, 1
          %s725 = smul.addr %s724, 4
          %s726 = smul.addr %s725, 4
          %s727 = scalar_lea.vmem %s15, %s726
        $region80: #{bert_forward.1} parent=23 // pred_fallthru
          _
        // Predicated region
        $region81: #{bert_forward.1} parent=23 // pred_check
          %p728 = pneg %p468
        $region82: #{bert_forward.1} parent=23 // pred_check_branch
          %730 = sbr.rel (%p728) target = $region84
        $region83: #{bert_forward.1} parent=23 // pred_region
          %p731 = scmp.lt.s32.totalorder %s38, 1
          %s732 = scalar_select %p731, %s38, 1
          %s733 = scalar_lea.vmem %s16, %s732
        $region84: #{bert_forward.1} parent=23 // pred_fallthru
          _
        // Predicated region
        $region85: #{bert_forward.1} parent=23 // pred_check
          %p734 = pneg %p494
        $region86: #{bert_forward.1} parent=23 // pred_check_branch
          %736 = sbr.rel (%p734) target = $region88
        $region87: #{bert_forward.1} parent=23 // pred_region
          %p737 = scmp.lt.s32.totalorder %s38, 1
          %s738 = scalar_select %p737, %s38, 1
          %s739 = smul.addr %s738, 8
          %s740 = smul.addr %s739, 4
          %s741 = scalar_lea.vmem %s17, %s740
        $region88: #{bert_forward.1} parent=23 // pred_fallthru
          _
        // Predicated region
        $region89: #{bert_forward.1} parent=23 // pred_check
          %p742 = pneg %p520
        $region90: #{bert_forward.1} parent=23 // pred_check_branch
          %744 = sbr.rel (%p742) target = $region92
        $region91: #{bert_forward.1} parent=23 // pred_region
          %p745 = scmp.lt.s32.totalorder %s38, 1
          %s746 = scalar_select %p745, %s38, 1
          %s747 = scalar_lea.vmem %s18, %s746
        $region92: #{bert_forward.1} parent=23 // pred_fallthru
          _
        // Predicated region
        $region93: #{bert_forward.1} parent=23 // pred_check
          %p748 = pneg %p546
        $region94: #{bert_forward.1} parent=23 // pred_check_branch
          %750 = sbr.rel (%p748) target = $region96
        $region95: #{bert_forward.1} parent=23 // pred_region
          %p751 = scmp.lt.s32.totalorder %s38, 1
          %s752 = scalar_select %p751, %s38, 1
          %s753 = scalar_lea.vmem %s19, %s752
        $region96: #{bert_forward.1} parent=23 // pred_fallthru
          _
        // Predicated region
        $region97: #{bert_forward.1} parent=23 // pred_check
          %p754 = pneg %p572
        $region98: #{bert_forward.1} parent=23 // pred_check_branch
          %756 = sbr.rel (%p754) target = $region100
        $region99: #{bert_forward.1} parent=23 // pred_region
          %p757 = scmp.lt.s32.totalorder %s38, 1
          %s758 = scalar_select %p757, %s38, 1
          %s759 = scalar_lea.vmem %s20, %s758
        $region100: #{bert_forward.1} parent=23 // pred_fallthru
          _
      $region24: #{bert_forward.1} parent=5 // pred_fallthru
        _
      %p760 = scmp.le.s32.totalorder 1, %s30
      %p761 = scmp.lt.s32.totalorder %s30, 5
      %p762 = pnand %p760, %p761
      %p763 = pneg %p762
      // Predicated region
      $region101: #{bert_forward.1} parent=5 // pred_check
        _
      $region102: #{bert_forward.1} parent=5 // pred_check_branch
        %765 = sbr.rel (%p762) target = $region104
      $region103: #{bert_forward.1} parent=5 // pred_region
        %s766 = ssub.s32 %s30, 1
        %p767 = scmp.lt.s32.totalorder %s39, 1
        %s768 = scalar_select %p767, %s39, 1
        %s769 = smul.addr %s768, 8
        %s770 = scalar_lea.vmem %s0, %s769
        %p771 = pneg %p68
        %p772 = pneg %p65
        %p773 = scmp.lt.s32.totalorder %s39, 1
        %s774 = scalar_select %p773, %s39, 1
        %s775 = scalar_lea.vmem %s1, %s774
        %p776 = pneg %p94
        %p777 = pneg %p91
        %p778 = scmp.lt.s32.totalorder %s39, 1
        %s779 = scalar_select %p778, %s39, 1
        %s780 = smul.addr %s779, 8
        %s781 = scalar_lea.vmem %s2, %s780
        %p782 = pneg %p120
        %p783 = pneg %p117
        %p784 = pneg %p141
        %p785 = pneg %p138
        %p786 = pneg %p162
        %p787 = pneg %p159
        %p788 = scmp.lt.s32.totalorder %s40, 1
        %s789 = scalar_select %p788, %s40, 1
        %s790 = smul.addr %s789, 16
        %s791 = smul.addr %s790, 4
        %s792 = scalar_lea.vmem %s5, %s791
        %p793 = pneg %p188
        %p794 = pneg %p185
        %p795 = scmp.lt.s32.totalorder %s40, 1
        %s796 = scalar_select %p795, %s40, 1
        %s797 = smul.addr %s796, 16
        %s798 = smul.addr %s797, 4
        %s799 = scalar_lea.vmem %s6, %s798
        %p800 = pneg %p214
        %p801 = pneg %p211
        %p802 = scmp.lt.s32.totalorder %s40, 1
        %s803 = scalar_select %p802, %s40, 1
        %s804 = smul.addr %s803, 16
        %s805 = smul.addr %s804, 4
        %s806 = scalar_lea.vmem %s7, %s805
        %p807 = pneg %p240
        %p808 = pneg %p237
        %p809 = scmp.lt.s32.totalorder %s40, 1
        %s810 = scalar_select %p809, %s40, 1
        %s811 = smul.addr %s810, 4
        %s812 = scalar_lea.vmem %s8, %s811
        %p813 = pneg %p266
        %p814 = pneg %p263
        %p815 = scmp.lt.s32.totalorder %s40, 1
        %s816 = scalar_select %p815, %s40, 1
        %s817 = smul.addr %s816, 4
        %s818 = scalar_lea.vmem %s9, %s817
        %p819 = pneg %p292
        %p820 = pneg %p289
        %p821 = scmp.lt.s32.totalorder %s40, 1
        %s822 = scalar_select %p821, %s40, 1
        %s823 = smul.addr %s822, 4
        %s824 = scalar_lea.vmem %s10, %s823
        %p825 = pneg %p318
        %p826 = pneg %p315
        %p827 = scmp.lt.s32.totalorder %s40, 1
        %s828 = scalar_select %p827, %s40, 1
        %s829 = smul.addr %s828, 4
        %s830 = smul.addr %s829, 4
        %s831 = scalar_lea.vmem %s11, %s830
        %p832 = pneg %p344
        %p833 = pneg %p341
        %p834 = scmp.lt.s32.totalorder %s40, 1
        %s835 = scalar_select %p834, %s40, 1
        %s836 = scalar_lea.vmem %s12, %s835
        %p837 = pneg %p370
        %p838 = pneg %p367
        %p839 = scmp.lt.s32.totalorder %s40, 1
        %s840 = scalar_select %p839, %s40, 1
        %s841 = scalar_lea.vmem %s13, %s840
        %p842 = pneg %p396
        %p843 = pneg %p393
        %p844 = scmp.lt.s32.totalorder %s40, 1
        %s845 = scalar_select %p844, %s40, 1
        %s846 = scalar_lea.vmem %s14, %s845
        %p847 = pneg %p422
        %p848 = pneg %p419
        %p849 = scmp.lt.s32.totalorder %s40, 1
        %s850 = scalar_select %p849, %s40, 1
        %s851 = smul.addr %s850, 4
        %s852 = smul.addr %s851, 4
        %s853 = scalar_lea.vmem %s15, %s852
        %p854 = pneg %p448
        %p855 = pneg %p445
        %p856 = scmp.lt.s32.totalorder %s40, 1
        %s857 = scalar_select %p856, %s40, 1
        %s858 = scalar_lea.vmem %s16, %s857
        %p859 = pneg %p474
        %p860 = pneg %p471
        %p861 = scmp.lt.s32.totalorder %s40, 1
        %s862 = scalar_select %p861, %s40, 1
        %s863 = smul.addr %s862, 8
        %s864 = smul.addr %s863, 4
        %s865 = scalar_lea.vmem %s17, %s864
        %p866 = pneg %p500
        %p867 = pneg %p497
        %p868 = scmp.lt.s32.totalorder %s40, 1
        %s869 = scalar_select %p868, %s40, 1
        %s870 = scalar_lea.vmem %s18, %s869
        %p871 = pneg %p526
        %p872 = pneg %p523
        %p873 = scmp.lt.s32.totalorder %s40, 1
        %s874 = scalar_select %p873, %s40, 1
        %s875 = scalar_lea.vmem %s19, %s874
        %p876 = pneg %p552
        %p877 = pneg %p549
        %p878 = scmp.lt.s32.totalorder %s40, 1
        %s879 = scalar_select %p878, %s40, 1
        %s880 = scalar_lea.vmem %s20, %s879
        %p881 = pneg %p578
        %p882 = pneg %p575
        %p883 = pneg %p604
        %p884 = pneg %p601
        %s885 = sand.u32 %s591, 1
        %s886 = scalar_lea.sflag [#allocation4], %s885
        %s887 = sand.u32 %s591, 1
        %s888 = smul.addr %s887, 8
        %s889 = scalar_lea.vmem [#allocation3], %s888
        %p890 = scmp.lt.s32.totalorder %s39, 1
        %s891 = scalar_select %p890, %s39, 1
        %s892 = smul.addr %s891, 8
        %s893 = scalar_lea.vmem %s0, %s892
        %p894 = scmp.lt.s32.totalorder %s39, 1
        %s895 = scalar_select %p894, %s39, 1
        %s896 = scalar_lea.vmem %s1, %s895
        %p897 = scmp.lt.s32.totalorder %s39, 1
        %s898 = scalar_select %p897, %s39, 1
        %s899 = smul.addr %s898, 8
        %s900 = scalar_lea.vmem %s2, %s899
        %p901 = scmp.lt.s32.totalorder %s40, 1
        %s902 = scalar_select %p901, %s40, 1
        %s903 = smul.addr %s902, 16
        %s904 = smul.addr %s903, 4
        %s905 = scalar_lea.vmem %s5, %s904
        %p906 = scmp.lt.s32.totalorder %s40, 1
        %s907 = scalar_select %p906, %s40, 1
        %s908 = smul.addr %s907, 16
        %s909 = smul.addr %s908, 4
        %s910 = scalar_lea.vmem %s6, %s909
        %p911 = scmp.lt.s32.totalorder %s40, 1
        %s912 = scalar_select %p911, %s40, 1
        %s913 = smul.addr %s912, 16
        %s914 = smul.addr %s913, 4
        %s915 = scalar_lea.vmem %s7, %s914
        %p916 = scmp.lt.s32.totalorder %s40, 1
        %s917 = scalar_select %p916, %s40, 1
        %s918 = smul.addr %s917, 4
        %s919 = scalar_lea.vmem %s8, %s918
        %p920 = scmp.lt.s32.totalorder %s40, 1
        %s921 = scalar_select %p920, %s40, 1
        %s922 = smul.addr %s921, 4
        %s923 = scalar_lea.vmem %s9, %s922
        %p924 = scmp.lt.s32.totalorder %s40, 1
        %s925 = scalar_select %p924, %s40, 1
        %s926 = smul.addr %s925, 4
        %s927 = scalar_lea.vmem %s10, %s926
        %p928 = scmp.lt.s32.totalorder %s40, 1
        %s929 = scalar_select %p928, %s40, 1
        %s930 = smul.addr %s929, 4
        %s931 = smul.addr %s930, 4
        %s932 = scalar_lea.vmem %s11, %s931
        %p933 = scmp.lt.s32.totalorder %s40, 1
        %s934 = scalar_select %p933, %s40, 1
        %s935 = scalar_lea.vmem %s12, %s934
        %p936 = scmp.lt.s32.totalorder %s40, 1
        %s937 = scalar_select %p936, %s40, 1
        %s938 = scalar_lea.vmem %s13, %s937
        %p939 = scmp.lt.s32.totalorder %s40, 1
        %s940 = scalar_select %p939, %s40, 1
        %s941 = scalar_lea.vmem %s14, %s940
        %p942 = scmp.lt.s32.totalorder %s40, 1
        %s943 = scalar_select %p942, %s40, 1
        %s944 = smul.addr %s943, 4
        %s945 = smul.addr %s944, 4
        %s946 = scalar_lea.vmem %s15, %s945
        %p947 = scmp.lt.s32.totalorder %s40, 1
        %s948 = scalar_select %p947, %s40, 1
        %s949 = scalar_lea.vmem %s16, %s948
        %p950 = scmp.lt.s32.totalorder %s40, 1
        %s951 = scalar_select %p950, %s40, 1
        %s952 = smul.addr %s951, 8
        %s953 = smul.addr %s952, 4
        %s954 = scalar_lea.vmem %s17, %s953
        %p955 = scmp.lt.s32.totalorder %s40, 1
        %s956 = scalar_select %p955, %s40, 1
        %s957 = scalar_lea.vmem %s18, %s956
        %p958 = scmp.lt.s32.totalorder %s40, 1
        %s959 = scalar_select %p958, %s40, 1
        %s960 = scalar_lea.vmem %s19, %s959
        %p961 = scmp.lt.s32.totalorder %s40, 1
        %s962 = scalar_select %p961, %s40, 1
        %s963 = scalar_lea.vmem %s20, %s962
        %p965 = scmp.eq.s32.totalorder %s40, 0
        // Predicated region
        $region105: #{bert_forward.1} parent=103 // pred_check
          %p966 = pneg %p965
        $region106: #{bert_forward.1} parent=103 // pred_check_branch
          %968 = sbr.rel (%p966) target = $region108
        $region107: #{bert_forward.1} parent=103 // pred_region
          %v969 = vld [vmem:[%s893] sm:$0xff]
          %v970 = vld [vmem:[%s3] sm:$0x1]
          %v971 = vld [vmem:[%s4] sm:$0x1]
          %vm972 = vcmask 261120
          %v973 = vsel %vm972, %v969, 0.0
          %974 = vadd.xlane.f32.xlu0 %v973
          %v975 = vpop.xlane.xlu0 %974
          %v976 = vrcp.pop 32.0
          %v977 = vmul.f32 %v975, %v976
          %v978 = vsub.f32 %v969, %v977
          %v979 = vmul.f32 %v978, %v978
          %v980 = vsel %vm972, %v979, 0.0
          %981 = vadd.xlane.f32.xlu0 %v980
          %v982 = vpop.xlane.xlu0 %981
          %v983 = vmul.f32 %v982, %v976
          %v984 = vadd.f32 %v983, 1e-12
          %v985 = vrsqrt.pop %v984
          %v986 = vmul.f32 %v978, %v985
          %v988 = vlaneseq
          %v989 = vshrl.u32 %v988, 7
          %v990 = vsub.s32 0, %v989
          %v991 = vrot.slane %v970, %v990
          %v993 = vmul.f32 %v986, %v991
          %v995 = vlaneseq
          %v996 = vshrl.u32 %v995, 7
          %v997 = vsub.s32 0, %v996
          %v998 = vrot.slane %v971, %v997
          %v1000 = vadd.f32 %v993, %v998
          %1001 = vst.msk [vmem:[#allocation2] sm:$0xff] %vm972, %v1000
        $region108: #{bert_forward.1} parent=103 // pred_fallthru
          _
        %v1002 = vld [vmem:[#allocation2] sm:$0xff]
        %v1003 = vpack.c.bf16 %v1002, %v1002
        %v1004 = vld [vmem:[%s905] sm:$0xf]
        %v1005 = vld [vmem:[%s905 + $0x4] sm:$0xf]
        %v1006 = vld [vmem:[%s905 + $0x8] sm:$0xf]
        %v1007 = vld [vmem:[%s905 + $0xc] sm:$0xf]
        %v1008 = vld [vmem:[%s905 + $0x10] sm:$0xf]
        %v1009 = vld [vmem:[%s905 + $0x14] sm:$0xf]
        %v1010 = vld [vmem:[%s905 + $0x18] sm:$0xf]
        %v1011 = vld [vmem:[%s905 + $0x1c] sm:$0xf]
        %v1012 = vld [vmem:[%s905 + $0x20] sm:$0xf]
        %v1013 = vld [vmem:[%s905 + $0x24] sm:$0xf]
        %v1014 = vld [vmem:[%s905 + $0x28] sm:$0xf]
        %v1015 = vld [vmem:[%s905 + $0x2c] sm:$0xf]
        %v1016 = vld [vmem:[%s905 + $0x30] sm:$0xf]
        %v1017 = vld [vmem:[%s905 + $0x34] sm:$0xf]
        %v1018 = vld [vmem:[%s905 + $0x38] sm:$0xf]
        %v1019 = vld [vmem:[%s905 + $0x3c] sm:$0xf]
        %v1020 = vld [vmem:[%s919] sm:$0x1]
        %v1021 = vld [vmem:[%s919 + $0x1] sm:$0x1]
        %v1022 = vld [vmem:[%s919 + $0x2] sm:$0x1]
        %v1023 = vld [vmem:[%s919 + $0x3] sm:$0x1]
        %v1028 = vlaneseq
        %v1029 = vshrl.u32 %v1028, 7
        %v1030 = vsub.s32 0, %v1029
        %v1031 = vrot.slane %v1020, %v1030
        %v1032 = vlaneseq
        %v1033 = vshrl.u32 %v1032, 7
        %v1034 = vsub.s32 0, %v1033
        %v1035 = vrot.slane %v1021, %v1034
        %v1036 = vlaneseq
        %v1037 = vshrl.u32 %v1036, 7
        %v1038 = vsub.s32 0, %v1037
        %v1039 = vrot.slane %v1022, %v1038
        %v1040 = vlaneseq
        %v1041 = vshrl.u32 %v1040, 7
        %v1042 = vsub.s32 0, %v1041
        %v1043 = vrot.slane %v1023, %v1042
        %v1052 = vunpack.c.l.b16 %v1004
        %v1053 = vunpack.c.l.b16 %v1005
        %v1054 = vunpack.c.l.b16 %v1006
        %v1055 = vunpack.c.l.b16 %v1007
        %v1056 = vpack.c.b16 %v1053, %v1052
        %v1057 = vpack.c.b16 %v1055, %v1054
        %vm1060 = vcmask 261120
        %v1062 = vsel %vm1060, %v1003, 0
        %1064 = vmatprep.subr.bf16.mxu0 0
        %1065 = vmatpush1.bf16.msra.mxu0 %v1056
        %1066 = vmatprep.subr.bf16.mxu0 0
        %1067 = vmatpush1.bf16.msra.mxu0 %v1057
        %1068 = vmatprep.subr.bf16.mxu0 0
        %1069 = vmatpush1.bf16.msra.mxu0 0
        %1070 = vmatprep.subr.bf16.mxu0 0
        %1071 = vmatpush1.bf16.msra.mxu0 0
        %1072 = vmatprep.subr.bf16.mxu0 0
        %1073 = vmatpush1.bf16.msra.mxu0 0
        %1074 = vmatprep.subr.bf16.mxu0 0
        %1075 = vmatpush1.bf16.msra.mxu0 0
        %1076 = vmatprep.subr.bf16.mxu0 0
        %1077 = vmatpush1.bf16.msra.mxu0 0
        %1078 = vmatprep.subr.bf16.mxu0 0
        %1079 = vmatpush1.bf16.msra.mxu0 0
        %1080 = vmatprep.subr.bf16.mxu0 0
        %1081 = vmatpush1.bf16.msra.mxu0 0
        %1082 = vmatprep.subr.bf16.mxu0 0
        %1083 = vmatpush1.bf16.msra.mxu0 0
        %1084 = vmatprep.subr.bf16.mxu0 0
        %1085 = vmatpush1.bf16.msra.mxu0 0
        %1086 = vmatprep.subr.bf16.mxu0 0
        %1087 = vmatpush1.bf16.msra.mxu0 0
        %1088 = vmatprep.subr.bf16.mxu0 0
        %1089 = vmatpush1.bf16.msra.mxu0 0
        %1090 = vmatprep.subr.bf16.mxu0 0
        %1091 = vmatpush1.bf16.msra.mxu0 0
        %1092 = vmatprep.subr.bf16.mxu0 0
        %1093 = vmatpush1.bf16.msra.mxu0 0
        %1094 = vmatprep.subr.bf16.mxu0 0
        %1095 = vmatpush1.bf16.msra.mxu0 0
        %1096 = vmatprep.mubr.bf16.mxu0 0
        %1097 = vmatmul.mubr.bf16.gmra.mrb[0].mxu0 %v1062
        %v1098 = vpop.f32.mrb[0].mxu0
        %v1099 = vadd.f32 %v1031, %v1098
        %v1100 = vpop.f32.mrb[0].mxu0
        %v1101 = vpop.f32.mrb[0].mxu0
        %v1102 = vpop.f32.mrb[0].mxu0
        %1103 = vdwg.mxu0
        %v1108 = vunpack.c.l.b16 %v1008
        %v1109 = vunpack.c.l.b16 %v1009
        %v1110 = vunpack.c.l.b16 %v1010
        %v1111 = vunpack.c.l.b16 %v1011
        %v1112 = vpack.c.b16 %v1109, %v1108
        %v1113 = vpack.c.b16 %v1111, %v1110
        %1116 = vmatprep.subr.bf16.mxu0 0
        %1117 = vmatpush1.bf16.msra.mxu0 %v1112
        %1118 = vmatprep.subr.bf16.mxu0 0
        %1119 = vmatpush1.bf16.msra.mxu0 %v1113
        %1120 = vmatprep.subr.bf16.mxu0 0
        %1121 = vmatpush1.bf16.msra.mxu0 0
        %1122 = vmatprep.subr.bf16.mxu0 0
        %1123 = vmatpush1.bf16.msra.mxu0 0
        %1124 = vmatprep.subr.bf16.mxu0 0
        %1125 = vmatpush1.bf16.msra.mxu0 0
        %1126 = vmatprep.subr.bf16.mxu0 0
        %1127 = vmatpush1.bf16.msra.mxu0 0
        %1128 = vmatprep.subr.bf16.mxu0 0
        %1129 = vmatpush1.bf16.msra.mxu0 0
        %1130 = vmatprep.subr.bf16.mxu0 0
        %1131 = vmatpush1.bf16.msra.mxu0 0
        %1132 = vmatprep.subr.bf16.mxu0 0
        %1133 = vmatpush1.bf16.msra.mxu0 0
        %1134 = vmatprep.subr.bf16.mxu0 0
        %1135 = vmatpush1.bf16.msra.mxu0 0
        %1136 = vmatprep.subr.bf16.mxu0 0
        %1137 = vmatpush1.bf16.msra.mxu0 0
        %1138 = vmatprep.subr.bf16.mxu0 0
        %1139 = vmatpush1.bf16.msra.mxu0 0
        %1140 = vmatprep.subr.bf16.mxu0 0
        %1141 = vmatpush1.bf16.msra.mxu0 0
        %1142 = vmatprep.subr.bf16.mxu0 0
        %1143 = vmatpush1.bf16.msra.mxu0 0
        %1144 = vmatprep.subr.bf16.mxu0 0
        %1145 = vmatpush1.bf16.msra.mxu0 0
        %1146 = vmatprep.subr.bf16.mxu0 0
        %1147 = vmatpush1.bf16.msra.mxu0 0
        %1148 = vmatprep.mubr.bf16.mxu0 0
        %1149 = vmatmul.mubr.bf16.gmra.mrb[0].mxu0 %v1062
        %v1150 = vpop.f32.mrb[0].mxu0
        %v1151 = vadd.f32 %v1035, %v1150
        %v1152 = vpop.f32.mrb[0].mxu0
        %v1153 = vpop.f32.mrb[0].mxu0
        %v1154 = vpop.f32.mrb[0].mxu0
        %1155 = vdwg.mxu0
        %v1160 = vunpack.c.l.b16 %v1012
        %v1161 = vunpack.c.l.b16 %v1013
        %v1162 = vunpack.c.l.b16 %v1014
        %v1163 = vunpack.c.l.b16 %v1015
        %v1164 = vpack.c.b16 %v1161, %v1160
        %v1165 = vpack.c.b16 %v1163, %v1162
        %1168 = vmatprep.subr.bf16.mxu0 0
        %1169 = vmatpush1.bf16.msra.mxu0 %v1164
        %1170 = vmatprep.subr.bf16.mxu0 0
        %1171 = vmatpush1.bf16.msra.mxu0 %v1165
        %1172 = vmatprep.subr.bf16.mxu0 0
        %1173 = vmatpush1.bf16.msra.mxu0 0
        %1174 = vmatprep.subr.bf16.mxu0 0
        %1175 = vmatpush1.bf16.msra.mxu0 0
        %1176 = vmatprep.subr.bf16.mxu0 0
        %1177 = vmatpush1.bf16.msra.mxu0 0
        %1178 = vmatprep.subr.bf16.mxu0 0
        %1179 = vmatpush1.bf16.msra.mxu0 0
        %1180 = vmatprep.subr.bf16.mxu0 0
        %1181 = vmatpush1.bf16.msra.mxu0 0
        %1182 = vmatprep.subr.bf16.mxu0 0
        %1183 = vmatpush1.bf16.msra.mxu0 0
        %1184 = vmatprep.subr.bf16.mxu0 0
        %1185 = vmatpush1.bf16.msra.mxu0 0
        %1186 = vmatprep.subr.bf16.mxu0 0
        %1187 = vmatpush1.bf16.msra.mxu0 0
        %1188 = vmatprep.subr.bf16.mxu0 0
        %1189 = vmatpush1.bf16.msra.mxu0 0
        %1190 = vmatprep.subr.bf16.mxu0 0
        %1191 = vmatpush1.bf16.msra.mxu0 0
        %1192 = vmatprep.subr.bf16.mxu0 0
        %1193 = vmatpush1.bf16.msra.mxu0 0
        %1194 = vmatprep.subr.bf16.mxu0 0
        %1195 = vmatpush1.bf16.msra.mxu0 0
        %1196 = vmatprep.subr.bf16.mxu0 0
        %1197 = vmatpush1.bf16.msra.mxu0 0
        %1198 = vmatprep.subr.bf16.mxu0 0
        %1199 = vmatpush1.bf16.msra.mxu0 0
        %1200 = vmatprep.mubr.bf16.mxu0 0
        %1201 = vmatmul.mubr.bf16.gmra.mrb[0].mxu0 %v1062
        %v1202 = vpop.f32.mrb[0].mxu0
        %v1203 = vadd.f32 %v1039, %v1202
        %v1204 = vpop.f32.mrb[0].mxu0
        %v1205 = vpop.f32.mrb[0].mxu0
        %v1206 = vpop.f32.mrb[0].mxu0
        %1207 = vdwg.mxu0
        %v1212 = vunpack.c.l.b16 %v1016
        %v1213 = vunpack.c.l.b16 %v1017
        %v1214 = vunpack.c.l.b16 %v1018
        %v1215 = vunpack.c.l.b16 %v1019
        %v1216 = vpack.c.b16 %v1213, %v1212
        %v1217 = vpack.c.b16 %v1215, %v1214
        %1220 = vmatprep.subr.bf16.mxu0 0
        %1221 = vmatpush1.bf16.msra.mxu0 %v1216
        %1222 = vmatprep.subr.bf16.mxu0 0
        %1223 = vmatpush1.bf16.msra.mxu0 %v1217
        %1224 = vmatprep.subr.bf16.mxu0 0
        %1225 = vmatpush1.bf16.msra.mxu0 0
        %1226 = vmatprep.subr.bf16.mxu0 0
        %1227 = vmatpush1.bf16.msra.mxu0 0
        %1228 = vmatprep.subr.bf16.mxu0 0
        %1229 = vmatpush1.bf16.msra.mxu0 0
        %1230 = vmatprep.subr.bf16.mxu0 0
        %1231 = vmatpush1.bf16.msra.mxu0 0
        %1232 = vmatprep.subr.bf16.mxu0 0
        %1233 = vmatpush1.bf16.msra.mxu0 0
        %1234 = vmatprep.subr.bf16.mxu0 0
        %1235 = vmatpush1.bf16.msra.mxu0 0
        %1236 = vmatprep.subr.bf16.mxu0 0
        %1237 = vmatpush1.bf16.msra.mxu0 0
        %1238 = vmatprep.subr.bf16.mxu0 0
        %1239 = vmatpush1.bf16.msra.mxu0 0
        %1240 = vmatprep.subr.bf16.mxu0 0
        %1241 = vmatpush1.bf16.msra.mxu0 0
        %1242 = vmatprep.subr.bf16.mxu0 0
        %1243 = vmatpush1.bf16.msra.mxu0 0
        %1244 = vmatprep.subr.bf16.mxu0 0
        %1245 = vmatpush1.bf16.msra.mxu0 0
        %1246 = vmatprep.subr.bf16.mxu0 0
        %1247 = vmatpush1.bf16.msra.mxu0 0
        %1248 = vmatprep.subr.bf16.mxu0 0
        %1249 = vmatpush1.bf16.msra.mxu0 0
        %1250 = vmatprep.subr.bf16.mxu0 0
        %1251 = vmatpush1.bf16.msra.mxu0 0
        %1252 = vmatprep.mubr.bf16.mxu0 0
        %1253 = vmatmul.mubr.bf16.gmra.mrb[0].mxu0 %v1062
        %v1254 = vpop.f32.mrb[0].mxu0
        %v1255 = vadd.f32 %v1043, %v1254
        %v1256 = vpop.f32.mrb[0].mxu0
        %v1257 = vpop.f32.mrb[0].mxu0
        %v1258 = vpop.f32.mrb[0].mxu0
        %1259 = vdwg.mxu0
        %v1260 = vld [vmem:[%s910] sm:$0xf]
        %v1261 = vld [vmem:[%s910 + $0x4] sm:$0xf]
        %v1262 = vld [vmem:[%s910 + $0x8] sm:$0xf]
        %v1263 = vld [vmem:[%s910 + $0xc] sm:$0xf]
        %v1264 = vld [vmem:[%s910 + $0x10] sm:$0xf]
        %v1265 = vld [vmem:[%s910 + $0x14] sm:$0xf]
        %v1266 = vld [vmem:[%s910 + $0x18] sm:$0xf]
        %v1267 = vld [vmem:[%s910 + $0x1c] sm:$0xf]
        %v1268 = vld [vmem:[%s910 + $0x20] sm:$0xf]
        %v1269 = vld [vmem:[%s910 + $0x24] sm:$0xf]
        %v1270 = vld [vmem:[%s910 + $0x28] sm:$0xf]
        %v1271 = vld [vmem:[%s910 + $0x2c] sm:$0xf]
        %v1272 = vld [vmem:[%s910 + $0x30] sm:$0xf]
        %v1273 = vld [vmem:[%s910 + $0x34] sm:$0xf]
        %v1274 = vld [vmem:[%s910 + $0x38] sm:$0xf]
        %v1275 = vld [vmem:[%s910 + $0x3c] sm:$0xf]
        %v1276 = vld [vmem:[%s923] sm:$0x1]
        %v1277 = vld [vmem:[%s923 + $0x1] sm:$0x1]
        %v1278 = vld [vmem:[%s923 + $0x2] sm:$0x1]
        %v1279 = vld [vmem:[%s923 + $0x3] sm:$0x1]
        %v1284 = vlaneseq
        %v1285 = vshrl.u32 %v1284, 7
        %v1286 = vsub.s32 0, %v1285
        %v1287 = vrot.slane %v1276, %v1286
        %v1288 = vlaneseq
        %v1289 = vshrl.u32 %v1288, 7
        %v1290 = vsub.s32 0, %v1289
        %v1291 = vrot.slane %v1277, %v1290
        %v1292 = vlaneseq
        %v1293 = vshrl.u32 %v1292, 7
        %v1294 = vsub.s32 0, %v1293
        %v1295 = vrot.slane %v1278, %v1294
        %v1296 = vlaneseq
        %v1297 = vshrl.u32 %v1296, 7
        %v1298 = vsub.s32 0, %v1297
        %v1299 = vrot.slane %v1279, %v1298
        %v1308 = vunpack.c.l.b16 %v1260
        %v1309 = vunpack.c.l.b16 %v1261
        %v1310 = vunpack.c.l.b16 %v1262
        %v1311 = vunpack.c.l.b16 %v1263
        %v1312 = vpack.c.b16 %v1309, %v1308
        %v1313 = vpack.c.b16 %v1311, %v1310
        %1316 = vmatprep.subr.bf16.mxu0 0
        %1317 = vmatpush1.bf16.msra.mxu0 %v1312
        %1318 = vmatprep.subr.bf16.mxu0 0
        %1319 = vmatpush1.bf16.msra.mxu0 %v1313
        %1320 = vmatprep.subr.bf16.mxu0 0
        %1321 = vmatpush1.bf16.msra.mxu0 0
        %1322 = vmatprep.subr.bf16.mxu0 0
        %1323 = vmatpush1.bf16.msra.mxu0 0
        %1324 = vmatprep.subr.bf16.mxu0 0
        %1325 = vmatpush1.bf16.msra.mxu0 0
        %1326 = vmatprep.subr.bf16.mxu0 0
        %1327 = vmatpush1.bf16.msra.mxu0 0
        %1328 = vmatprep.subr.bf16.mxu0 0
        %1329 = vmatpush1.bf16.msra.mxu0 0
        %1330 = vmatprep.subr.bf16.mxu0 0
        %1331 = vmatpush1.bf16.msra.mxu0 0
        %1332 = vmatprep.subr.bf16.mxu0 0
        %1333 = vmatpush1.bf16.msra.mxu0 0
        %1334 = vmatprep.subr.bf16.mxu0 0
        %1335 = vmatpush1.bf16.msra.mxu0 0
        %1336 = vmatprep.subr.bf16.mxu0 0
        %1337 = vmatpush1.bf16.msra.mxu0 0
        %1338 = vmatprep.subr.bf16.mxu0 0
        %1339 = vmatpush1.bf16.msra.mxu0 0
        %1340 = vmatprep.subr.bf16.mxu0 0
        %1341 = vmatpush1.bf16.msra.mxu0 0
        %1342 = vmatprep.subr.bf16.mxu0 0
        %1343 = vmatpush1.bf16.msra.mxu0 0
        %1344 = vmatprep.subr.bf16.mxu0 0
        %1345 = vmatpush1.bf16.msra.mxu0 0
        %1346 = vmatprep.subr.bf16.mxu0 0
        %1347 = vmatpush1.bf16.msra.mxu0 0
        %1348 = vmatprep.mubr.bf16.mxu0 0
        %1349 = vmatmul.mubr.bf16.gmra.mrb[0].mxu0 %v1062
        %v1350 = vpop.f32.mrb[0].mxu0
        %v1351 = vadd.f32 %v1287, %v1350
        %v1352 = vpop.f32.mrb[0].mxu0
        %v1353 = vpop.f32.mrb[0].mxu0
        %v1354 = vpop.f32.mrb[0].mxu0
        %1355 = vdwg.mxu0
        %v1360 = vunpack.c.l.b16 %v1264
        %v1361 = vunpack.c.l.b16 %v1265
        %v1362 = vunpack.c.l.b16 %v1266
        %v1363 = vunpack.c.l.b16 %v1267
        %v1364 = vpack.c.b16 %v1361, %v1360
        %v1365 = vpack.c.b16 %v1363, %v1362
        %1368 = vmatprep.subr.bf16.mxu0 0
        %1369 = vmatpush1.bf16.msra.mxu0 %v1364
        %1370 = vmatprep.subr.bf16.mxu0 0
        %1371 = vmatpush1.bf16.msra.mxu0 %v1365
        %1372 = vmatprep.subr.bf16.mxu0 0
        %1373 = vmatpush1.bf16.msra.mxu0 0
        %1374 = vmatprep.subr.bf16.mxu0 0
        %1375 = vmatpush1.bf16.msra.mxu0 0
        %1376 = vmatprep.subr.bf16.mxu0 0
        %1377 = vmatpush1.bf16.msra.mxu0 0
        %1378 = vmatprep.subr.bf16.mxu0 0
        %1379 = vmatpush1.bf16.msra.mxu0 0
        %1380 = vmatprep.subr.bf16.mxu0 0
        %1381 = vmatpush1.bf16.msra.mxu0 0
        %1382 = vmatprep.subr.bf16.mxu0 0
        %1383 = vmatpush1.bf16.msra.mxu0 0
        %1384 = vmatprep.subr.bf16.mxu0 0
        %1385 = vmatpush1.bf16.msra.mxu0 0
        %1386 = vmatprep.subr.bf16.mxu0 0
        %1387 = vmatpush1.bf16.msra.mxu0 0
        %1388 = vmatprep.subr.bf16.mxu0 0
        %1389 = vmatpush1.bf16.msra.mxu0 0
        %1390 = vmatprep.subr.bf16.mxu0 0
        %1391 = vmatpush1.bf16.msra.mxu0 0
        %1392 = vmatprep.subr.bf16.mxu0 0
        %1393 = vmatpush1.bf16.msra.mxu0 0
        %1394 = vmatprep.subr.bf16.mxu0 0
        %1395 = vmatpush1.bf16.msra.mxu0 0
        %1396 = vmatprep.subr.bf16.mxu0 0
        %1397 = vmatpush1.bf16.msra.mxu0 0
        %1398 = vmatprep.subr.bf16.mxu0 0
        %1399 = vmatpush1.bf16.msra.mxu0 0
        %1400 = vmatprep.mubr.bf16.mxu0 0
        %1401 = vmatmul.mubr.bf16.gmra.mrb[0].mxu0 %v1062
        %v1402 = vpop.f32.mrb[0].mxu0
        %v1403 = vadd.f32 %v1291, %v1402
        %v1404 = vpop.f32.mrb[0].mxu0
        %v1405 = vpop.f32.mrb[0].mxu0
        %v1406 = vpop.f32.mrb[0].mxu0
        %1407 = vdwg.mxu0
        %v1412 = vunpack.c.l.b16 %v1268
        %v1413 = vunpack.c.l.b16 %v1269
        %v1414 = vunpack.c.l.b16 %v1270
        %v1415 = vunpack.c.l.b16 %v1271
        %v1416 = vpack.c.b16 %v1413, %v1412
        %v1417 = vpack.c.b16 %v1415, %v1414
        %1420 = vmatprep.subr.bf16.mxu0 0
        %1421 = vmatpush1.bf16.msra.mxu0 %v1416
        %1422 = vmatprep.subr.bf16.mxu0 0
        %1423 = vmatpush1.bf16.msra.mxu0 %v1417
        %1424 = vmatprep.subr.bf16.mxu0 0
        %1425 = vmatpush1.bf16.msra.mxu0 0
        %1426 = vmatprep.subr.bf16.mxu0 0
        %1427 = vmatpush1.bf16.msra.mxu0 0
        %1428 = vmatprep.subr.bf16.mxu0 0
        %1429 = vmatpush1.bf16.msra.mxu0 0
        %1430 = vmatprep.subr.bf16.mxu0 0
        %1431 = vmatpush1.bf16.msra.mxu0 0
        %1432 = vmatprep.subr.bf16.mxu0 0
        %1433 = vmatpush1.bf16.msra.mxu0 0
        %1434 = vmatprep.subr.bf16.mxu0 0
        %1435 = vmatpush1.bf16.msra.mxu0 0
        %1436 = vmatprep.subr.bf16.mxu0 0
        %1437 = vmatpush1.bf16.msra.mxu0 0
        %1438 = vmatprep.subr.bf16.mxu0 0
        %1439 = vmatpush1.bf16.msra.mxu0 0
        %1440 = vmatprep.subr.bf16.mxu0 0
        %1441 = vmatpush1.bf16.msra.mxu0 0
        %1442 = vmatprep.subr.bf16.mxu0 0
        %1443 = vmatpush1.bf16.msra.mxu0 0
        %1444 = vmatprep.subr.bf16.mxu0 0
        %1445 = vmatpush1.bf16.msra.mxu0 0
        %1446 = vmatprep.subr.bf16.mxu0 0
        %1447 = vmatpush1.bf16.msra.mxu0 0
        %1448 = vmatprep.subr.bf16.mxu0 0
        %1449 = vmatpush1.bf16.msra.mxu0 0
        %1450 = vmatprep.subr.bf16.mxu0 0
        %1451 = vmatpush1.bf16.msra.mxu0 0
        %1452 = vmatprep.mubr.bf16.mxu0 0
        %1453 = vmatmul.mubr.bf16.gmra.mrb[0].mxu0 %v1062
        %v1454 = vpop.f32.mrb[0].mxu0
        %v1455 = vadd.f32 %v1295, %v1454
        %v1456 = vpop.f32.mrb[0].mxu0
        %v1457 = vpop.f32.mrb[0].mxu0
        %v1458 = vpop.f32.mrb[0].mxu0
        %1459 = vdwg.mxu0
        %v1464 = vunpack.c.l.b16 %v1272
        %v1465 = vunpack.c.l.b16 %v1273
        %v1466 = vunpack.c.l.b16 %v1274
        %v1467 = vunpack.c.l.b16 %v1275
        %v1468 = vpack.c.b16 %v1465, %v1464
        %v1469 = vpack.c.b16 %v1467, %v1466
        %1472 = vmatprep.subr.bf16.mxu0 0
        %1473 = vmatpush1.bf16.msra.mxu0 %v1468
        %1474 = vmatprep.subr.bf16.mxu0 0
        %1475 = vmatpush1.bf16.msra.mxu0 %v1469
        %1476 = vmatprep.subr.bf16.mxu0 0
        %1477 = vmatpush1.bf16.msra.mxu0 0
        %1478 = vmatprep.subr.bf16.mxu0 0
        %1479 = vmatpush1.bf16.msra.mxu0 0
        %1480 = vmatprep.subr.bf16.mxu0 0
        %1481 = vmatpush1.bf16.msra.mxu0 0
        %1482 = vmatprep.subr.bf16.mxu0 0
        %1483 = vmatpush1.bf16.msra.mxu0 0
        %1484 = vmatprep.subr.bf16.mxu0 0
        %1485 = vmatpush1.bf16.msra.mxu0 0
        %1486 = vmatprep.subr.bf16.mxu0 0
        %1487 = vmatpush1.bf16.msra.mxu0 0
        %1488 = vmatprep.subr.bf16.mxu0 0
        %1489 = vmatpush1.bf16.msra.mxu0 0
        %1490 = vmatprep.subr.bf16.mxu0 0
        %1491 = vmatpush1.bf16.msra.mxu0 0
        %1492 = vmatprep.subr.bf16.mxu0 0
        %1493 = vmatpush1.bf16.msra.mxu0 0
        %1494 = vmatprep.subr.bf16.mxu0 0
        %1495 = vmatpush1.bf16.msra.mxu0 0
        %1496 = vmatprep.subr.bf16.mxu0 0
        %1497 = vmatpush1.bf16.msra.mxu0 0
        %1498 = vmatprep.subr.bf16.mxu0 0
        %1499 = vmatpush1.bf16.msra.mxu0 0
        %1500 = vmatprep.subr.bf16.mxu0 0
        %1501 = vmatpush1.bf16.msra.mxu0 0
        %1502 = vmatprep.subr.bf16.mxu0 0
        %1503 = vmatpush1.bf16.msra.mxu0 0
        %1504 = vmatprep.mubr.bf16.mxu0 0
        %1505 = vmatmul.mubr.bf16.gmra.mrb[0].mxu0 %v1062
        %v1506 = vpop.f32.mrb[0].mxu0
        %v1507 = vadd.f32 %v1299, %v1506
        %v1508 = vpop.f32.mrb[0].mxu0
        %v1509 = vpop.f32.mrb[0].mxu0
        %v1510 = vpop.f32.mrb[0].mxu0
        %1511 = vdwg.mxu0
        %v1512 = vld [vmem:[%s915] sm:$0xf]
        %v1513 = vld [vmem:[%s915 + $0x4] sm:$0xf]
        %v1514 = vld [vmem:[%s915 + $0x8] sm:$0xf]
        %v1515 = vld [vmem:[%s915 + $0xc] sm:$0xf]
        %v1516 = vld [vmem:[%s915 + $0x10] sm:$0xf]
        %v1517 = vld [vmem:[%s915 + $0x14] sm:$0xf]
        %v1518 = vld [vmem:[%s915 + $0x18] sm:$0xf]
        %v1519 = vld [vmem:[%s915 + $0x1c] sm:$0xf]
        %v1520 = vld [vmem:[%s915 + $0x20] sm:$0xf]
        %v1521 = vld [vmem:[%s915 + $0x24] sm:$0xf]
        %v1522 = vld [vmem:[%s915 + $0x28] sm:$0xf]
        %v1523 = vld [vmem:[%s915 + $0x2c] sm:$0xf]
        %v1524 = vld [vmem:[%s915 + $0x30] sm:$0xf]
        %v1525 = vld [vmem:[%s915 + $0x34] sm:$0xf]
        %v1526 = vld [vmem:[%s915 + $0x38] sm:$0xf]
        %v1527 = vld [vmem:[%s915 + $0x3c] sm:$0xf]
        %v1528 = vld [vmem:[%s927] sm:$0x1]
        %v1529 = vld [vmem:[%s927 + $0x1] sm:$0x1]
        %v1530 = vld [vmem:[%s927 + $0x2] sm:$0x1]
        %v1531 = vld [vmem:[%s927 + $0x3] sm:$0x1]
        %v1536 = vlaneseq
        %v1537 = vshrl.u32 %v1536, 7
        %v1538 = vsub.s32 0, %v1537
        %v1539 = vrot.slane %v1528, %v1538
        %v1540 = vlaneseq
        %v1541 = vshrl.u32 %v1540, 7
        %v1542 = vsub.s32 0, %v1541
        %v1543 = vrot.slane %v1529, %v1542
        %v1544 = vlaneseq
        %v1545 = vshrl.u32 %v1544, 7
        %v1546 = vsub.s32 0, %v1545
        %v1547 = vrot.slane %v1530, %v1546
        %v1548 = vlaneseq
        %v1549 = vshrl.u32 %v1548, 7
        %v1550 = vsub.s32 0, %v1549
        %v1551 = vrot.slane %v1531, %v1550
        %v1560 = vunpack.c.l.b16 %v1512
        %v1561 = vunpack.c.l.b16 %v1513
        %v1562 = vunpack.c.l.b16 %v1514
        %v1563 = vunpack.c.l.b16 %v1515
        %v1564 = vpack.c.b16 %v1561, %v1560
        %v1565 = vpack.c.b16 %v1563, %v1562
        %1568 = vmatprep.subr.bf16.mxu0 0
        %1569 = vmatpush1.bf16.msra.mxu0 %v1564
        %1570 = vmatprep.subr.bf16.mxu0 0
        %1571 = vmatpush1.bf16.msra.mxu0 %v1565
        %1572 = vmatprep.subr.bf16.mxu0 0
        %1573 = vmatpush1.bf16.msra.mxu0 0
        %1574 = vmatprep.subr.bf16.mxu0 0
        %1575 = vmatpush1.bf16.msra.mxu0 0
        %1576 = vmatprep.subr.bf16.mxu0 0
        %1577 = vmatpush1.bf16.msra.mxu0 0
        %1578 = vmatprep.subr.bf16.mxu0 0
        %1579 = vmatpush1.bf16.msra.mxu0 0
        %1580 = vmatprep.subr.bf16.mxu0 0
        %1581 = vmatpush1.bf16.msra.mxu0 0
        %1582 = vmatprep.subr.bf16.mxu0 0
        %1583 = vmatpush1.bf16.msra.mxu0 0
        %1584 = vmatprep.subr.bf16.mxu0 0
        %1585 = vmatpush1.bf16.msra.mxu0 0
        %1586 = vmatprep.subr.bf16.mxu0 0
        %1587 = vmatpush1.bf16.msra.mxu0 0
        %1588 = vmatprep.subr.bf16.mxu0 0
        %1589 = vmatpush1.bf16.msra.mxu0 0
        %1590 = vmatprep.subr.bf16.mxu0 0
        %1591 = vmatpush1.bf16.msra.mxu0 0
        %1592 = vmatprep.subr.bf16.mxu0 0
        %1593 = vmatpush1.bf16.msra.mxu0 0
        %1594 = vmatprep.subr.bf16.mxu0 0
        %1595 = vmatpush1.bf16.msra.mxu0 0
        %1596 = vmatprep.subr.bf16.mxu0 0
        %1597 = vmatpush1.bf16.msra.mxu0 0
        %1598 = vmatprep.subr.bf16.mxu0 0
        %1599 = vmatpush1.bf16.msra.mxu0 0
        %1600 = vmatprep.mubr.bf16.mxu0 0
        %1601 = vmatmul.mubr.bf16.gmra.mrb[0].mxu0 %v1062
        %v1602 = vpop.f32.mrb[0].mxu0
        %v1603 = vadd.f32 %v1539, %v1602
        %v1604 = vpop.f32.mrb[0].mxu0
        %v1605 = vpop.f32.mrb[0].mxu0
        %v1606 = vpop.f32.mrb[0].mxu0
        %1607 = vdwg.mxu0
        %v1612 = vunpack.c.l.b16 %v1516
        %v1613 = vunpack.c.l.b16 %v1517
        %v1614 = vunpack.c.l.b16 %v1518
        %v1615 = vunpack.c.l.b16 %v1519
        %v1616 = vpack.c.b16 %v1613, %v1612
        %v1617 = vpack.c.b16 %v1615, %v1614
        %1620 = vmatprep.subr.bf16.mxu0 0
        %1621 = vmatpush1.bf16.msra.mxu0 %v1616
        %1622 = vmatprep.subr.bf16.mxu0 0
        %1623 = vmatpush1.bf16.msra.mxu0 %v1617
        %1624 = vmatprep.subr.bf16.mxu0 0
        %1625 = vmatpush1.bf16.msra.mxu0 0
        %1626 = vmatprep.subr.bf16.mxu0 0
        %1627 = vmatpush1.bf16.msra.mxu0 0
        %1628 = vmatprep.subr.bf16.mxu0 0
        %1629 = vmatpush1.bf16.msra.mxu0 0
        %1630 = vmatprep.subr.bf16.mxu0 0
        %1631 = vmatpush1.bf16.msra.mxu0 0
        %1632 = vmatprep.subr.bf16.mxu0 0
        %1633 = vmatpush1.bf16.msra.mxu0 0
        %1634 = vmatprep.subr.bf16.mxu0 0
        %1635 = vmatpush1.bf16.msra.mxu0 0
        %1636 = vmatprep.subr.bf16.mxu0 0
        %1637 = vmatpush1.bf16.msra.mxu0 0
        %1638 = vmatprep.subr.bf16.mxu0 0
        %1639 = vmatpush1.bf16.msra.mxu0 0
        %1640 = vmatprep.subr.bf16.mxu0 0
        %1641 = vmatpush1.bf16.msra.mxu0 0
        %1642 = vmatprep.subr.bf16.mxu0 0
        %1643 = vmatpush1.bf16.msra.mxu0 0
        %1644 = vmatprep.subr.bf16.mxu0 0
        %1645 = vmatpush1.bf16.msra.mxu0 0
        %1646 = vmatprep.subr.bf16.mxu0 0
        %1647 = vmatpush1.bf16.msra.mxu0 0
        %1648 = vmatprep.subr.bf16.mxu0 0
        %1649 = vmatpush1.bf16.msra.mxu0 0
        %1650 = vmatprep.subr.bf16.mxu0 0
        %1651 = vmatpush1.bf16.msra.mxu0 0
        %1652 = vmatprep.mubr.bf16.mxu0 0
        %1653 = vmatmul.mubr.bf16.gmra.mrb[0].mxu0 %v1062
        %v1654 = vpop.f32.mrb[0].mxu0
        %v1655 = vadd.f32 %v1543, %v1654
        %v1656 = vpop.f32.mrb[0].mxu0
        %v1657 = vpop.f32.mrb[0].mxu0
        %v1658 = vpop.f32.mrb[0].mxu0
        %1659 = vdwg.mxu0
        %v1664 = vunpack.c.l.b16 %v1520
        %v1665 = vunpack.c.l.b16 %v1521
        %v1666 = vunpack.c.l.b16 %v1522
        %v1667 = vunpack.c.l.b16 %v1523
        %v1668 = vpack.c.b16 %v1665, %v1664
        %v1669 = vpack.c.b16 %v1667, %v1666
        %1672 = vmatprep.subr.bf16.mxu0 0
        %1673 = vmatpush1.bf16.msra.mxu0 %v1668
        %1674 = vmatprep.subr.bf16.mxu0 0
        %1675 = vmatpush1.bf16.msra.mxu0 %v1669
        %1676 = vmatprep.subr.bf16.mxu0 0
        %1677 = vmatpush1.bf16.msra.mxu0 0
        %1678 = vmatprep.subr.bf16.mxu0 0
        %1679 = vmatpush1.bf16.msra.mxu0 0
        %1680 = vmatprep.subr.bf16.mxu0 0
        %1681 = vmatpush1.bf16.msra.mxu0 0
        %1682 = vmatprep.subr.bf16.mxu0 0
        %1683 = vmatpush1.bf16.msra.mxu0 0
        %1684 = vmatprep.subr.bf16.mxu0 0
        %1685 = vmatpush1.bf16.msra.mxu0 0
        %1686 = vmatprep.subr.bf16.mxu0 0
        %1687 = vmatpush1.bf16.msra.mxu0 0
        %1688 = vmatprep.subr.bf16.mxu0 0
        %1689 = vmatpush1.bf16.msra.mxu0 0
        %1690 = vmatprep.subr.bf16.mxu0 0
        %1691 = vmatpush1.bf16.msra.mxu0 0
        %1692 = vmatprep.subr.bf16.mxu0 0
        %1693 = vmatpush1.bf16.msra.mxu0 0
        %1694 = vmatprep.subr.bf16.mxu0 0
        %1695 = vmatpush1.bf16.msra.mxu0 0
        %1696 = vmatprep.subr.bf16.mxu0 0
        %1697 = vmatpush1.bf16.msra.mxu0 0
        %1698 = vmatprep.subr.bf16.mxu0 0
        %1699 = vmatpush1.bf16.msra.mxu0 0
        %1700 = vmatprep.subr.bf16.mxu0 0
        %1701 = vmatpush1.bf16.msra.mxu0 0
        %1702 = vmatprep.subr.bf16.mxu0 0
        %1703 = vmatpush1.bf16.msra.mxu0 0
        %1704 = vmatprep.mubr.bf16.mxu0 0
        %1705 = vmatmul.mubr.bf16.gmra.mrb[0].mxu0 %v1062
        %v1706 = vpop.f32.mrb[0].mxu0
        %v1707 = vadd.f32 %v1547, %v1706
        %v1708 = vpop.f32.mrb[0].mxu0
        %v1709 = vpop.f32.mrb[0].mxu0
        %v1710 = vpop.f32.mrb[0].mxu0
        %1711 = vdwg.mxu0
        %v1716 = vunpack.c.l.b16 %v1524
        %v1717 = vunpack.c.l.b16 %v1525
        %v1718 = vunpack.c.l.b16 %v1526
        %v1719 = vunpack.c.l.b16 %v1527
        %v1720 = vpack.c.b16 %v1717, %v1716
        %v1721 = vpack.c.b16 %v1719, %v1718
        %1724 = vmatprep.subr.bf16.mxu0 0
        %1725 = vmatpush1.bf16.msra.mxu0 %v1720
        %1726 = vmatprep.subr.bf16.mxu0 0
        %1727 = vmatpush1.bf16.msra.mxu0 %v1721
        %1728 = vmatprep.subr.bf16.mxu0 0
        %1729 = vmatpush1.bf16.msra.mxu0 0
        %1730 = vmatprep.subr.bf16.mxu0 0
        %1731 = vmatpush1.bf16.msra.mxu0 0
        %1732 = vmatprep.subr.bf16.mxu0 0
        %1733 = vmatpush1.bf16.msra.mxu0 0
        %1734 = vmatprep.subr.bf16.mxu0 0
        %1735 = vmatpush1.bf16.msra.mxu0 0
        %1736 = vmatprep.subr.bf16.mxu0 0
        %1737 = vmatpush1.bf16.msra.mxu0 0
        %1738 = vmatprep.subr.bf16.mxu0 0
        %1739 = vmatpush1.bf16.msra.mxu0 0
        %1740 = vmatprep.subr.bf16.mxu0 0
        %1741 = vmatpush1.bf16.msra.mxu0 0
        %1742 = vmatprep.subr.bf16.mxu0 0
        %1743 = vmatpush1.bf16.msra.mxu0 0
        %1744 = vmatprep.subr.bf16.mxu0 0
        %1745 = vmatpush1.bf16.msra.mxu0 0
        %1746 = vmatprep.subr.bf16.mxu0 0
        %1747 = vmatpush1.bf16.msra.mxu0 0
        %1748 = vmatprep.subr.bf16.mxu0 0
        %1749 = vmatpush1.bf16.msra.mxu0 0
        %1750 = vmatprep.subr.bf16.mxu0 0
        %1751 = vmatpush1.bf16.msra.mxu0 0
        %1752 = vmatprep.subr.bf16.mxu0 0
        %1753 = vmatpush1.bf16.msra.mxu0 0
        %1754 = vmatprep.subr.bf16.mxu0 0
        %1755 = vmatpush1.bf16.msra.mxu0 0
        %1756 = vmatprep.mubr.bf16.mxu0 0
        %1757 = vmatmul.mubr.bf16.gmra.mrb[0].mxu0 %v1062
        %v1758 = vpop.f32.mrb[0].mxu0
        %v1759 = vadd.f32 %v1551, %v1758
        %v1760 = vpop.f32.mrb[0].mxu0
        %v1761 = vpop.f32.mrb[0].mxu0
        %v1762 = vpop.f32.mrb[0].mxu0
        %1763 = vdwg.mxu0
        %v1764 = vpack.c.bf16 %v1099, %v1099
        %v1765 = vpack.c.bf16 %v1151, %v1151
        %v1766 = vpack.c.bf16 %v1203, %v1203
        %v1767 = vpack.c.bf16 %v1255, %v1255
        %v1768 = vpack.c.bf16 %v1351, %v1351
        %v1769 = vpack.c.bf16 %v1403, %v1403
        %v1770 = vpack.c.bf16 %v1455, %v1455
        %v1771 = vpack.c.bf16 %v1507, %v1507
        %vm1772 = vcmask 64512
        %v1774 = vsel %vm1772, %v1764, 0
        %v1777 = vsel %vm1772, %v1768, 0
        %1779 = vmatprep.subr.bf16.mxu0 0
        %1780 = vmatpush1.bf16.xpose.msra.mxu0 %v1777
        %1781 = vmatprep.subr.bf16.mxu0 0
        %1782 = vmatpush1.bf16.xpose.msra.mxu0 0
        %1783 = vmatprep.subr.bf16.mxu0 0
        %1784 = vmatpush1.bf16.xpose.msra.mxu0 0
        %1785 = vmatprep.subr.bf16.mxu0 0
        %1786 = vmatpush1.bf16.xpose.msra.mxu0 0
        %1787 = vmatprep.subr.bf16.mxu0 0
        %1788 = vmatpush1.bf16.xpose.msra.mxu0 0
        %1789 = vmatprep.subr.bf16.mxu0 0
        %1790 = vmatpush1.bf16.xpose.msra.mxu0 0
        %1791 = vmatprep.subr.bf16.mxu0 0
        %1792 = vmatpush1.bf16.xpose.msra.mxu0 0
        %1793 = vmatprep.subr.bf16.mxu0 0
        %1794 = vmatpush1.bf16.xpose.msra.mxu0 0
        %1795 = vmatprep.subr.bf16.mxu0 0
        %1796 = vmatpush1.bf16.xpose.msra.mxu0 0
        %1797 = vmatprep.subr.bf16.mxu0 0
        %1798 = vmatpush1.bf16.xpose.msra.mxu0 0
        %1799 = vmatprep.subr.bf16.mxu0 0
        %1800 = vmatpush1.bf16.xpose.msra.mxu0 0
        %1801 = vmatprep.subr.bf16.mxu0 0
        %1802 = vmatpush1.bf16.xpose.msra.mxu0 0
        %1803 = vmatprep.subr.bf16.mxu0 0
        %1804 = vmatpush1.bf16.xpose.msra.mxu0 0
        %1805 = vmatprep.subr.bf16.mxu0 0
        %1806 = vmatpush1.bf16.xpose.msra.mxu0 0
        %1807 = vmatprep.subr.bf16.mxu0 0
        %1808 = vmatpush1.bf16.xpose.msra.mxu0 0
        %1809 = vmatprep.subr.bf16.mxu0 0
        %1810 = vmatpush1.bf16.xpose.msra.mxu0 0
        %1811 = vmatprep.mubr.bf16.mxu0 0
        %1812 = vmatmul.mubr.bf16.gmra.mrb[0].mxu0 %v1774
        %v1813 = vpop.f32.mrb[0].mxu0
        %v1814 = vadd.f32 0.0, %v1813
        %v1815 = vpop.f32.mrb[0].mxu0
        %v1816 = vpop.f32.mrb[0].mxu0
        %v1817 = vpop.f32.mrb[0].mxu0
        %1818 = vdwg.mxu0
        %v1820 = vsel %vm1772, %v1765, 0
        %v1823 = vsel %vm1772, %v1769, 0
        %1825 = vmatprep.subr.bf16.mxu0 0
        %1826 = vmatpush1.bf16.xpose.msra.mxu0 %v1823
        %1827 = vmatprep.subr.bf16.mxu0 0
        %1828 = vmatpush1.bf16.xpose.msra.mxu0 0
        %1829 = vmatprep.subr.bf16.mxu0 0
        %1830 = vmatpush1.bf16.xpose.msra.mxu0 0
        %1831 = vmatprep.subr.bf16.mxu0 0
        %1832 = vmatpush1.bf16.xpose.msra.mxu0 0
        %1833 = vmatprep.subr.bf16.mxu0 0
        %1834 = vmatpush1.bf16.xpose.msra.mxu0 0
        %1835 = vmatprep.subr.bf16.mxu0 0
        %1836 = vmatpush1.bf16.xpose.msra.mxu0 0
        %1837 = vmatprep.subr.bf16.mxu0 0
        %1838 = vmatpush1.bf16.xpose.msra.mxu0 0
        %1839 = vmatprep.subr.bf16.mxu0 0
        %1840 = vmatpush1.bf16.xpose.msra.mxu0 0
        %1841 = vmatprep.subr.bf16.mxu0 0
        %1842 = vmatpush1.bf16.xpose.msra.mxu0 0
        %1843 = vmatprep.subr.bf16.mxu0 0
        %1844 = vmatpush1.bf16.xpose.msra.mxu0 0
        %1845 = vmatprep.subr.bf16.mxu0 0
        %1846 = vmatpush1.bf16.xpose.msra.mxu0 0
        %1847 = vmatprep.subr.bf16.mxu0 0
        %1848 = vmatpush1.bf16.xpose.msra.mxu0 0
        %1849 = vmatprep.subr.bf16.mxu0 0
        %1850 = vmatpush1.bf16.xpose.msra.mxu0 0
        %1851 = vmatprep.subr.bf16.mxu0 0
        %1852 = vmatpush1.bf16.xpose.msra.mxu0 0
        %1853 = vmatprep.subr.bf16.mxu0 0
        %1854 = vmatpush1.bf16.xpose.msra.mxu0 0
        %1855 = vmatprep.subr.bf16.mxu0 0
        %1856 = vmatpush1.bf16.xpose.msra.mxu0 0
        %1857 = vmatprep.mubr.bf16.mxu0 0
        %1858 = vmatmul.mubr.bf16.gmra.mrb[0].mxu0 %v1820
        %v1859 = vpop.f32.mrb[0].mxu0
        %v1860 = vadd.f32 0.0, %v1859
        %v1861 = vpop.f32.mrb[0].mxu0
        %v1862 = vpop.f32.mrb[0].mxu0
        %v1863 = vpop.f32.mrb[0].mxu0
        %1864 = vdwg.mxu0
        %v1866 = vsel %vm1772, %v1766, 0
        %v1869 = vsel %vm1772, %v1770, 0
        %1871 = vmatprep.subr.bf16.mxu0 0
        %1872 = vmatpush1.bf16.xpose.msra.mxu0 %v1869
        %1873 = vmatprep.subr.bf16.mxu0 0
        %1874 = vmatpush1.bf16.xpose.msra.mxu0 0
        %1875 = vmatprep.subr.bf16.mxu0 0
        %1876 = vmatpush1.bf16.xpose.msra.mxu0 0
        %1877 = vmatprep.subr.bf16.mxu0 0
        %1878 = vmatpush1.bf16.xpose.msra.mxu0 0
        %1879 = vmatprep.subr.bf16.mxu0 0
        %1880 = vmatpush1.bf16.xpose.msra.mxu0 0
        %1881 = vmatprep.subr.bf16.mxu0 0
        %1882 = vmatpush1.bf16.xpose.msra.mxu0 0
        %1883 = vmatprep.subr.bf16.mxu0 0
        %1884 = vmatpush1.bf16.xpose.msra.mxu0 0
        %1885 = vmatprep.subr.bf16.mxu0 0
        %1886 = vmatpush1.bf16.xpose.msra.mxu0 0
        %1887 = vmatprep.subr.bf16.mxu0 0
        %1888 = vmatpush1.bf16.xpose.msra.mxu0 0
        %1889 = vmatprep.subr.bf16.mxu0 0
        %1890 = vmatpush1.bf16.xpose.msra.mxu0 0
        %1891 = vmatprep.subr.bf16.mxu0 0
        %1892 = vmatpush1.bf16.xpose.msra.mxu0 0
        %1893 = vmatprep.subr.bf16.mxu0 0
        %1894 = vmatpush1.bf16.xpose.msra.mxu0 0
        %1895 = vmatprep.subr.bf16.mxu0 0
        %1896 = vmatpush1.bf16.xpose.msra.mxu0 0
        %1897 = vmatprep.subr.bf16.mxu0 0
        %1898 = vmatpush1.bf16.xpose.msra.mxu0 0
        %1899 = vmatprep.subr.bf16.mxu0 0
        %1900 = vmatpush1.bf16.xpose.msra.mxu0 0
        %1901 = vmatprep.subr.bf16.mxu0 0
        %1902 = vmatpush1.bf16.xpose.msra.mxu0 0
        %1903 = vmatprep.mubr.bf16.mxu0 0
        %1904 = vmatmul.mubr.bf16.gmra.mrb[0].mxu0 %v1866
        %v1905 = vpop.f32.mrb[0].mxu0
        %v1906 = vadd.f32 0.0, %v1905
        %v1907 = vpop.f32.mrb[0].mxu0
        %v1908 = vpop.f32.mrb[0].mxu0
        %v1909 = vpop.f32.mrb[0].mxu0
        %1910 = vdwg.mxu0
        %v1912 = vsel %vm1772, %v1767, 0
        %v1915 = vsel %vm1772, %v1771, 0
        %1917 = vmatprep.subr.bf16.mxu0 0
        %1918 = vmatpush1.bf16.xpose.msra.mxu0 %v1915
        %1919 = vmatprep.subr.bf16.mxu0 0
        %1920 = vmatpush1.bf16.xpose.msra.mxu0 0
        %1921 = vmatprep.subr.bf16.mxu0 0
        %1922 = vmatpush1.bf16.xpose.msra.mxu0 0
        %1923 = vmatprep.subr.bf16.mxu0 0
        %1924 = vmatpush1.bf16.xpose.msra.mxu0 0
        %1925 = vmatprep.subr.bf16.mxu0 0
        %1926 = vmatpush1.bf16.xpose.msra.mxu0 0
        %1927 = vmatprep.subr.bf16.mxu0 0
        %1928 = vmatpush1.bf16.xpose.msra.mxu0 0
        %1929 = vmatprep.subr.bf16.mxu0 0
        %1930 = vmatpush1.bf16.xpose.msra.mxu0 0
        %1931 = vmatprep.subr.bf16.mxu0 0
        %1932 = vmatpush1.bf16.xpose.msra.mxu0 0
        %1933 = vmatprep.subr.bf16.mxu0 0
        %1934 = vmatpush1.bf16.xpose.msra.mxu0 0
        %1935 = vmatprep.subr.bf16.mxu0 0
        %1936 = vmatpush1.bf16.xpose.msra.mxu0 0
        %1937 = vmatprep.subr.bf16.mxu0 0
        %1938 = vmatpush1.bf16.xpose.msra.mxu0 0
        %1939 = vmatprep.subr.bf16.mxu0 0
        %1940 = vmatpush1.bf16.xpose.msra.mxu0 0
        %1941 = vmatprep.subr.bf16.mxu0 0
        %1942 = vmatpush1.bf16.xpose.msra.mxu0 0
        %1943 = vmatprep.subr.bf16.mxu0 0
        %1944 = vmatpush1.bf16.xpose.msra.mxu0 0
        %1945 = vmatprep.subr.bf16.mxu0 0
        %1946 = vmatpush1.bf16.xpose.msra.mxu0 0
        %1947 = vmatprep.subr.bf16.mxu0 0
        %1948 = vmatpush1.bf16.xpose.msra.mxu0 0
        %1949 = vmatprep.mubr.bf16.mxu0 0
        %1950 = vmatmul.mubr.bf16.gmra.mrb[0].mxu0 %v1912
        %v1951 = vpop.f32.mrb[0].mxu0
        %v1952 = vadd.f32 0.0, %v1951
        %v1953 = vpop.f32.mrb[0].mxu0
        %v1954 = vpop.f32.mrb[0].mxu0
        %v1955 = vpop.f32.mrb[0].mxu0
        %1956 = vdwg.mxu0
        %v1957 = vmul.f32 %v1814, 0.35355338
        %v1958 = vmul.f32 %v1860, 0.35355338
        %v1959 = vmul.f32 %v1906, 0.35355338
        %v1960 = vmul.f32 %v1952, 0.35355338
        %v1961 = vld [vmem:[%s896] sm:$0x1]
        %v1963 = vlaneseq
        %v1964 = vshrl.u32 %v1963, 7
        %v1965 = vsub.s32 0, %v1964
        %v1966 = vrot.slane %v1961, %v1965
        %v1968 = vadd.f32 %v1957, %v1966
        %v1969 = vadd.f32 %v1958, %v1966
        %v1970 = vadd.f32 %v1959, %v1966
        %v1971 = vadd.f32 %v1960, %v1966
        %v1972 = vsel %vm1772, %v1968, -inf
        %1973 = vmax.xlane.f32.xlu0 %v1972
        %v1974 = vpop.xlane.xlu0 %1973
        %v1975 = vsel %vm1772, %v1969, -inf
        %1976 = vmax.xlane.f32.xlu0 %v1975
        %v1977 = vpop.xlane.xlu0 %1976
        %v1978 = vsel %vm1772, %v1970, -inf
        %1979 = vmax.xlane.f32.xlu0 %v1978
        %v1980 = vpop.xlane.xlu0 %1979
        %v1981 = vsel %vm1772, %v1971, -inf
        %1982 = vmax.xlane.f32.xlu0 %v1981
        %v1983 = vpop.xlane.xlu0 %1982
        %v1984 = vsub.f32 %v1968, %v1974
        %v1985 = vsub.f32 %v1969, %v1977
        %v1986 = vsub.f32 %v1970, %v1980
        %v1987 = vsub.f32 %v1971, %v1983
        %v1988 = vmul.f32 %v1984, 1.442695
        %v1989 = vpow.pop %v1988
        %v1990 = vmul.f32 %v1985, 1.442695
        %v1991 = vpow.pop %v1990
        %v1992 = vmul.f32 %v1986, 1.442695
        %v1993 = vpow.pop %v1992
        %v1994 = vmul.f32 %v1987, 1.442695
        %v1995 = vpow.pop %v1994
        %v1996 = vsel %vm1772, %v1989, 0.0
        %1997 = vadd.xlane.f32.xlu0 %v1996
        %v1998 = vpop.xlane.xlu0 %1997
        %v1999 = vsel %vm1772, %v1991, 0.0
        %2000 = vadd.xlane.f32.xlu0 %v1999
        %v2001 = vpop.xlane.xlu0 %2000
        %v2002 = vsel %vm1772, %v1993, 0.0
        %2003 = vadd.xlane.f32.xlu0 %v2002
        %v2004 = vpop.xlane.xlu0 %2003
        %v2005 = vsel %vm1772, %v1995, 0.0
        %2006 = vadd.xlane.f32.xlu0 %v2005
        %v2007 = vpop.xlane.xlu0 %2006
        %v2008 = vrcp.pop %v1998
        %v2009 = vrcp.pop %v2001
        %v2010 = vrcp.pop %v2004
        %v2011 = vrcp.pop %v2007
        %v2012 = vmul.f32 %v1989, %v2008
        %v2013 = vmul.f32 %v1991, %v2009
        %v2014 = vmul.f32 %v1993, %v2010
        %v2015 = vmul.f32 %v1995, %v2011
        %v2016 = vpack.c.bf16 %v2012, %v2012
        %v2017 = vpack.c.bf16 %v2013, %v2013
        %v2018 = vpack.c.bf16 %v2014, %v2014
        %v2019 = vpack.c.bf16 %v2015, %v2015
        %v2020 = vpack.c.bf16 %v1603, %v1603
        %v2021 = vpack.c.bf16 %v1655, %v1655
        %v2022 = vpack.c.bf16 %v1707, %v1707
        %v2023 = vpack.c.bf16 %v1759, %v1759
        %v2025 = vsel %vm1772, %v2016, 0
        %vm2027 = vcmask 1043456
        %v2029 = vsel %vm2027, %v2020, 0
        %2031 = vmatprep.subr.bf16.mxu0 0
        %2032 = vmatpush1.bf16.msra.mxu0 %v2029
        %2033 = vmatprep.subr.bf16.mxu0 0
        %2034 = vmatpush1.bf16.msra.mxu0 0
        %2035 = vmatprep.subr.bf16.mxu0 0
        %2036 = vmatpush1.bf16.msra.mxu0 0
        %2037 = vmatprep.subr.bf16.mxu0 0
        %2038 = vmatpush1.bf16.msra.mxu0 0
        %2039 = vmatprep.subr.bf16.mxu0 0
        %2040 = vmatpush1.bf16.msra.mxu0 0
        %2041 = vmatprep.subr.bf16.mxu0 0
        %2042 = vmatpush1.bf16.msra.mxu0 0
        %2043 = vmatprep.subr.bf16.mxu0 0
        %2044 = vmatpush1.bf16.msra.mxu0 0
        %2045 = vmatprep.subr.bf16.mxu0 0
        %2046 = vmatpush1.bf16.msra.mxu0 0
        %2047 = vmatprep.subr.bf16.mxu0 0
        %2048 = vmatpush1.bf16.msra.mxu0 0
        %2049 = vmatprep.subr.bf16.mxu0 0
        %2050 = vmatpush1.bf16.msra.mxu0 0
        %2051 = vmatprep.subr.bf16.mxu0 0
        %2052 = vmatpush1.bf16.msra.mxu0 0
        %2053 = vmatprep.subr.bf16.mxu0 0
        %2054 = vmatpush1.bf16.msra.mxu0 0
        %2055 = vmatprep.subr.bf16.mxu0 0
        %2056 = vmatpush1.bf16.msra.mxu0 0
        %2057 = vmatprep.subr.bf16.mxu0 0
        %2058 = vmatpush1.bf16.msra.mxu0 0
        %2059 = vmatprep.subr.bf16.mxu0 0
        %2060 = vmatpush1.bf16.msra.mxu0 0
        %2061 = vmatprep.subr.bf16.mxu0 0
        %2062 = vmatpush1.bf16.msra.mxu0 0
        %2063 = vmatprep.mubr.bf16.mxu0 0
        %2064 = vmatmul.mubr.bf16.gmra.mrb[0].mxu0 %v2025
        %v2065 = vpop.f32.mrb[0].mxu0
        %v2066 = vadd.f32 0.0, %v2065
        %v2067 = vpop.f32.mrb[0].mxu0
        %v2068 = vpop.f32.mrb[0].mxu0
        %v2069 = vpop.f32.mrb[0].mxu0
        %2070 = vdwg.mxu0
        %v2072 = vsel %vm1772, %v2017, 0
        %v2075 = vsel %vm2027, %v2021, 0
        %2077 = vmatprep.subr.bf16.mxu0 0
        %2078 = vmatpush1.bf16.msra.mxu0 %v2075
        %2079 = vmatprep.subr.bf16.mxu0 0
        %2080 = vmatpush1.bf16.msra.mxu0 0
        %2081 = vmatprep.subr.bf16.mxu0 0
        %2082 = vmatpush1.bf16.msra.mxu0 0
        %2083 = vmatprep.subr.bf16.mxu0 0
        %2084 = vmatpush1.bf16.msra.mxu0 0
        %2085 = vmatprep.subr.bf16.mxu0 0
        %2086 = vmatpush1.bf16.msra.mxu0 0
        %2087 = vmatprep.subr.bf16.mxu0 0
        %2088 = vmatpush1.bf16.msra.mxu0 0
        %2089 = vmatprep.subr.bf16.mxu0 0
        %2090 = vmatpush1.bf16.msra.mxu0 0
        %2091 = vmatprep.subr.bf16.mxu0 0
        %2092 = vmatpush1.bf16.msra.mxu0 0
        %2093 = vmatprep.subr.bf16.mxu0 0
        %2094 = vmatpush1.bf16.msra.mxu0 0
        %2095 = vmatprep.subr.bf16.mxu0 0
        %2096 = vmatpush1.bf16.msra.mxu0 0
        %2097 = vmatprep.subr.bf16.mxu0 0
        %2098 = vmatpush1.bf16.msra.mxu0 0
        %2099 = vmatprep.subr.bf16.mxu0 0
        %2100 = vmatpush1.bf16.msra.mxu0 0
        %2101 = vmatprep.subr.bf16.mxu0 0
        %2102 = vmatpush1.bf16.msra.mxu0 0
        %2103 = vmatprep.subr.bf16.mxu0 0
        %2104 = vmatpush1.bf16.msra.mxu0 0
        %2105 = vmatprep.subr.bf16.mxu0 0
        %2106 = vmatpush1.bf16.msra.mxu0 0
        %2107 = vmatprep.subr.bf16.mxu0 0
        %2108 = vmatpush1.bf16.msra.mxu0 0
        %2109 = vmatprep.mubr.bf16.mxu0 0
        %2110 = vmatmul.mubr.bf16.gmra.mrb[0].mxu0 %v2072
        %v2111 = vpop.f32.mrb[0].mxu0
        %v2112 = vadd.f32 0.0, %v2111
        %v2113 = vpop.f32.mrb[0].mxu0
        %v2114 = vpop.f32.mrb[0].mxu0
        %v2115 = vpop.f32.mrb[0].mxu0
        %2116 = vdwg.mxu0
        %v2118 = vsel %vm1772, %v2018, 0
        %v2121 = vsel %vm2027, %v2022, 0
        %2123 = vmatprep.subr.bf16.mxu0 0
        %2124 = vmatpush1.bf16.msra.mxu0 %v2121
        %2125 = vmatprep.subr.bf16.mxu0 0
        %2126 = vmatpush1.bf16.msra.mxu0 0
        %2127 = vmatprep.subr.bf16.mxu0 0
        %2128 = vmatpush1.bf16.msra.mxu0 0
        %2129 = vmatprep.subr.bf16.mxu0 0
        %2130 = vmatpush1.bf16.msra.mxu0 0
        %2131 = vmatprep.subr.bf16.mxu0 0
        %2132 = vmatpush1.bf16.msra.mxu0 0
        %2133 = vmatprep.subr.bf16.mxu0 0
        %2134 = vmatpush1.bf16.msra.mxu0 0
        %2135 = vmatprep.subr.bf16.mxu0 0
        %2136 = vmatpush1.bf16.msra.mxu0 0
        %2137 = vmatprep.subr.bf16.mxu0 0
        %2138 = vmatpush1.bf16.msra.mxu0 0
        %2139 = vmatprep.subr.bf16.mxu0 0
        %2140 = vmatpush1.bf16.msra.mxu0 0
        %2141 = vmatprep.subr.bf16.mxu0 0
        %2142 = vmatpush1.bf16.msra.mxu0 0
        %2143 = vmatprep.subr.bf16.mxu0 0
        %2144 = vmatpush1.bf16.msra.mxu0 0
        %2145 = vmatprep.subr.bf16.mxu0 0
        %2146 = vmatpush1.bf16.msra.mxu0 0
        %2147 = vmatprep.subr.bf16.mxu0 0
        %2148 = vmatpush1.bf16.msra.mxu0 0
        %2149 = vmatprep.subr.bf16.mxu0 0
        %2150 = vmatpush1.bf16.msra.mxu0 0
        %2151 = vmatprep.subr.bf16.mxu0 0
        %2152 = vmatpush1.bf16.msra.mxu0 0
        %2153 = vmatprep.subr.bf16.mxu0 0
        %2154 = vmatpush1.bf16.msra.mxu0 0
        %2155 = vmatprep.mubr.bf16.mxu0 0
        %2156 = vmatmul.mubr.bf16.gmra.mrb[0].mxu0 %v2118
        %v2157 = vpop.f32.mrb[0].mxu0
        %v2158 = vadd.f32 0.0, %v2157
        %v2159 = vpop.f32.mrb[0].mxu0
        %v2160 = vpop.f32.mrb[0].mxu0
        %v2161 = vpop.f32.mrb[0].mxu0
        %2162 = vdwg.mxu0
        %v2164 = vsel %vm1772, %v2019, 0
        %v2167 = vsel %vm2027, %v2023, 0
        %2169 = vmatprep.subr.bf16.mxu0 0
        %2170 = vmatpush1.bf16.msra.mxu0 %v2167
        %2171 = vmatprep.subr.bf16.mxu0 0
        %2172 = vmatpush1.bf16.msra.mxu0 0
        %2173 = vmatprep.subr.bf16.mxu0 0
        %2174 = vmatpush1.bf16.msra.mxu0 0
        %2175 = vmatprep.subr.bf16.mxu0 0
        %2176 = vmatpush1.bf16.msra.mxu0 0
        %2177 = vmatprep.subr.bf16.mxu0 0
        %2178 = vmatpush1.bf16.msra.mxu0 0
        %2179 = vmatprep.subr.bf16.mxu0 0
        %2180 = vmatpush1.bf16.msra.mxu0 0
        %2181 = vmatprep.subr.bf16.mxu0 0
        %2182 = vmatpush1.bf16.msra.mxu0 0
        %2183 = vmatprep.subr.bf16.mxu0 0
        %2184 = vmatpush1.bf16.msra.mxu0 0
        %2185 = vmatprep.subr.bf16.mxu0 0
        %2186 = vmatpush1.bf16.msra.mxu0 0
        %2187 = vmatprep.subr.bf16.mxu0 0
        %2188 = vmatpush1.bf16.msra.mxu0 0
        %2189 = vmatprep.subr.bf16.mxu0 0
        %2190 = vmatpush1.bf16.msra.mxu0 0
        %2191 = vmatprep.subr.bf16.mxu0 0
        %2192 = vmatpush1.bf16.msra.mxu0 0
        %2193 = vmatprep.subr.bf16.mxu0 0
        %2194 = vmatpush1.bf16.msra.mxu0 0
        %2195 = vmatprep.subr.bf16.mxu0 0
        %2196 = vmatpush1.bf16.msra.mxu0 0
        %2197 = vmatprep.subr.bf16.mxu0 0
        %2198 = vmatpush1.bf16.msra.mxu0 0
        %2199 = vmatprep.subr.bf16.mxu0 0
        %2200 = vmatpush1.bf16.msra.mxu0 0
        %2201 = vmatprep.mubr.bf16.mxu0 0
        %2202 = vmatmul.mubr.bf16.gmra.mrb[0].mxu0 %v2164
        %v2203 = vpop.f32.mrb[0].mxu0
        %v2204 = vadd.f32 0.0, %v2203
        %v2205 = vpop.f32.mrb[0].mxu0
        %v2206 = vpop.f32.mrb[0].mxu0
        %v2207 = vpop.f32.mrb[0].mxu0
        %2208 = vdwg.mxu0
        %v2209 = vpack.c.bf16 %v2066, %v2066
        %v2210 = vpack.c.bf16 %v2112, %v2112
        %v2211 = vpack.c.bf16 %v2158, %v2158
        %v2212 = vpack.c.bf16 %v2204, %v2204
        %v2213 = vld [vmem:[%s932] sm:$0xf]
        %v2214 = vld [vmem:[%s932 + $0x4] sm:$0xf]
        %v2215 = vld [vmem:[%s932 + $0x8] sm:$0xf]
        %v2216 = vld [vmem:[%s932 + $0xc] sm:$0xf]
        %v2218 = vsel %vm1772, %v2209, 0
        %v2221 = vsel %vm2027, %v2213, 0
        %2223 = vmatprep.subr.bf16.mxu0 0
        %2224 = vmatpush1.bf16.msra.mxu0 %v2221
        %2225 = vmatprep.subr.bf16.mxu0 0
        %2226 = vmatpush1.bf16.msra.mxu0 0
        %2227 = vmatprep.subr.bf16.mxu0 0
        %2228 = vmatpush1.bf16.msra.mxu0 0
        %2229 = vmatprep.subr.bf16.mxu0 0
        %2230 = vmatpush1.bf16.msra.mxu0 0
        %2231 = vmatprep.subr.bf16.mxu0 0
        %2232 = vmatpush1.bf16.msra.mxu0 0
        %2233 = vmatprep.subr.bf16.mxu0 0
        %2234 = vmatpush1.bf16.msra.mxu0 0
        %2235 = vmatprep.subr.bf16.mxu0 0
        %2236 = vmatpush1.bf16.msra.mxu0 0
        %2237 = vmatprep.subr.bf16.mxu0 0
        %2238 = vmatpush1.bf16.msra.mxu0 0
        %2239 = vmatprep.subr.bf16.mxu0 0
        %2240 = vmatpush1.bf16.msra.mxu0 0
        %2241 = vmatprep.subr.bf16.mxu0 0
        %2242 = vmatpush1.bf16.msra.mxu0 0
        %2243 = vmatprep.subr.bf16.mxu0 0
        %2244 = vmatpush1.bf16.msra.mxu0 0
        %2245 = vmatprep.subr.bf16.mxu0 0
        %2246 = vmatpush1.bf16.msra.mxu0 0
        %2247 = vmatprep.subr.bf16.mxu0 0
        %2248 = vmatpush1.bf16.msra.mxu0 0
        %2249 = vmatprep.subr.bf16.mxu0 0
        %2250 = vmatpush1.bf16.msra.mxu0 0
        %2251 = vmatprep.subr.bf16.mxu0 0
        %2252 = vmatpush1.bf16.msra.mxu0 0
        %2253 = vmatprep.subr.bf16.mxu0 0
        %2254 = vmatpush1.bf16.msra.mxu0 0
        %2255 = vmatprep.mubr.bf16.mxu0 0
        %2256 = vmatmul.mubr.bf16.gmra.mrb[0].mxu0 %v2218
        %v2257 = vpop.f32.mrb[0].mxu0
        %v2258 = vadd.f32 0.0, %v2257
        %v2259 = vpop.f32.mrb[0].mxu0
        %v2260 = vpop.f32.mrb[0].mxu0
        %v2261 = vpop.f32.mrb[0].mxu0
        %2262 = vdwg.mxu0
        %v2264 = vsel %vm1772, %v2210, 0
        %v2267 = vsel %vm2027, %v2214, 0
        %2269 = vmatprep.subr.bf16.mxu0 0
        %2270 = vmatpush1.bf16.msra.mxu0 %v2267
        %2271 = vmatprep.subr.bf16.mxu0 0
        %2272 = vmatpush1.bf16.msra.mxu0 0
        %2273 = vmatprep.subr.bf16.mxu0 0
        %2274 = vmatpush1.bf16.msra.mxu0 0
        %2275 = vmatprep.subr.bf16.mxu0 0
        %2276 = vmatpush1.bf16.msra.mxu0 0
        %2277 = vmatprep.subr.bf16.mxu0 0
        %2278 = vmatpush1.bf16.msra.mxu0 0
        %2279 = vmatprep.subr.bf16.mxu0 0
        %2280 = vmatpush1.bf16.msra.mxu0 0
        %2281 = vmatprep.subr.bf16.mxu0 0
        %2282 = vmatpush1.bf16.msra.mxu0 0
        %2283 = vmatprep.subr.bf16.mxu0 0
        %2284 = vmatpush1.bf16.msra.mxu0 0
        %2285 = vmatprep.subr.bf16.mxu0 0
        %2286 = vmatpush1.bf16.msra.mxu0 0
        %2287 = vmatprep.subr.bf16.mxu0 0
        %2288 = vmatpush1.bf16.msra.mxu0 0
        %2289 = vmatprep.subr.bf16.mxu0 0
        %2290 = vmatpush1.bf16.msra.mxu0 0
        %2291 = vmatprep.subr.bf16.mxu0 0
        %2292 = vmatpush1.bf16.msra.mxu0 0
        %2293 = vmatprep.subr.bf16.mxu0 0
        %2294 = vmatpush1.bf16.msra.mxu0 0
        %2295 = vmatprep.subr.bf16.mxu0 0
        %2296 = vmatpush1.bf16.msra.mxu0 0
        %2297 = vmatprep.subr.bf16.mxu0 0
        %2298 = vmatpush1.bf16.msra.mxu0 0
        %2299 = vmatprep.subr.bf16.mxu0 0
        %2300 = vmatpush1.bf16.msra.mxu0 0
        %2301 = vmatprep.mubr.bf16.mxu0 0
        %2302 = vmatmul.mubr.bf16.gmra.mrb[0].mxu0 %v2264
        %v2303 = vpop.f32.mrb[0].mxu0
        %v2304 = vadd.f32 0.0, %v2303
        %v2305 = vpop.f32.mrb[0].mxu0
        %v2306 = vpop.f32.mrb[0].mxu0
        %v2307 = vpop.f32.mrb[0].mxu0
        %2308 = vdwg.mxu0
        %v2310 = vsel %vm1772, %v2211, 0
        %v2313 = vsel %vm2027, %v2215, 0
        %2315 = vmatprep.subr.bf16.mxu0 0
        %2316 = vmatpush1.bf16.msra.mxu0 %v2313
        %2317 = vmatprep.subr.bf16.mxu0 0
        %2318 = vmatpush1.bf16.msra.mxu0 0
        %2319 = vmatprep.subr.bf16.mxu0 0
        %2320 = vmatpush1.bf16.msra.mxu0 0
        %2321 = vmatprep.subr.bf16.mxu0 0
        %2322 = vmatpush1.bf16.msra.mxu0 0
        %2323 = vmatprep.subr.bf16.mxu0 0
        %2324 = vmatpush1.bf16.msra.mxu0 0
        %2325 = vmatprep.subr.bf16.mxu0 0
        %2326 = vmatpush1.bf16.msra.mxu0 0
        %2327 = vmatprep.subr.bf16.mxu0 0
        %2328 = vmatpush1.bf16.msra.mxu0 0
        %2329 = vmatprep.subr.bf16.mxu0 0
        %2330 = vmatpush1.bf16.msra.mxu0 0
        %2331 = vmatprep.subr.bf16.mxu0 0
        %2332 = vmatpush1.bf16.msra.mxu0 0
        %2333 = vmatprep.subr.bf16.mxu0 0
        %2334 = vmatpush1.bf16.msra.mxu0 0
        %2335 = vmatprep.subr.bf16.mxu0 0
        %2336 = vmatpush1.bf16.msra.mxu0 0
        %2337 = vmatprep.subr.bf16.mxu0 0
        %2338 = vmatpush1.bf16.msra.mxu0 0
        %2339 = vmatprep.subr.bf16.mxu0 0
        %2340 = vmatpush1.bf16.msra.mxu0 0
        %2341 = vmatprep.subr.bf16.mxu0 0
        %2342 = vmatpush1.bf16.msra.mxu0 0
        %2343 = vmatprep.subr.bf16.mxu0 0
        %2344 = vmatpush1.bf16.msra.mxu0 0
        %2345 = vmatprep.subr.bf16.mxu0 0
        %2346 = vmatpush1.bf16.msra.mxu0 0
        %2347 = vmatprep.mubr.bf16.mxu0 0
        %2348 = vmatmul.mubr.bf16.gmra.mrb[0].mxu0 %v2310
        %v2349 = vpop.f32.mrb[0].mxu0
        %v2350 = vadd.f32 0.0, %v2349
        %v2351 = vpop.f32.mrb[0].mxu0
        %v2352 = vpop.f32.mrb[0].mxu0
        %v2353 = vpop.f32.mrb[0].mxu0
        %2354 = vdwg.mxu0
        %v2356 = vsel %vm1772, %v2212, 0
        %v2359 = vsel %vm2027, %v2216, 0
        %2361 = vmatprep.subr.bf16.mxu0 0
        %2362 = vmatpush1.bf16.msra.mxu0 %v2359
        %2363 = vmatprep.subr.bf16.mxu0 0
        %2364 = vmatpush1.bf16.msra.mxu0 0
        %2365 = vmatprep.subr.bf16.mxu0 0
        %2366 = vmatpush1.bf16.msra.mxu0 0
        %2367 = vmatprep.subr.bf16.mxu0 0
        %2368 = vmatpush1.bf16.msra.mxu0 0
        %2369 = vmatprep.subr.bf16.mxu0 0
        %2370 = vmatpush1.bf16.msra.mxu0 0
        %2371 = vmatprep.subr.bf16.mxu0 0
        %2372 = vmatpush1.bf16.msra.mxu0 0
        %2373 = vmatprep.subr.bf16.mxu0 0
        %2374 = vmatpush1.bf16.msra.mxu0 0
        %2375 = vmatprep.subr.bf16.mxu0 0
        %2376 = vmatpush1.bf16.msra.mxu0 0
        %2377 = vmatprep.subr.bf16.mxu0 0
        %2378 = vmatpush1.bf16.msra.mxu0 0
        %2379 = vmatprep.subr.bf16.mxu0 0
        %2380 = vmatpush1.bf16.msra.mxu0 0
        %2381 = vmatprep.subr.bf16.mxu0 0
        %2382 = vmatpush1.bf16.msra.mxu0 0
        %2383 = vmatprep.subr.bf16.mxu0 0
        %2384 = vmatpush1.bf16.msra.mxu0 0
        %2385 = vmatprep.subr.bf16.mxu0 0
        %2386 = vmatpush1.bf16.msra.mxu0 0
        %2387 = vmatprep.subr.bf16.mxu0 0
        %2388 = vmatpush1.bf16.msra.mxu0 0
        %2389 = vmatprep.subr.bf16.mxu0 0
        %2390 = vmatpush1.bf16.msra.mxu0 0
        %2391 = vmatprep.subr.bf16.mxu0 0
        %2392 = vmatpush1.bf16.msra.mxu0 0
        %2393 = vmatprep.mubr.bf16.mxu0 0
        %2394 = vmatmul.mubr.bf16.gmra.mrb[0].mxu0 %v2356
        %v2395 = vpop.f32.mrb[0].mxu0
        %v2396 = vadd.f32 0.0, %v2395
        %v2397 = vpop.f32.mrb[0].mxu0
        %v2398 = vpop.f32.mrb[0].mxu0
        %v2399 = vpop.f32.mrb[0].mxu0
        %2400 = vdwg.mxu0
        %v2401 = vsel %vm1060, %v2258, 0.0
        %v2402 = vsel %vm1060, %v2304, 0.0
        %v2403 = vadd.f32 %v2401, %v2402
        %v2404 = vsel %vm1060, %v2350, 0.0
        %v2405 = vadd.f32 %v2403, %v2404
        %v2406 = vsel %vm1060, %v2396, 0.0
        %v2407 = vadd.f32 %v2405, %v2406
        %v2408 = vld [vmem:[%s935] sm:$0x1]
        %v2410 = vlaneseq
        %v2411 = vshrl.u32 %v2410, 7
        %v2412 = vsub.s32 0, %v2411
        %v2413 = vrot.slane %v2408, %v2412
        %v2415 = vadd.f32 %v2407, %v2413
        %v2416 = vadd.f32 %v2415, %v1002
        %v2417 = vld [vmem:[%s938] sm:$0x1]
        %v2418 = vld [vmem:[%s941] sm:$0x1]
        %v2419 = vsel %vm1060, %v2416, 0.0
        %2420 = vadd.xlane.f32.xlu0 %v2419
        %v2421 = vpop.xlane.xlu0 %2420
        %v2422 = vrcp.pop 32.0
        %v2423 = vmul.f32 %v2421, %v2422
        %v2424 = vsub.f32 %v2416, %v2423
        %v2425 = vmul.f32 %v2424, %v2424
        %v2426 = vsel %vm1060, %v2425, 0.0
        %2427 = vadd.xlane.f32.xlu0 %v2426
        %v2428 = vpop.xlane.xlu0 %2427
        %v2429 = vmul.f32 %v2428, %v2422
        %v2430 = vadd.f32 %v2429, 1e-12
        %v2431 = vrsqrt.pop %v2430
        %v2432 = vmul.f32 %v2424, %v2431
        %v2434 = vlaneseq
        %v2435 = vshrl.u32 %v2434, 7
        %v2436 = vsub.s32 0, %v2435
        %v2437 = vrot.slane %v2417, %v2436
        %v2439 = vmul.f32 %v2432, %v2437
        %v2441 = vlaneseq
        %v2442 = vshrl.u32 %v2441, 7
        %v2443 = vsub.s32 0, %v2442
        %v2444 = vrot.slane %v2418, %v2443
        %v2446 = vadd.f32 %v2439, %v2444
        %v2447 = vpack.c.bf16 %v2446, %v2446
        %v2448 = vld [vmem:[%s946] sm:$0xf]
        %v2449 = vld [vmem:[%s946 + $0x4] sm:$0xf]
        %v2450 = vld [vmem:[%s946 + $0x8] sm:$0xf]
        %v2451 = vld [vmem:[%s946 + $0xc] sm:$0xf]
        %v2452 = vld [vmem:[%s949] sm:$0x1]
        %v2454 = vlaneseq
        %v2455 = vshrl.u32 %v2454, 7
        %v2456 = vsub.s32 0, %v2455
        %v2457 = vrot.slane %v2452, %v2456
        %v2463 = vunpack.c.l.b16 %v2448
        %v2464 = vunpack.c.l.b16 %v2449
        %v2465 = vunpack.c.l.b16 %v2450
        %v2466 = vunpack.c.l.b16 %v2451
        %v2467 = vpack.c.b16 %v2464, %v2463
        %v2468 = vpack.c.b16 %v2466, %v2465
        %v2472 = vsel %vm1060, %v2447, 0
        %2474 = vmatprep.subr.bf16.mxu0 0
        %2475 = vmatpush1.bf16.msra.mxu0 %v2467
        %2476 = vmatprep.subr.bf16.mxu0 0
        %2477 = vmatpush1.bf16.msra.mxu0 %v2468
        %2478 = vmatprep.subr.bf16.mxu0 0
        %2479 = vmatpush1.bf16.msra.mxu0 0
        %2480 = vmatprep.subr.bf16.mxu0 0
        %2481 = vmatpush1.bf16.msra.mxu0 0
        %2482 = vmatprep.subr.bf16.mxu0 0
        %2483 = vmatpush1.bf16.msra.mxu0 0
        %2484 = vmatprep.subr.bf16.mxu0 0
        %2485 = vmatpush1.bf16.msra.mxu0 0
        %2486 = vmatprep.subr.bf16.mxu0 0
        %2487 = vmatpush1.bf16.msra.mxu0 0
        %2488 = vmatprep.subr.bf16.mxu0 0
        %2489 = vmatpush1.bf16.msra.mxu0 0
        %2490 = vmatprep.subr.bf16.mxu0 0
        %2491 = vmatpush1.bf16.msra.mxu0 0
        %2492 = vmatprep.subr.bf16.mxu0 0
        %2493 = vmatpush1.bf16.msra.mxu0 0
        %2494 = vmatprep.subr.bf16.mxu0 0
        %2495 = vmatpush1.bf16.msra.mxu0 0
        %2496 = vmatprep.subr.bf16.mxu0 0
        %2497 = vmatpush1.bf16.msra.mxu0 0
        %2498 = vmatprep.subr.bf16.mxu0 0
        %2499 = vmatpush1.bf16.msra.mxu0 0
        %2500 = vmatprep.subr.bf16.mxu0 0
        %2501 = vmatpush1.bf16.msra.mxu0 0
        %2502 = vmatprep.subr.bf16.mxu0 0
        %2503 = vmatpush1.bf16.msra.mxu0 0
        %2504 = vmatprep.subr.bf16.mxu0 0
        %2505 = vmatpush1.bf16.msra.mxu0 0
        %2506 = vmatprep.mubr.bf16.mxu0 0
        %2507 = vmatmul.mubr.bf16.gmra.mrb[0].mxu0 %v2472
        %v2508 = vpop.f32.mrb[0].mxu0
        %v2509 = vadd.f32 %v2457, %v2508
        %v2510 = vpop.f32.mrb[0].mxu0
        %v2511 = vpop.f32.mrb[0].mxu0
        %v2512 = vpop.f32.mrb[0].mxu0
        %2513 = vdwg.mxu0
        %v2514 = vmul.f32 %v2509, 0.5
        %v2515 = vmul.f32 %v2509, 0.70710677
        %v2516 = verf.f32.pop %v2515
        %v2517 = vadd.f32 %v2516, 1.0
        %v2518 = vmul.f32 %v2514, %v2517
        %v2519 = vpack.c.bf16 %v2518, %v2518
        %v2520 = vld [vmem:[%s954] sm:$0xf]
        %v2521 = vld [vmem:[%s954 + $0x4] sm:$0xf]
        %v2522 = vld [vmem:[%s954 + $0x8] sm:$0xf]
        %v2523 = vld [vmem:[%s954 + $0xc] sm:$0xf]
        %v2524 = vld [vmem:[%s954 + $0x10] sm:$0xf]
        %v2525 = vld [vmem:[%s954 + $0x14] sm:$0xf]
        %v2526 = vld [vmem:[%s954 + $0x18] sm:$0xf]
        %v2527 = vld [vmem:[%s954 + $0x1c] sm:$0xf]
        %v2528 = vld [vmem:[%s957] sm:$0x1]
        %v2530 = vlaneseq
        %v2531 = vshrl.u32 %v2530, 7
        %v2532 = vsub.s32 0, %v2531
        %v2533 = vrot.slane %v2528, %v2532
        %v2543 = vunpack.c.l.b16 %v2520
        %v2544 = vunpack.c.l.b16 %v2521
        %v2545 = vunpack.c.l.b16 %v2522
        %v2546 = vunpack.c.l.b16 %v2523
        %v2547 = vunpack.c.l.b16 %v2524
        %v2548 = vunpack.c.l.b16 %v2525
        %v2549 = vunpack.c.l.b16 %v2526
        %v2550 = vunpack.c.l.b16 %v2527
        %v2551 = vpack.c.b16 %v2544, %v2543
        %v2552 = vpack.c.b16 %v2546, %v2545
        %v2553 = vpack.c.b16 %v2548, %v2547
        %v2554 = vpack.c.b16 %v2550, %v2549
        %vm2559 = vcmask 523264
        %v2561 = vsel %vm2559, %v2519, 0
        %2563 = vmatprep.subr.bf16.mxu0 0
        %2564 = vmatpush1.bf16.msra.mxu0 %v2551
        %2565 = vmatprep.subr.bf16.mxu0 0
        %2566 = vmatpush1.bf16.msra.mxu0 %v2552
        %2567 = vmatprep.subr.bf16.mxu0 0
        %2568 = vmatpush1.bf16.msra.mxu0 %v2553
        %2569 = vmatprep.subr.bf16.mxu0 0
        %2570 = vmatpush1.bf16.msra.mxu0 %v2554
        %2571 = vmatprep.subr.bf16.mxu0 0
        %2572 = vmatpush1.bf16.msra.mxu0 0
        %2573 = vmatprep.subr.bf16.mxu0 0
        %2574 = vmatpush1.bf16.msra.mxu0 0
        %2575 = vmatprep.subr.bf16.mxu0 0
        %2576 = vmatpush1.bf16.msra.mxu0 0
        %2577 = vmatprep.subr.bf16.mxu0 0
        %2578 = vmatpush1.bf16.msra.mxu0 0
        %2579 = vmatprep.subr.bf16.mxu0 0
        %2580 = vmatpush1.bf16.msra.mxu0 0
        %2581 = vmatprep.subr.bf16.mxu0 0
        %2582 = vmatpush1.bf16.msra.mxu0 0
        %2583 = vmatprep.subr.bf16.mxu0 0
        %2584 = vmatpush1.bf16.msra.mxu0 0
        %2585 = vmatprep.subr.bf16.mxu0 0
        %2586 = vmatpush1.bf16.msra.mxu0 0
        %2587 = vmatprep.subr.bf16.mxu0 0
        %2588 = vmatpush1.bf16.msra.mxu0 0
        %2589 = vmatprep.subr.bf16.mxu0 0
        %2590 = vmatpush1.bf16.msra.mxu0 0
        %2591 = vmatprep.subr.bf16.mxu0 0
        %2592 = vmatpush1.bf16.msra.mxu0 0
        %2593 = vmatprep.subr.bf16.mxu0 0
        %2594 = vmatpush1.bf16.msra.mxu0 0
        %2595 = vmatprep.mubr.bf16.mxu0 0
        %2596 = vmatmul.mubr.bf16.gmra.mrb[0].mxu0 %v2561
        %v2597 = vpop.f32.mrb[0].mxu0
        %v2598 = vadd.f32 %v2533, %v2597
        %v2599 = vpop.f32.mrb[0].mxu0
        %v2600 = vpop.f32.mrb[0].mxu0
        %v2601 = vpop.f32.mrb[0].mxu0
        %2602 = vdwg.mxu0
        %v2603 = vadd.f32 %v2598, %v2446
        %v2604 = vld [vmem:[%s960] sm:$0x1]
        %v2605 = vld [vmem:[%s963] sm:$0x1]
        %v2606 = vsel %vm1060, %v2603, 0.0
        %2607 = vadd.xlane.f32.xlu0 %v2606
        %v2608 = vpop.xlane.xlu0 %2607
        %v2609 = vmul.f32 %v2608, %v2422
        %v2610 = vsub.f32 %v2603, %v2609
        %v2611 = vmul.f32 %v2610, %v2610
        %v2612 = vsel %vm1060, %v2611, 0.0
        %2613 = vadd.xlane.f32.xlu0 %v2612
        %v2614 = vpop.xlane.xlu0 %2613
        %v2615 = vmul.f32 %v2614, %v2422
        %v2616 = vadd.f32 %v2615, 1e-12
        %v2617 = vrsqrt.pop %v2616
        %v2618 = vmul.f32 %v2610, %v2617
        %v2620 = vlaneseq
        %v2621 = vshrl.u32 %v2620, 7
        %v2622 = vsub.s32 0, %v2621
        %v2623 = vrot.slane %v2604, %v2622
        %v2625 = vmul.f32 %v2618, %v2623
        %v2627 = vlaneseq
        %v2628 = vshrl.u32 %v2627, 7
        %v2629 = vsub.s32 0, %v2628
        %v2630 = vrot.slane %v2605, %v2629
        %v2632 = vadd.f32 %v2625, %v2630
        %2633 = vst.msk [vmem:[#allocation2] sm:$0xff] %vm1060, %v2632
        %p2634 = scmp.eq.s32.totalorder %s40, 1
        // Predicated region
        $region109: #{bert_forward.1} parent=103 // pred_check
          %p2635 = pneg %p2634
        $region110: #{bert_forward.1} parent=103 // pred_check_branch
          %2637 = sbr.rel (%p2635) target = $region112
        $region111: #{bert_forward.1} parent=103 // pred_region
          %v2638 = vld [vmem:[%s900] sm:$0xff]
          %2640 = vset.pattern.permute.xlu0 0
          %2641 = vperm.xlu0 %2640, %v2638
          %v2642 = vpop.permute.xlu0 %2641
          %v2644 = vmul.f32 %v2632, %v2642
          %2645 = vst.msk [vmem:[%s889] sm:$0xff] %vm1060, %v2644
        $region112: #{bert_forward.1} parent=103 // pred_fallthru
          _
        %s2646 = sand.u32 %s591, 1
        %s2647 = scalar_lea.sflag [#allocation4], %s2646
        %s2648 = sand.u32 %s591, 1
        %s2649 = smul.addr %s2648, 8
        %s2650 = scalar_lea.vmem [#allocation3], %s2649
        // Predicated region
        $region113: #{bert_forward.1} parent=103 // pred_check
          %p2651 = pneg %p601
        $region114: #{bert_forward.1} parent=103 // pred_check_branch
          %2653 = sbr.rel (%p2651) target = $region116
        $region115: #{bert_forward.1} parent=103 // pred_region
          %s2655 = ssub.s32 128, 128
          %2656 = vsyncadd %s2647, %s2655
          %s2657 = smul.addr %s39, 128
          %s2658 = scalar_lea.hbm %s21, %s2657
          %s2660 = sshll.u32 %s2650, 4
          %s2661 = int_to_ptr.vmem [resolvable:$true] %s2660
          %2663 = dma.vmem_to_hbm [thread:$0]  %s2661, 128, %s2658, %s2647
        $region116: #{bert_forward.1} parent=103 // pred_fallthru
          _
      $region104: #{bert_forward.1} parent=5 // pred_fallthru
        _
      %p2664 = scmp.le.s32.totalorder 2, %s30
      // Predicated region
      $region117: #{bert_forward.1} parent=5 // pred_check
        %p2665 = pneg %p2664
      $region118: #{bert_forward.1} parent=5 // pred_check_branch
        %2667 = sbr.rel (%p2665) target = $region120
      $region119: #{bert_forward.1} parent=5 // pred_region
        %s2668 = ssub.s32 %s30, 2
        // Predicated region
        $region121: #{bert_forward.1} parent=119 // pred_check
          %p2669 = pneg %p607
        $region122: #{bert_forward.1} parent=119 // pred_check_branch
          %2671 = sbr.rel (%p2669) target = $region124
        $region123: #{bert_forward.1} parent=119 // pred_region
          %s2672 = sand.u32 %s592, 1
          %s2673 = scalar_lea.sflag [#allocation4], %s2672
          %s2674 = sand.u32 %s592, 1
          %s2675 = smul.addr %s2674, 8
          %s2676 = scalar_lea.vmem [#allocation3], %s2675
          %2677 = dma.done %s2673, 128
        $region124: #{bert_forward.1} parent=119 // pred_fallthru
          _
      $region120: #{bert_forward.1} parent=5 // pred_fallthru
        _
    $region6: #{bert_forward.1} parent=1 // loop_footer
      %s34 = sadd.s32 1, %s30
    $region7: #{bert_forward.1} parent=1 // loop_footer_branch
      %29 = sbr.rel target = $region3
    $region8: #{bert_forward.1} parent=1 // loop_exit
      _
    %2678 = vsyncpa [#allocation4], 1
    %s2679 = scalar_lea.sflag [#allocation4], 1
    %2680 = vsyncpa %s2679, 1

</llo_original>
